<compile_context>
chip_gen: v5e
topology: v5e:2x2
jax: 0.10.0
libtpu: 0.0.40
codegen_flags: <defaults>
</compile_context>

<pallas_src>
import jax
import jax.numpy as jnp
from jax import lax
from jax.experimental import pallas as pl
from jax.experimental.pallas import tpu as pltpu


LN_EPS = 1e-5


def _make_kernel(T, bb, D, H, L, C):
    """Builds the Pallas kernel body (static shapes closed over)."""

    def kernel(*refs):
        x_ref = refs[0]                                   # (T, bb, D)
        lstm_refs = refs[1:1 + 3 * L]
        (gamma_ref, beta_ref, w1T_ref, b1_ref,
         w2_ref, b2_ref) = refs[1 + 3 * L:7 + 3 * L]
        out_ref = refs[7 + 3 * L]
        proj_scr, y_scr = refs[8 + 3 * L], refs[9 + 3 * L]

        # ---------------- LSTM: layer-outer / time-inner ----------------
        for l in range(L):
            wihT = lstm_refs[3 * l][...]       # (D_in, 4H) bf16, loaded once
            whhT = lstm_refs[3 * l + 1][...]   # (H,    4H) bf16, loaded once
            bias = lstm_refs[3 * l + 2][...]   # (1,    4H) f32,  loaded once

            # Input projections for every timestep (independent, off the serial
            # path), written tile-aligned into the 3-D scratch.
            for t in range(T):
                if l == 0:
                    inp_t = x_ref[t].astype(jnp.bfloat16)     # (bb, D)
                else:
                    inp_t = y_scr[t].astype(jnp.bfloat16)     # (bb, H)
                proj_scr[t] = (
                    jnp.dot(inp_t, wihT, preferred_element_type=jnp.float32)
                    + bias)

            h = jnp.zeros((bb, H), jnp.float32)
            c = jnp.zeros((bb, H), jnp.float32)

            # Serial recurrence; T is small -> full static unroll.
            # TODO(synk): for large L / small bb a (layer, time) wavefront with
            # a fused block-diagonal recurrent matmul would shorten the
            # dependent MXU chain from L*T to L+T-1 (v6e/v7x).
            for t in range(T):
                rec = jnp.dot(h.astype(jnp.bfloat16), whhT,
                              preferred_element_type=jnp.float32)
                g_all = proj_scr[t] + rec                     # (bb, 4H) f32

                # gate layout is (i, f, o | g): sigmoid on 3H, tanh on H only.
                sig = jax.nn.sigmoid(g_all[:, :3 * H])
                i_g = sig[:, 0 * H:1 * H]
                f_g = sig[:, 1 * H:2 * H]
                o_g = sig[:, 2 * H:3 * H]
                g_g = jnp.tanh(g_all[:, 3 * H:4 * H])

                c = f_g * c + i_g * g_g
                h = o_g * jnp.tanh(c)
                y_scr[t] = h                                  # tile-aligned store

        # -------- LayerNorm + MLP head (per-t, all tile-aligned accesses) -----
        gamma = gamma_ref[...]       # (1, H) f32
        beta = beta_ref[...]         # (1, H) f32
        w1T = w1T_ref[...]           # (H, H) bf16
        b1 = b1_ref[...]             # (1, H) f32
        w2 = w2_ref[...]             # (1, H) f32 row (C==1) or (H, C) bf16
        b2 = b2_ref[...]             # (1, C) f32
        for t in range(T):
            y_t = y_scr[t]                                    # (bb, H)
            mean = jnp.mean(y_t, axis=-1, keepdims=True)
            var = jnp.mean(jnp.square(y_t - mean), axis=-1, keepdims=True)
            normed = (y_t - mean) * lax.rsqrt(var + LN_EPS) * gamma + beta
            h1 = jnp.dot(normed.astype(jnp.bfloat16), w1T,
                         preferred_element_type=jnp.float32) + b1
            h1 = jnp.maximum(h1, 0.0)                         # ReLU (dropout=0)
            if C == 1:
                # VPU multiply + lane reduction instead of a 1-column MXU matmul.
                logit = jnp.sum(h1 * w2, axis=-1, keepdims=True) + b2   # (bb, 1)
                out_ref[:, t:t + 1] = logit
            else:
                logit = jnp.dot(h1.astype(jnp.bfloat16), w2,
                                preferred_element_type=jnp.float32) + b2
                out_ref[t] = logit                            # (bb, C)

    return kernel


def _reorder_gates(w):
    """PyTorch packs LSTM gates as (i, f, g, o); the kernel wants (i, f, o, g)."""
    i, f, g, o = jnp.split(w, 4, axis=0)
    return jnp.concatenate([i, f, o, g], axis=0)


def community_evolution_lstm(x, params, *, batch_block=None):
    """x: (B, T, input_dim) float32.  params: PyTorch-layout weights (init_params)."""
    B, T, D = x.shape
    H = params["gamma"].shape[0]
    C = params["w2"].shape[0]
    L = len(params["lstm"])

    # Batch block for the "parallel" grid axis.  Default: one block (no grid
    # overhead -- right for single-TC v5e/v6e).  On v7x pass batch_block=B//2
    # (a multiple of 8) so both TensorCores get work.
    bb = B
    if batch_block is not None:
        cand = min(int(batch_block), B)
        if cand != B and B % cand == 0 and cand % 8 == 0:
            bb = cand
    n_bb = B // bb

    # ---- wrapper-side parameter prep: reorder gates, fuse biases, transpose,
    # cast MXU operands to bf16.  All tiny one-time XLA ops.
    # TODO(synk): for very large B*T*D (esp. v5e) consume x batch-major inside
    # the kernel to avoid this extra HBM pass over x.
    x_tb = jnp.transpose(x, (1, 0, 2)).astype(jnp.float32)        # (T, B, D)
    args = [x_tb]
    for (w_ih, w_hh, b_ih, b_hh) in params["lstm"]:
        wihT = _reorder_gates(w_ih).T.astype(jnp.bfloat16)        # (D_in, 4H)
        whhT = _reorder_gates(w_hh).T.astype(jnp.bfloat16)        # (H, 4H)
        bias = _reorder_gates(b_ih + b_hh).reshape(1, 4 * H)      # (1, 4H) f32
        args += [wihT, whhT, bias]
    if C == 1:
        w2_arg = params["w2"].reshape(1, H).astype(jnp.float32)   # VPU row
    else:
        w2_arg = params["w2"].T.astype(jnp.bfloat16)              # (H, C)
    args += [params["gamma"].reshape(1, H), params["beta"].reshape(1, H),
             params["w1"].T.astype(jnp.bfloat16), params["b1"].reshape(1, H),
             w2_arg, params["b2"].reshape(1, C)]

    def full_spec(a):
        return pl.BlockSpec(a.shape, lambda i, n=a.ndim: (0,) * n)

    in_specs = [pl.BlockSpec((T, bb, D), lambda i: (0, i, 0))]
    in_specs += [full_spec(a) for a in args[1:]]

    if C == 1:
        out_shape = jax.ShapeDtypeStruct((B, T), jnp.float32)
        out_spec = pl.BlockSpec((bb, T), lambda i: (i, 0))
    else:
        out_shape = jax.ShapeDtypeStruct((T, B, C), jnp.float32)
        out_spec = pl.BlockSpec((T, bb, C), lambda i: (0, i, 0))

    scratch_shapes = [
        pltpu.VMEM((T, bb, 4 * H), jnp.float32),   # per-layer input projections
        pltpu.VMEM((T, bb, H), jnp.float32),       # per-layer LSTM outputs
    ]

    # ---- VMEM limit derived from the actual tiling (double-buffered blocks +
    # weights + scratch), clamped to 3/4 of physical VMEM.
    def nbytes(shape, dtype):
        n = 1
        for s in shape:
            n *= int(s)
        return n * jnp.dtype(dtype).itemsize

    est = 2 * nbytes((T, bb, D), jnp.float32)                    # x block
    est += 2 * nbytes((bb, T, C), jnp.float32)                   # out block
    est += sum(2 * int(a.size) * a.dtype.itemsize for a in args[1:])
    est += nbytes((T, bb, 4 * H), jnp.float32)
    est += nbytes((T, bb, H), jnp.float32)

    phys_vmem = 128 << 20
    try:
        phys_vmem = int(pltpu.get_tpu_info().vmem_capacity_bytes)
    except Exception:
        pass
    vmem_limit = int(min(max(2 * est + (8 << 20), 32 << 20), phys_vmem * 3 // 4))

    kernel = _make_kernel(T, bb, D, H, L, C)
    out = pl.pallas_call(
        kernel,
        out_shape=out_shape,
        grid=(n_bb,),
        in_specs=in_specs,
        out_specs=out_spec,
        scratch_shapes=scratch_shapes,
        compiler_params=pltpu.CompilerParams(
            dimension_semantics=("parallel",),
            vmem_limit_bytes=vmem_limit),
    )(*args)

    if C == 1:
        return out                               # (B, T) -- torch .squeeze(-1)
    return jnp.transpose(out, (1, 0, 2))         # (B, T, C)


# ---------------------------------------------------------------------------
# Deterministic parameter init (PyTorch layouts: nn.LSTM / nn.Linear / nn.LayerNorm)
# ---------------------------------------------------------------------------
def init_params(key, input_dim, hidden_dim, num_layers, num_classes):
    H = hidden_dim
    scale = 1.0 / float(H) ** 0.5
    keys = jax.random.split(key, 4 * num_layers + 4)
    k = iter(keys)

    lstm = []
    for l in range(num_layers):
        d_in = input_dim if l == 0 else H
        w_ih = jax.random.uniform(next(k), (4 * H, d_in), jnp.float32, -scale, scale)
        w_hh = jax.random.uniform(next(k), (4 * H, H), jnp.float32, -scale, scale)
        b_ih = jax.random.uniform(next(k), (4 * H,), jnp.float32, -scale, scale)
        b_hh = jax.random.uniform(next(k), (4 * H,), jnp.float32, -scale, scale)
        lstm.append((w_ih, w_hh, b_ih, b_hh))

    gamma = jnp.ones((H,), jnp.float32)
    beta = jnp.zeros((H,), jnp.float32)
    w1 = jax.random.uniform(next(k), (H, H), jnp.float32, -scale, scale)
    b1 = jax.random.uniform(next(k), (H,), jnp.float32, -scale, scale)
    w2 = jax.random.uniform(next(k), (num_classes, H), jnp.float32, -scale, scale)
    b2 = jax.random.uniform(next(k), (num_classes,), jnp.float32, -scale, scale)

    return dict(lstm=lstm, gamma=gamma, beta=beta, w1=w1, b1=b1, w2=w2, b2=b2)


# ---------------------------------------------------------------------------
# Pure-JAX reference (PyTorch gate order i,f,g,o) for numerical check
# ---------------------------------------------------------------------------
def reference_forward(x, params):
    B, T, D = x.shape
    H = params["gamma"].shape[0]
    L = len(params["lstm"])

    def cell(inp, h, c, w_ih, w_hh, b_ih, b_hh):
        gates = inp @ w_ih.T + h @ w_hh.T + b_ih + b_hh
        i_g = jax.nn.sigmoid(gates[:, 0 * H:1 * H])
        f_g = jax.nn.sigmoid(gates[:, 1 * H:2 * H])
        g_g = jnp.tanh(gates[:, 2 * H:3 * H])
        o_g = jax.nn.sigmoid(gates[:, 3 * H:4 * H])
        c_new = f_g * c + i_g * g_g
        return o_g * jnp.tanh(c_new), c_new

    def step(carry, x_t):
        hs, cs = carry
        inp = x_t
        new_hs, new_cs = [], []
        for l in range(L):
            w_ih, w_hh, b_ih, b_hh = params["lstm"][l]
            h, c = cell(inp, hs[l], cs[l], w_ih, w_hh, b_ih, b_hh)
            new_hs.append(h); new_cs.append(c)
            inp = h
        return (jnp.stack(new_hs), jnp.stack(new_cs)), inp

    h0 = jnp.zeros((L, B, H), jnp.float32)
    c0 = jnp.zeros((L, B, H), jnp.float32)
    _, ys = lax.scan(step, (h0, c0), jnp.transpose(x, (1, 0, 2)))
    y = jnp.transpose(ys, (1, 0, 2))                          # (B, T, H)

    mean = jnp.mean(y, axis=-1, keepdims=True)
    var = jnp.mean((y - mean) ** 2, axis=-1, keepdims=True)
    normed = (y - mean) * lax.rsqrt(var + LN_EPS)
    normed = normed * params["gamma"] + params["beta"]

    h1 = jnp.maximum(normed @ params["w1"].T + params["b1"], 0.0)
    logits = h1 @ params["w2"].T + params["b2"]
    if logits.shape[-1] == 1:
        logits = logits[..., 0]
    return logits


if __name__ == "__main__":
    B, T, D, H, L, C = 2, 8, 16, 32, 2, 1

    key = jax.random.PRNGKey(0)
    kx, kp = jax.random.split(key)
    x = jax.random.normal(kx, (B, T, D), jnp.float32)
    params = init_params(kp, D, H, L, C)

    out = community_evolution_lstm(x, params)
    out = jax.block_until_ready(out)

    ref = reference_forward(x, params)
    assert out.shape == ref.shape, (out.shape, ref.shape)
    err = float(jnp.max(jnp.abs(out - ref)))
    assert err < 3e-2, err    # bf16 MXU operands => ~1e-3..1e-2 vs f32 reference
    print("KERNEL_OK")
</pallas_src>

<mosaic_0001>
module attributes {stable_mosaic.version = 11 : i64} {
  func.func @kernel(%arg0: i32, %arg1: memref<8x2x16xf32, #tpu.memory_space<vmem>>, %arg2: memref<16x128xbf16, #tpu.memory_space<vmem>>, %arg3: memref<32x128xbf16, #tpu.memory_space<vmem>>, %arg4: memref<1x128xf32, #tpu.memory_space<vmem>>, %arg5: memref<32x128xbf16, #tpu.memory_space<vmem>>, %arg6: memref<32x128xbf16, #tpu.memory_space<vmem>>, %arg7: memref<1x128xf32, #tpu.memory_space<vmem>>, %arg8: memref<1x32xf32, #tpu.memory_space<vmem>>, %arg9: memref<1x32xf32, #tpu.memory_space<vmem>>, %arg10: memref<32x32xbf16, #tpu.memory_space<vmem>>, %arg11: memref<1x32xf32, #tpu.memory_space<vmem>>, %arg12: memref<1x32xf32, #tpu.memory_space<vmem>>, %arg13: memref<1x1xf32, #tpu.memory_space<vmem>>, %arg14: memref<2x8xf32, #tpu.memory_space<vmem>>, %arg15: memref<8x2x128xf32, #tpu.memory_space<vmem>>, %arg16: memref<8x2x32xf32, #tpu.memory_space<vmem>>) attributes {dimension_semantics = [#tpu.dimension_semantics<parallel>], iteration_bounds = array<i64: 1>, scalar_prefetch = 0 : i64, scratch_operands = 2 : i64, tpu.core_type = #tpu.core_type<tc>, window_params = [{transform_indices = @transform_0, window_bounds = array<i64: 8, 2, 16>}, {pipeline_mode = #tpu.pipeline_mode<synchronous>, transform_indices = @transform_1, window_bounds = array<i64: 16, 128>}, {pipeline_mode = #tpu.pipeline_mode<synchronous>, transform_indices = @transform_2, window_bounds = array<i64: 32, 128>}, {pipeline_mode = #tpu.pipeline_mode<synchronous>, transform_indices = @transform_3, window_bounds = array<i64: 1, 128>}, {pipeline_mode = #tpu.pipeline_mode<synchronous>, transform_indices = @transform_4, window_bounds = array<i64: 32, 128>}, {pipeline_mode = #tpu.pipeline_mode<synchronous>, transform_indices = @transform_5, window_bounds = array<i64: 32, 128>}, {pipeline_mode = #tpu.pipeline_mode<synchronous>, transform_indices = @transform_6, window_bounds = array<i64: 1, 128>}, {pipeline_mode = #tpu.pipeline_mode<synchronous>, transform_indices = @transform_7, window_bounds = array<i64: 1, 32>}, {pipeline_mode = #tpu.pipeline_mode<synchronous>, transform_indices = @transform_8, window_bounds = array<i64: 1, 32>}, {pipeline_mode = #tpu.pipeline_mode<synchronous>, transform_indices = @transform_9, window_bounds = array<i64: 32, 32>}, {pipeline_mode = #tpu.pipeline_mode<synchronous>, transform_indices = @transform_10, window_bounds = array<i64: 1, 32>}, {pipeline_mode = #tpu.pipeline_mode<synchronous>, transform_indices = @transform_11, window_bounds = array<i64: 1, 32>}, {pipeline_mode = #tpu.pipeline_mode<synchronous>, transform_indices = @transform_12, window_bounds = array<i64: 1, 1>}, {transform_indices = @transform_13, window_bounds = array<i64: 2, 8>}]} {
    %c0 = arith.constant 0 : index
    %c0_0 = arith.constant 0 : index
    %0 = vector.load %arg2[%c0, %c0_0] : memref<16x128xbf16, #tpu.memory_space<vmem>>, vector<16x128xbf16>
    %c0_1 = arith.constant 0 : index
    %c0_2 = arith.constant 0 : index
    %1 = vector.load %arg3[%c0_1, %c0_2] : memref<32x128xbf16, #tpu.memory_space<vmem>>, vector<32x128xbf16>
    %c0_3 = arith.constant 0 : index
    %c0_4 = arith.constant 0 : index
    %2 = vector.load %arg4[%c0_3, %c0_4] : memref<1x128xf32, #tpu.memory_space<vmem>>, vector<1x128xf32>
    %c0_5 = arith.constant 0 : index
    %c0_6 = arith.constant 0 : index
    %c0_7 = arith.constant 0 : index
    %3 = vector.load %arg1[%c0_5, %c0_6, %c0_7] : memref<8x2x16xf32, #tpu.memory_space<vmem>>, vector<1x2x16xf32>
    %4 = vector.shape_cast %3 : vector<1x2x16xf32> to vector<2x16xf32>
    %5 = arith.truncf %4 : vector<2x16xf32> to vector<2x16xbf16>
    %cst = arith.constant dense<0.000000e+00> : vector<2x128xf32>
    %6 = tpu.matmul %5, %0, %cst {dimension_numbers = #tpu.dot_dimension_numbers<[1], [0], [0], [1], [0, 0, 1, 1], [], []>} : vector<2x16xbf16>, vector<16x128xbf16>, vector<2x128xf32> -> vector<2x128xf32>
    %7 = vector.broadcast %2 : vector<1x128xf32> to vector<2x128xf32>
    %8 = arith.addf %6, %7 : vector<2x128xf32>
    %c0_8 = arith.constant 0 : index
    %c0_9 = arith.constant 0 : index
    %c0_10 = arith.constant 0 : index
    %9 = vector.load %arg15[%c0_8, %c0_9, %c0_10] : memref<8x2x128xf32, #tpu.memory_space<vmem>>, vector<1x2x128xf32>
    %10 = vector.shape_cast %9 : vector<1x2x128xf32> to vector<2x128xf32>
    %11 = vector.shape_cast %8 : vector<2x128xf32> to vector<1x2x128xf32>
    tpu.vector_store %arg15[%c0_8, %c0_9, %c0_10], %11 {strides = array<i32>} : memref<8x2x128xf32, #tpu.memory_space<vmem>>, vector<1x2x128xf32>,
    %c1 = arith.constant 1 : index
    %c0_11 = arith.constant 0 : index
    %c0_12 = arith.constant 0 : index
    %12 = vector.load %arg1[%c1, %c0_11, %c0_12] : memref<8x2x16xf32, #tpu.memory_space<vmem>>, vector<1x2x16xf32>
    %13 = vector.shape_cast %12 : vector<1x2x16xf32> to vector<2x16xf32>
    %14 = arith.truncf %13 : vector<2x16xf32> to vector<2x16xbf16>
    %cst_13 = arith.constant dense<0.000000e+00> : vector<2x128xf32>
    %15 = tpu.matmul %14, %0, %cst_13 {dimension_numbers = #tpu.dot_dimension_numbers<[1], [0], [0], [1], [0, 0, 1, 1], [], []>} : vector<2x16xbf16>, vector<16x128xbf16>, vector<2x128xf32> -> vector<2x128xf32>
    %16 = vector.broadcast %2 : vector<1x128xf32> to vector<2x128xf32>
    %17 = arith.addf %15, %16 : vector<2x128xf32>
    %c1_14 = arith.constant 1 : index
    %c0_15 = arith.constant 0 : index
    %c0_16 = arith.constant 0 : index
    %18 = vector.load %arg15[%c1_14, %c0_15, %c0_16] : memref<8x2x128xf32, #tpu.memory_space<vmem>>, vector<1x2x128xf32>
    %19 = vector.shape_cast %18 : vector<1x2x128xf32> to vector<2x128xf32>
    %20 = vector.shape_cast %17 : vector<2x128xf32> to vector<1x2x128xf32>
    tpu.vector_store %arg15[%c1_14, %c0_15, %c0_16], %20 {strides = array<i32>} : memref<8x2x128xf32, #tpu.memory_space<vmem>>, vector<1x2x128xf32>,
    %c2 = arith.constant 2 : index
    %c0_17 = arith.constant 0 : index
    %c0_18 = arith.constant 0 : index
    %21 = vector.load %arg1[%c2, %c0_17, %c0_18] : memref<8x2x16xf32, #tpu.memory_space<vmem>>, vector<1x2x16xf32>
    %22 = vector.shape_cast %21 : vector<1x2x16xf32> to vector<2x16xf32>
    %23 = arith.truncf %22 : vector<2x16xf32> to vector<2x16xbf16>
    %cst_19 = arith.constant dense<0.000000e+00> : vector<2x128xf32>
    %24 = tpu.matmul %23, %0, %cst_19 {dimension_numbers = #tpu.dot_dimension_numbers<[1], [0], [0], [1], [0, 0, 1, 1], [], []>} : vector<2x16xbf16>, vector<16x128xbf16>, vector<2x128xf32> -> vector<2x128xf32>
    %25 = vector.broadcast %2 : vector<1x128xf32> to vector<2x128xf32>
    %26 = arith.addf %24, %25 : vector<2x128xf32>
    %c2_20 = arith.constant 2 : index
    %c0_21 = arith.constant 0 : index
    %c0_22 = arith.constant 0 : index
    %27 = vector.load %arg15[%c2_20, %c0_21, %c0_22] : memref<8x2x128xf32, #tpu.memory_space<vmem>>, vector<1x2x128xf32>
    %28 = vector.shape_cast %27 : vector<1x2x128xf32> to vector<2x128xf32>
    %29 = vector.shape_cast %26 : vector<2x128xf32> to vector<1x2x128xf32>
    tpu.vector_store %arg15[%c2_20, %c0_21, %c0_22], %29 {strides = array<i32>} : memref<8x2x128xf32, #tpu.memory_space<vmem>>, vector<1x2x128xf32>,
    %c3 = arith.constant 3 : index
    %c0_23 = arith.constant 0 : index
    %c0_24 = arith.constant 0 : index
    %30 = vector.load %arg1[%c3, %c0_23, %c0_24] : memref<8x2x16xf32, #tpu.memory_space<vmem>>, vector<1x2x16xf32>
    %31 = vector.shape_cast %30 : vector<1x2x16xf32> to vector<2x16xf32>
    %32 = arith.truncf %31 : vector<2x16xf32> to vector<2x16xbf16>
    %cst_25 = arith.constant dense<0.000000e+00> : vector<2x128xf32>
    %33 = tpu.matmul %32, %0, %cst_25 {dimension_numbers = #tpu.dot_dimension_numbers<[1], [0], [0], [1], [0, 0, 1, 1], [], []>} : vector<2x16xbf16>, vector<16x128xbf16>, vector<2x128xf32> -> vector<2x128xf32>
    %34 = vector.broadcast %2 : vector<1x128xf32> to vector<2x128xf32>
    %35 = arith.addf %33, %34 : vector<2x128xf32>
    %c3_26 = arith.constant 3 : index
    %c0_27 = arith.constant 0 : index
    %c0_28 = arith.constant 0 : index
    %36 = vector.load %arg15[%c3_26, %c0_27, %c0_28] : memref<8x2x128xf32, #tpu.memory_space<vmem>>, vector<1x2x128xf32>
    %37 = vector.shape_cast %36 : vector<1x2x128xf32> to vector<2x128xf32>
    %38 = vector.shape_cast %35 : vector<2x128xf32> to vector<1x2x128xf32>
    tpu.vector_store %arg15[%c3_26, %c0_27, %c0_28], %38 {strides = array<i32>} : memref<8x2x128xf32, #tpu.memory_space<vmem>>, vector<1x2x128xf32>,
    %c4 = arith.constant 4 : index
    %c0_29 = arith.constant 0 : index
    %c0_30 = arith.constant 0 : index
    %39 = vector.load %arg1[%c4, %c0_29, %c0_30] : memref<8x2x16xf32, #tpu.memory_space<vmem>>, vector<1x2x16xf32>
    %40 = vector.shape_cast %39 : vector<1x2x16xf32> to vector<2x16xf32>
    %41 = arith.truncf %40 : vector<2x16xf32> to vector<2x16xbf16>
    %cst_31 = arith.constant dense<0.000000e+00> : vector<2x128xf32>
    %42 = tpu.matmul %41, %0, %cst_31 {dimension_numbers = #tpu.dot_dimension_numbers<[1], [0], [0], [1], [0, 0, 1, 1], [], []>} : vector<2x16xbf16>, vector<16x128xbf16>, vector<2x128xf32> -> vector<2x128xf32>
    %43 = vector.broadcast %2 : vector<1x128xf32> to vector<2x128xf32>
    %44 = arith.addf %42, %43 : vector<2x128xf32>
    %c4_32 = arith.constant 4 : index
    %c0_33 = arith.constant 0 : index
    %c0_34 = arith.constant 0 : index
    %45 = vector.load %arg15[%c4_32, %c0_33, %c0_34] : memref<8x2x128xf32, #tpu.memory_space<vmem>>, vector<1x2x128xf32>
    %46 = vector.shape_cast %45 : vector<1x2x128xf32> to vector<2x128xf32>
    %47 = vector.shape_cast %44 : vector<2x128xf32> to vector<1x2x128xf32>
    tpu.vector_store %arg15[%c4_32, %c0_33, %c0_34], %47 {strides = array<i32>} : memref<8x2x128xf32, #tpu.memory_space<vmem>>, vector<1x2x128xf32>,
    %c5 = arith.constant 5 : index
    %c0_35 = arith.constant 0 : index
    %c0_36 = arith.constant 0 : index
    %48 = vector.load %arg1[%c5, %c0_35, %c0_36] : memref<8x2x16xf32, #tpu.memory_space<vmem>>, vector<1x2x16xf32>
    %49 = vector.shape_cast %48 : vector<1x2x16xf32> to vector<2x16xf32>
    %50 = arith.truncf %49 : vector<2x16xf32> to vector<2x16xbf16>
    %cst_37 = arith.constant dense<0.000000e+00> : vector<2x128xf32>
    %51 = tpu.matmul %50, %0, %cst_37 {dimension_numbers = #tpu.dot_dimension_numbers<[1], [0], [0], [1], [0, 0, 1, 1], [], []>} : vector<2x16xbf16>, vector<16x128xbf16>, vector<2x128xf32> -> vector<2x128xf32>
    %52 = vector.broadcast %2 : vector<1x128xf32> to vector<2x128xf32>
    %53 = arith.addf %51, %52 : vector<2x128xf32>
    %c5_38 = arith.constant 5 : index
    %c0_39 = arith.constant 0 : index
    %c0_40 = arith.constant 0 : index
    %54 = vector.load %arg15[%c5_38, %c0_39, %c0_40] : memref<8x2x128xf32, #tpu.memory_space<vmem>>, vector<1x2x128xf32>
    %55 = vector.shape_cast %54 : vector<1x2x128xf32> to vector<2x128xf32>
    %56 = vector.shape_cast %53 : vector<2x128xf32> to vector<1x2x128xf32>
    tpu.vector_store %arg15[%c5_38, %c0_39, %c0_40], %56 {strides = array<i32>} : memref<8x2x128xf32, #tpu.memory_space<vmem>>, vector<1x2x128xf32>,
    %c6 = arith.constant 6 : index
    %c0_41 = arith.constant 0 : index
    %c0_42 = arith.constant 0 : index
    %57 = vector.load %arg1[%c6, %c0_41, %c0_42] : memref<8x2x16xf32, #tpu.memory_space<vmem>>, vector<1x2x16xf32>
    %58 = vector.shape_cast %57 : vector<1x2x16xf32> to vector<2x16xf32>
    %59 = arith.truncf %58 : vector<2x16xf32> to vector<2x16xbf16>
    %cst_43 = arith.constant dense<0.000000e+00> : vector<2x128xf32>
    %60 = tpu.matmul %59, %0, %cst_43 {dimension_numbers = #tpu.dot_dimension_numbers<[1], [0], [0], [1], [0, 0, 1, 1], [], []>} : vector<2x16xbf16>, vector<16x128xbf16>, vector<2x128xf32> -> vector<2x128xf32>
    %61 = vector.broadcast %2 : vector<1x128xf32> to vector<2x128xf32>
    %62 = arith.addf %60, %61 : vector<2x128xf32>
    %c6_44 = arith.constant 6 : index
    %c0_45 = arith.constant 0 : index
    %c0_46 = arith.constant 0 : index
    %63 = vector.load %arg15[%c6_44, %c0_45, %c0_46] : memref<8x2x128xf32, #tpu.memory_space<vmem>>, vector<1x2x128xf32>
    %64 = vector.shape_cast %63 : vector<1x2x128xf32> to vector<2x128xf32>
    %65 = vector.shape_cast %62 : vector<2x128xf32> to vector<1x2x128xf32>
    tpu.vector_store %arg15[%c6_44, %c0_45, %c0_46], %65 {strides = array<i32>} : memref<8x2x128xf32, #tpu.memory_space<vmem>>, vector<1x2x128xf32>,
    %c7 = arith.constant 7 : index
    %c0_47 = arith.constant 0 : index
    %c0_48 = arith.constant 0 : index
    %66 = vector.load %arg1[%c7, %c0_47, %c0_48] : memref<8x2x16xf32, #tpu.memory_space<vmem>>, vector<1x2x16xf32>
    %67 = vector.shape_cast %66 : vector<1x2x16xf32> to vector<2x16xf32>
    %68 = arith.truncf %67 : vector<2x16xf32> to vector<2x16xbf16>
    %cst_49 = arith.constant dense<0.000000e+00> : vector<2x128xf32>
    %69 = tpu.matmul %68, %0, %cst_49 {dimension_numbers = #tpu.dot_dimension_numbers<[1], [0], [0], [1], [0, 0, 1, 1], [], []>} : vector<2x16xbf16>, vector<16x128xbf16>, vector<2x128xf32> -> vector<2x128xf32>
    %70 = vector.broadcast %2 : vector<1x128xf32> to vector<2x128xf32>
    %71 = arith.addf %69, %70 : vector<2x128xf32>
    %c7_50 = arith.constant 7 : index
    %c0_51 = arith.constant 0 : index
    %c0_52 = arith.constant 0 : index
    %72 = vector.load %arg15[%c7_50, %c0_51, %c0_52] : memref<8x2x128xf32, #tpu.memory_space<vmem>>, vector<1x2x128xf32>
    %73 = vector.shape_cast %72 : vector<1x2x128xf32> to vector<2x128xf32>
    %74 = vector.shape_cast %71 : vector<2x128xf32> to vector<1x2x128xf32>
    tpu.vector_store %arg15[%c7_50, %c0_51, %c0_52], %74 {strides = array<i32>} : memref<8x2x128xf32, #tpu.memory_space<vmem>>, vector<1x2x128xf32>,
    %cst_53 = arith.constant 0.000000e+00 : f32
    %75 = vector.broadcast %cst_53 : f32 to vector<2x32xf32>
    %cst_54 = arith.constant 0.000000e+00 : f32
    %76 = vector.broadcast %cst_54 : f32 to vector<2x32xf32>
    %77 = arith.truncf %75 : vector<2x32xf32> to vector<2x32xbf16>
    %cst_55 = arith.constant dense<0.000000e+00> : vector<2x128xf32>
    %78 = tpu.matmul %77, %1, %cst_55 {dimension_numbers = #tpu.dot_dimension_numbers<[1], [0], [0], [1], [0, 0, 1, 1], [], []>} : vector<2x32xbf16>, vector<32x128xbf16>, vector<2x128xf32> -> vector<2x128xf32>
    %c0_56 = arith.constant 0 : index
    %c0_57 = arith.constant 0 : index
    %c0_58 = arith.constant 0 : index
    %79 = vector.load %arg15[%c0_56, %c0_57, %c0_58] : memref<8x2x128xf32, #tpu.memory_space<vmem>>, vector<1x2x128xf32>
    %80 = vector.shape_cast %79 : vector<1x2x128xf32> to vector<2x128xf32>
    %81 = arith.addf %80, %78 : vector<2x128xf32>
    %82 = vector.extract_strided_slice %81 {offsets = [0, 0], sizes = [2, 96], strides = [1, 1]} : vector<2x128xf32> to vector<2x96xf32>
    %83 = arith.negf %82 : vector<2x96xf32>
    %84 = math.exp %83 : vector<2x96xf32>
    %cst_59 = arith.constant 1.000000e+00 : f32
    %85 = vector.broadcast %cst_59 : f32 to vector<2x96xf32>
    %86 = arith.addf %85, %84 : vector<2x96xf32>
    %87 = arith.divf %85, %86 : vector<2x96xf32>
    %88 = vector.extract_strided_slice %87 {offsets = [0, 0], sizes = [2, 32], strides = [1, 1]} : vector<2x96xf32> to vector<2x32xf32>
    %89 = vector.extract_strided_slice %87 {offsets = [0, 32], sizes = [2, 32], strides = [1, 1]} : vector<2x96xf32> to vector<2x32xf32>
    %90 = vector.extract_strided_slice %87 {offsets = [0, 64], sizes = [2, 32], strides = [1, 1]} : vector<2x96xf32> to vector<2x32xf32>
    %91 = vector.extract_strided_slice %81 {offsets = [0, 96], sizes = [2, 32], strides = [1, 1]} : vector<2x128xf32> to vector<2x32xf32>
    %92 = math.tanh %91 : vector<2x32xf32>
    %93 = arith.mulf %89, %76 : vector<2x32xf32>
    %94 = arith.mulf %88, %92 : vector<2x32xf32>
    %95 = arith.addf %93, %94 : vector<2x32xf32>
    %96 = math.tanh %95 : vector<2x32xf32>
    %97 = arith.mulf %90, %96 : vector<2x32xf32>
    %c0_60 = arith.constant 0 : index
    %c0_61 = arith.constant 0 : index
    %c0_62 = arith.constant 0 : index
    %98 = vector.load %arg16[%c0_60, %c0_61, %c0_62] : memref<8x2x32xf32, #tpu.memory_space<vmem>>, vector<1x2x32xf32>
    %99 = vector.shape_cast %98 : vector<1x2x32xf32> to vector<2x32xf32>
    %100 = vector.shape_cast %97 : vector<2x32xf32> to vector<1x2x32xf32>
    tpu.vector_store %arg16[%c0_60, %c0_61, %c0_62], %100 {strides = array<i32>} : memref<8x2x32xf32, #tpu.memory_space<vmem>>, vector<1x2x32xf32>,
    %101 = arith.truncf %97 : vector<2x32xf32> to vector<2x32xbf16>
    %cst_63 = arith.constant dense<0.000000e+00> : vector<2x128xf32>
    %102 = tpu.matmul %101, %1, %cst_63 {dimension_numbers = #tpu.dot_dimension_numbers<[1], [0], [0], [1], [0, 0, 1, 1], [], []>} : vector<2x32xbf16>, vector<32x128xbf16>, vector<2x128xf32> -> vector<2x128xf32>
    %c1_64 = arith.constant 1 : index
    %c0_65 = arith.constant 0 : index
    %c0_66 = arith.constant 0 : index
    %103 = vector.load %arg15[%c1_64, %c0_65, %c0_66] : memref<8x2x128xf32, #tpu.memory_space<vmem>>, vector<1x2x128xf32>
    %104 = vector.shape_cast %103 : vector<1x2x128xf32> to vector<2x128xf32>
    %105 = arith.addf %104, %102 : vector<2x128xf32>
    %106 = vector.extract_strided_slice %105 {offsets = [0, 0], sizes = [2, 96], strides = [1, 1]} : vector<2x128xf32> to vector<2x96xf32>
    %107 = arith.negf %106 : vector<2x96xf32>
    %108 = math.exp %107 : vector<2x96xf32>
    %cst_67 = arith.constant 1.000000e+00 : f32
    %109 = vector.broadcast %cst_67 : f32 to vector<2x96xf32>
    %110 = arith.addf %109, %108 : vector<2x96xf32>
    %111 = arith.divf %109, %110 : vector<2x96xf32>
    %112 = vector.extract_strided_slice %111 {offsets = [0, 0], sizes = [2, 32], strides = [1, 1]} : vector<2x96xf32> to vector<2x32xf32>
    %113 = vector.extract_strided_slice %111 {offsets = [0, 32], sizes = [2, 32], strides = [1, 1]} : vector<2x96xf32> to vector<2x32xf32>
    %114 = vector.extract_strided_slice %111 {offsets = [0, 64], sizes = [2, 32], strides = [1, 1]} : vector<2x96xf32> to vector<2x32xf32>
    %115 = vector.extract_strided_slice %105 {offsets = [0, 96], sizes = [2, 32], strides = [1, 1]} : vector<2x128xf32> to vector<2x32xf32>
    %116 = math.tanh %115 : vector<2x32xf32>
    %117 = arith.mulf %113, %95 : vector<2x32xf32>
    %118 = arith.mulf %112, %116 : vector<2x32xf32>
    %119 = arith.addf %117, %118 : vector<2x32xf32>
    %120 = math.tanh %119 : vector<2x32xf32>
    %121 = arith.mulf %114, %120 : vector<2x32xf32>
    %c1_68 = arith.constant 1 : index
    %c0_69 = arith.constant 0 : index
    %c0_70 = arith.constant 0 : index
    %122 = vector.load %arg16[%c1_68, %c0_69, %c0_70] : memref<8x2x32xf32, #tpu.memory_space<vmem>>, vector<1x2x32xf32>
    %123 = vector.shape_cast %122 : vector<1x2x32xf32> to vector<2x32xf32>
    %124 = vector.shape_cast %121 : vector<2x32xf32> to vector<1x2x32xf32>
    tpu.vector_store %arg16[%c1_68, %c0_69, %c0_70], %124 {strides = array<i32>} : memref<8x2x32xf32, #tpu.memory_space<vmem>>, vector<1x2x32xf32>,
    %125 = arith.truncf %121 : vector<2x32xf32> to vector<2x32xbf16>
    %cst_71 = arith.constant dense<0.000000e+00> : vector<2x128xf32>
    %126 = tpu.matmul %125, %1, %cst_71 {dimension_numbers = #tpu.dot_dimension_numbers<[1], [0], [0], [1], [0, 0, 1, 1], [], []>} : vector<2x32xbf16>, vector<32x128xbf16>, vector<2x128xf32> -> vector<2x128xf32>
    %c2_72 = arith.constant 2 : index
    %c0_73 = arith.constant 0 : index
    %c0_74 = arith.constant 0 : index
    %127 = vector.load %arg15[%c2_72, %c0_73, %c0_74] : memref<8x2x128xf32, #tpu.memory_space<vmem>>, vector<1x2x128xf32>
    %128 = vector.shape_cast %127 : vector<1x2x128xf32> to vector<2x128xf32>
    %129 = arith.addf %128, %126 : vector<2x128xf32>
    %130 = vector.extract_strided_slice %129 {offsets = [0, 0], sizes = [2, 96], strides = [1, 1]} : vector<2x128xf32> to vector<2x96xf32>
    %131 = arith.negf %130 : vector<2x96xf32>
    %132 = math.exp %131 : vector<2x96xf32>
    %cst_75 = arith.constant 1.000000e+00 : f32
    %133 = vector.broadcast %cst_75 : f32 to vector<2x96xf32>
    %134 = arith.addf %133, %132 : vector<2x96xf32>
    %135 = arith.divf %133, %134 : vector<2x96xf32>
    %136 = vector.extract_strided_slice %135 {offsets = [0, 0], sizes = [2, 32], strides = [1, 1]} : vector<2x96xf32> to vector<2x32xf32>
    %137 = vector.extract_strided_slice %135 {offsets = [0, 32], sizes = [2, 32], strides = [1, 1]} : vector<2x96xf32> to vector<2x32xf32>
    %138 = vector.extract_strided_slice %135 {offsets = [0, 64], sizes = [2, 32], strides = [1, 1]} : vector<2x96xf32> to vector<2x32xf32>
    %139 = vector.extract_strided_slice %129 {offsets = [0, 96], sizes = [2, 32], strides = [1, 1]} : vector<2x128xf32> to vector<2x32xf32>
    %140 = math.tanh %139 : vector<2x32xf32>
    %141 = arith.mulf %137, %119 : vector<2x32xf32>
    %142 = arith.mulf %136, %140 : vector<2x32xf32>
    %143 = arith.addf %141, %142 : vector<2x32xf32>
    %144 = math.tanh %143 : vector<2x32xf32>
    %145 = arith.mulf %138, %144 : vector<2x32xf32>
    %c2_76 = arith.constant 2 : index
    %c0_77 = arith.constant 0 : index
    %c0_78 = arith.constant 0 : index
    %146 = vector.load %arg16[%c2_76, %c0_77, %c0_78] : memref<8x2x32xf32, #tpu.memory_space<vmem>>, vector<1x2x32xf32>
    %147 = vector.shape_cast %146 : vector<1x2x32xf32> to vector<2x32xf32>
    %148 = vector.shape_cast %145 : vector<2x32xf32> to vector<1x2x32xf32>
    tpu.vector_store %arg16[%c2_76, %c0_77, %c0_78], %148 {strides = array<i32>} : memref<8x2x32xf32, #tpu.memory_space<vmem>>, vector<1x2x32xf32>,
    %149 = arith.truncf %145 : vector<2x32xf32> to vector<2x32xbf16>
    %cst_79 = arith.constant dense<0.000000e+00> : vector<2x128xf32>
    %150 = tpu.matmul %149, %1, %cst_79 {dimension_numbers = #tpu.dot_dimension_numbers<[1], [0], [0], [1], [0, 0, 1, 1], [], []>} : vector<2x32xbf16>, vector<32x128xbf16>, vector<2x128xf32> -> vector<2x128xf32>
    %c3_80 = arith.constant 3 : index
    %c0_81 = arith.constant 0 : index
    %c0_82 = arith.constant 0 : index
    %151 = vector.load %arg15[%c3_80, %c0_81, %c0_82] : memref<8x2x128xf32, #tpu.memory_space<vmem>>, vector<1x2x128xf32>
    %152 = vector.shape_cast %151 : vector<1x2x128xf32> to vector<2x128xf32>
    %153 = arith.addf %152, %150 : vector<2x128xf32>
    %154 = vector.extract_strided_slice %153 {offsets = [0, 0], sizes = [2, 96], strides = [1, 1]} : vector<2x128xf32> to vector<2x96xf32>
    %155 = arith.negf %154 : vector<2x96xf32>
    %156 = math.exp %155 : vector<2x96xf32>
    %cst_83 = arith.constant 1.000000e+00 : f32
    %157 = vector.broadcast %cst_83 : f32 to vector<2x96xf32>
    %158 = arith.addf %157, %156 : vector<2x96xf32>
    %159 = arith.divf %157, %158 : vector<2x96xf32>
    %160 = vector.extract_strided_slice %159 {offsets = [0, 0], sizes = [2, 32], strides = [1, 1]} : vector<2x96xf32> to vector<2x32xf32>
    %161 = vector.extract_strided_slice %159 {offsets = [0, 32], sizes = [2, 32], strides = [1, 1]} : vector<2x96xf32> to vector<2x32xf32>
    %162 = vector.extract_strided_slice %159 {offsets = [0, 64], sizes = [2, 32], strides = [1, 1]} : vector<2x96xf32> to vector<2x32xf32>
    %163 = vector.extract_strided_slice %153 {offsets = [0, 96], sizes = [2, 32], strides = [1, 1]} : vector<2x128xf32> to vector<2x32xf32>
    %164 = math.tanh %163 : vector<2x32xf32>
    %165 = arith.mulf %161, %143 : vector<2x32xf32>
    %166 = arith.mulf %160, %164 : vector<2x32xf32>
    %167 = arith.addf %165, %166 : vector<2x32xf32>
    %168 = math.tanh %167 : vector<2x32xf32>
    %169 = arith.mulf %162, %168 : vector<2x32xf32>
    %c3_84 = arith.constant 3 : index
    %c0_85 = arith.constant 0 : index
    %c0_86 = arith.constant 0 : index
    %170 = vector.load %arg16[%c3_84, %c0_85, %c0_86] : memref<8x2x32xf32, #tpu.memory_space<vmem>>, vector<1x2x32xf32>
    %171 = vector.shape_cast %170 : vector<1x2x32xf32> to vector<2x32xf32>
    %172 = vector.shape_cast %169 : vector<2x32xf32> to vector<1x2x32xf32>
    tpu.vector_store %arg16[%c3_84, %c0_85, %c0_86], %172 {strides = array<i32>} : memref<8x2x32xf32, #tpu.memory_space<vmem>>, vector<1x2x32xf32>,
    %173 = arith.truncf %169 : vector<2x32xf32> to vector<2x32xbf16>
    %cst_87 = arith.constant dense<0.000000e+00> : vector<2x128xf32>
    %174 = tpu.matmul %173, %1, %cst_87 {dimension_numbers = #tpu.dot_dimension_numbers<[1], [0], [0], [1], [0, 0, 1, 1], [], []>} : vector<2x32xbf16>, vector<32x128xbf16>, vector<2x128xf32> -> vector<2x128xf32>
    %c4_88 = arith.constant 4 : index
    %c0_89 = arith.constant 0 : index
    %c0_90 = arith.constant 0 : index
    %175 = vector.load %arg15[%c4_88, %c0_89, %c0_90] : memref<8x2x128xf32, #tpu.memory_space<vmem>>, vector<1x2x128xf32>
    %176 = vector.shape_cast %175 : vector<1x2x128xf32> to vector<2x128xf32>
    %177 = arith.addf %176, %174 : vector<2x128xf32>
    %178 = vector.extract_strided_slice %177 {offsets = [0, 0], sizes = [2, 96], strides = [1, 1]} : vector<2x128xf32> to vector<2x96xf32>
    %179 = arith.negf %178 : vector<2x96xf32>
    %180 = math.exp %179 : vector<2x96xf32>
    %cst_91 = arith.constant 1.000000e+00 : f32
    %181 = vector.broadcast %cst_91 : f32 to vector<2x96xf32>
    %182 = arith.addf %181, %180 : vector<2x96xf32>
    %183 = arith.divf %181, %182 : vector<2x96xf32>
    %184 = vector.extract_strided_slice %183 {offsets = [0, 0], sizes = [2, 32], strides = [1, 1]} : vector<2x96xf32> to vector<2x32xf32>
    %185 = vector.extract_strided_slice %183 {offsets = [0, 32], sizes = [2, 32], strides = [1, 1]} : vector<2x96xf32> to vector<2x32xf32>
    %186 = vector.extract_strided_slice %183 {offsets = [0, 64], sizes = [2, 32], strides = [1, 1]} : vector<2x96xf32> to vector<2x32xf32>
    %187 = vector.extract_strided_slice %177 {offsets = [0, 96], sizes = [2, 32], strides = [1, 1]} : vector<2x128xf32> to vector<2x32xf32>
    %188 = math.tanh %187 : vector<2x32xf32>
    %189 = arith.mulf %185, %167 : vector<2x32xf32>
    %190 = arith.mulf %184, %188 : vector<2x32xf32>
    %191 = arith.addf %189, %190 : vector<2x32xf32>
    %192 = math.tanh %191 : vector<2x32xf32>
    %193 = arith.mulf %186, %192 : vector<2x32xf32>
    %c4_92 = arith.constant 4 : index
    %c0_93 = arith.constant 0 : index
    %c0_94 = arith.constant 0 : index
    %194 = vector.load %arg16[%c4_92, %c0_93, %c0_94] : memref<8x2x32xf32, #tpu.memory_space<vmem>>, vector<1x2x32xf32>
    %195 = vector.shape_cast %194 : vector<1x2x32xf32> to vector<2x32xf32>
    %196 = vector.shape_cast %193 : vector<2x32xf32> to vector<1x2x32xf32>
    tpu.vector_store %arg16[%c4_92, %c0_93, %c0_94], %196 {strides = array<i32>} : memref<8x2x32xf32, #tpu.memory_space<vmem>>, vector<1x2x32xf32>,
    %197 = arith.truncf %193 : vector<2x32xf32> to vector<2x32xbf16>
    %cst_95 = arith.constant dense<0.000000e+00> : vector<2x128xf32>
    %198 = tpu.matmul %197, %1, %cst_95 {dimension_numbers = #tpu.dot_dimension_numbers<[1], [0], [0], [1], [0, 0, 1, 1], [], []>} : vector<2x32xbf16>, vector<32x128xbf16>, vector<2x128xf32> -> vector<2x128xf32>
    %c5_96 = arith.constant 5 : index
    %c0_97 = arith.constant 0 : index
    %c0_98 = arith.constant 0 : index
    %199 = vector.load %arg15[%c5_96, %c0_97, %c0_98] : memref<8x2x128xf32, #tpu.memory_space<vmem>>, vector<1x2x128xf32>
    %200 = vector.shape_cast %199 : vector<1x2x128xf32> to vector<2x128xf32>
    %201 = arith.addf %200, %198 : vector<2x128xf32>
    %202 = vector.extract_strided_slice %201 {offsets = [0, 0], sizes = [2, 96], strides = [1, 1]} : vector<2x128xf32> to vector<2x96xf32>
    %203 = arith.negf %202 : vector<2x96xf32>
    %204 = math.exp %203 : vector<2x96xf32>
    %cst_99 = arith.constant 1.000000e+00 : f32
    %205 = vector.broadcast %cst_99 : f32 to vector<2x96xf32>
    %206 = arith.addf %205, %204 : vector<2x96xf32>
    %207 = arith.divf %205, %206 : vector<2x96xf32>
    %208 = vector.extract_strided_slice %207 {offsets = [0, 0], sizes = [2, 32], strides = [1, 1]} : vector<2x96xf32> to vector<2x32xf32>
    %209 = vector.extract_strided_slice %207 {offsets = [0, 32], sizes = [2, 32], strides = [1, 1]} : vector<2x96xf32> to vector<2x32xf32>
    %210 = vector.extract_strided_slice %207 {offsets = [0, 64], sizes = [2, 32], strides = [1, 1]} : vector<2x96xf32> to vector<2x32xf32>
    %211 = vector.extract_strided_slice %201 {offsets = [0, 96], sizes = [2, 32], strides = [1, 1]} : vector<2x128xf32> to vector<2x32xf32>
    %212 = math.tanh %211 : vector<2x32xf32>
    %213 = arith.mulf %209, %191 : vector<2x32xf32>
    %214 = arith.mulf %208, %212 : vector<2x32xf32>
    %215 = arith.addf %213, %214 : vector<2x32xf32>
    %216 = math.tanh %215 : vector<2x32xf32>
    %217 = arith.mulf %210, %216 : vector<2x32xf32>
    %c5_100 = arith.constant 5 : index
    %c0_101 = arith.constant 0 : index
    %c0_102 = arith.constant 0 : index
    %218 = vector.load %arg16[%c5_100, %c0_101, %c0_102] : memref<8x2x32xf32, #tpu.memory_space<vmem>>, vector<1x2x32xf32>
    %219 = vector.shape_cast %218 : vector<1x2x32xf32> to vector<2x32xf32>
    %220 = vector.shape_cast %217 : vector<2x32xf32> to vector<1x2x32xf32>
    tpu.vector_store %arg16[%c5_100, %c0_101, %c0_102], %220 {strides = array<i32>} : memref<8x2x32xf32, #tpu.memory_space<vmem>>, vector<1x2x32xf32>,
    %221 = arith.truncf %217 : vector<2x32xf32> to vector<2x32xbf16>
    %cst_103 = arith.constant dense<0.000000e+00> : vector<2x128xf32>
    %222 = tpu.matmul %221, %1, %cst_103 {dimension_numbers = #tpu.dot_dimension_numbers<[1], [0], [0], [1], [0, 0, 1, 1], [], []>} : vector<2x32xbf16>, vector<32x128xbf16>, vector<2x128xf32> -> vector<2x128xf32>
    %c6_104 = arith.constant 6 : index
    %c0_105 = arith.constant 0 : index
    %c0_106 = arith.constant 0 : index
    %223 = vector.load %arg15[%c6_104, %c0_105, %c0_106] : memref<8x2x128xf32, #tpu.memory_space<vmem>>, vector<1x2x128xf32>
    %224 = vector.shape_cast %223 : vector<1x2x128xf32> to vector<2x128xf32>
    %225 = arith.addf %224, %222 : vector<2x128xf32>
    %226 = vector.extract_strided_slice %225 {offsets = [0, 0], sizes = [2, 96], strides = [1, 1]} : vector<2x128xf32> to vector<2x96xf32>
    %227 = arith.negf %226 : vector<2x96xf32>
    %228 = math.exp %227 : vector<2x96xf32>
    %cst_107 = arith.constant 1.000000e+00 : f32
    %229 = vector.broadcast %cst_107 : f32 to vector<2x96xf32>
    %230 = arith.addf %229, %228 : vector<2x96xf32>
    %231 = arith.divf %229, %230 : vector<2x96xf32>
    %232 = vector.extract_strided_slice %231 {offsets = [0, 0], sizes = [2, 32], strides = [1, 1]} : vector<2x96xf32> to vector<2x32xf32>
    %233 = vector.extract_strided_slice %231 {offsets = [0, 32], sizes = [2, 32], strides = [1, 1]} : vector<2x96xf32> to vector<2x32xf32>
    %234 = vector.extract_strided_slice %231 {offsets = [0, 64], sizes = [2, 32], strides = [1, 1]} : vector<2x96xf32> to vector<2x32xf32>
    %235 = vector.extract_strided_slice %225 {offsets = [0, 96], sizes = [2, 32], strides = [1, 1]} : vector<2x128xf32> to vector<2x32xf32>
    %236 = math.tanh %235 : vector<2x32xf32>
    %237 = arith.mulf %233, %215 : vector<2x32xf32>
    %238 = arith.mulf %232, %236 : vector<2x32xf32>
    %239 = arith.addf %237, %238 : vector<2x32xf32>
    %240 = math.tanh %239 : vector<2x32xf32>
    %241 = arith.mulf %234, %240 : vector<2x32xf32>
    %c6_108 = arith.constant 6 : index
    %c0_109 = arith.constant 0 : index
    %c0_110 = arith.constant 0 : index
    %242 = vector.load %arg16[%c6_108, %c0_109, %c0_110] : memref<8x2x32xf32, #tpu.memory_space<vmem>>, vector<1x2x32xf32>
    %243 = vector.shape_cast %242 : vector<1x2x32xf32> to vector<2x32xf32>
    %244 = vector.shape_cast %241 : vector<2x32xf32> to vector<1x2x32xf32>
    tpu.vector_store %arg16[%c6_108, %c0_109, %c0_110], %244 {strides = array<i32>} : memref<8x2x32xf32, #tpu.memory_space<vmem>>, vector<1x2x32xf32>,
    %245 = arith.truncf %241 : vector<2x32xf32> to vector<2x32xbf16>
    %cst_111 = arith.constant dense<0.000000e+00> : vector<2x128xf32>
    %246 = tpu.matmul %245, %1, %cst_111 {dimension_numbers = #tpu.dot_dimension_numbers<[1], [0], [0], [1], [0, 0, 1, 1], [], []>} : vector<2x32xbf16>, vector<32x128xbf16>, vector<2x128xf32> -> vector<2x128xf32>
    %c7_112 = arith.constant 7 : index
    %c0_113 = arith.constant 0 : index
    %c0_114 = arith.constant 0 : index
    %247 = vector.load %arg15[%c7_112, %c0_113, %c0_114] : memref<8x2x128xf32, #tpu.memory_space<vmem>>, vector<1x2x128xf32>
    %248 = vector.shape_cast %247 : vector<1x2x128xf32> to vector<2x128xf32>
    %249 = arith.addf %248, %246 : vector<2x128xf32>
    %250 = vector.extract_strided_slice %249 {offsets = [0, 0], sizes = [2, 96], strides = [1, 1]} : vector<2x128xf32> to vector<2x96xf32>
    %251 = arith.negf %250 : vector<2x96xf32>
    %252 = math.exp %251 : vector<2x96xf32>
    %cst_115 = arith.constant 1.000000e+00 : f32
    %253 = vector.broadcast %cst_115 : f32 to vector<2x96xf32>
    %254 = arith.addf %253, %252 : vector<2x96xf32>
    %255 = arith.divf %253, %254 : vector<2x96xf32>
    %256 = vector.extract_strided_slice %255 {offsets = [0, 0], sizes = [2, 32], strides = [1, 1]} : vector<2x96xf32> to vector<2x32xf32>
    %257 = vector.extract_strided_slice %255 {offsets = [0, 32], sizes = [2, 32], strides = [1, 1]} : vector<2x96xf32> to vector<2x32xf32>
    %258 = vector.extract_strided_slice %255 {offsets = [0, 64], sizes = [2, 32], strides = [1, 1]} : vector<2x96xf32> to vector<2x32xf32>
    %259 = vector.extract_strided_slice %249 {offsets = [0, 96], sizes = [2, 32], strides = [1, 1]} : vector<2x128xf32> to vector<2x32xf32>
    %260 = math.tanh %259 : vector<2x32xf32>
    %261 = arith.mulf %257, %239 : vector<2x32xf32>
    %262 = arith.mulf %256, %260 : vector<2x32xf32>
    %263 = arith.addf %261, %262 : vector<2x32xf32>
    %264 = math.tanh %263 : vector<2x32xf32>
    %265 = arith.mulf %258, %264 : vector<2x32xf32>
    %c7_116 = arith.constant 7 : index
    %c0_117 = arith.constant 0 : index
    %c0_118 = arith.constant 0 : index
    %266 = vector.load %arg16[%c7_116, %c0_117, %c0_118] : memref<8x2x32xf32, #tpu.memory_space<vmem>>, vector<1x2x32xf32>
    %267 = vector.shape_cast %266 : vector<1x2x32xf32> to vector<2x32xf32>
    %268 = vector.shape_cast %265 : vector<2x32xf32> to vector<1x2x32xf32>
    tpu.vector_store %arg16[%c7_116, %c0_117, %c0_118], %268 {strides = array<i32>} : memref<8x2x32xf32, #tpu.memory_space<vmem>>, vector<1x2x32xf32>,
    %c0_119 = arith.constant 0 : index
    %c0_120 = arith.constant 0 : index
    %269 = vector.load %arg5[%c0_119, %c0_120] : memref<32x128xbf16, #tpu.memory_space<vmem>>, vector<32x128xbf16>
    %c0_121 = arith.constant 0 : index
    %c0_122 = arith.constant 0 : index
    %270 = vector.load %arg6[%c0_121, %c0_122] : memref<32x128xbf16, #tpu.memory_space<vmem>>, vector<32x128xbf16>
    %c0_123 = arith.constant 0 : index
    %c0_124 = arith.constant 0 : index
    %271 = vector.load %arg7[%c0_123, %c0_124] : memref<1x128xf32, #tpu.memory_space<vmem>>, vector<1x128xf32>
    %c0_125 = arith.constant 0 : index
    %c0_126 = arith.constant 0 : index
    %c0_127 = arith.constant 0 : index
    %272 = vector.load %arg16[%c0_125, %c0_126, %c0_127] : memref<8x2x32xf32, #tpu.memory_space<vmem>>, vector<1x2x32xf32>
    %273 = vector.shape_cast %272 : vector<1x2x32xf32> to vector<2x32xf32>
    %274 = arith.truncf %273 : vector<2x32xf32> to vector<2x32xbf16>
    %cst_128 = arith.constant dense<0.000000e+00> : vector<2x128xf32>
    %275 = tpu.matmul %274, %269, %cst_128 {dimension_numbers = #tpu.dot_dimension_numbers<[1], [0], [0], [1], [0, 0, 1, 1], [], []>} : vector<2x32xbf16>, vector<32x128xbf16>, vector<2x128xf32> -> vector<2x128xf32>
    %276 = vector.broadcast %271 : vector<1x128xf32> to vector<2x128xf32>
    %277 = arith.addf %275, %276 : vector<2x128xf32>
    %c0_129 = arith.constant 0 : index
    %c0_130 = arith.constant 0 : index
    %c0_131 = arith.constant 0 : index
    %278 = vector.load %arg15[%c0_129, %c0_130, %c0_131] : memref<8x2x128xf32, #tpu.memory_space<vmem>>, vector<1x2x128xf32>
    %279 = vector.shape_cast %278 : vector<1x2x128xf32> to vector<2x128xf32>
    %280 = vector.shape_cast %277 : vector<2x128xf32> to vector<1x2x128xf32>
    tpu.vector_store %arg15[%c0_129, %c0_130, %c0_131], %280 {strides = array<i32>} : memref<8x2x128xf32, #tpu.memory_space<vmem>>, vector<1x2x128xf32>,
    %c1_132 = arith.constant 1 : index
    %c0_133 = arith.constant 0 : index
    %c0_134 = arith.constant 0 : index
    %281 = vector.load %arg16[%c1_132, %c0_133, %c0_134] : memref<8x2x32xf32, #tpu.memory_space<vmem>>, vector<1x2x32xf32>
    %282 = vector.shape_cast %281 : vector<1x2x32xf32> to vector<2x32xf32>
    %283 = arith.truncf %282 : vector<2x32xf32> to vector<2x32xbf16>
    %cst_135 = arith.constant dense<0.000000e+00> : vector<2x128xf32>
    %284 = tpu.matmul %283, %269, %cst_135 {dimension_numbers = #tpu.dot_dimension_numbers<[1], [0], [0], [1], [0, 0, 1, 1], [], []>} : vector<2x32xbf16>, vector<32x128xbf16>, vector<2x128xf32> -> vector<2x128xf32>
    %285 = vector.broadcast %271 : vector<1x128xf32> to vector<2x128xf32>
    %286 = arith.addf %284, %285 : vector<2x128xf32>
    %c1_136 = arith.constant 1 : index
    %c0_137 = arith.constant 0 : index
    %c0_138 = arith.constant 0 : index
    %287 = vector.load %arg15[%c1_136, %c0_137, %c0_138] : memref<8x2x128xf32, #tpu.memory_space<vmem>>, vector<1x2x128xf32>
    %288 = vector.shape_cast %287 : vector<1x2x128xf32> to vector<2x128xf32>
    %289 = vector.shape_cast %286 : vector<2x128xf32> to vector<1x2x128xf32>
    tpu.vector_store %arg15[%c1_136, %c0_137, %c0_138], %289 {strides = array<i32>} : memref<8x2x128xf32, #tpu.memory_space<vmem>>, vector<1x2x128xf32>,
    %c2_139 = arith.constant 2 : index
    %c0_140 = arith.constant 0 : index
    %c0_141 = arith.constant 0 : index
    %290 = vector.load %arg16[%c2_139, %c0_140, %c0_141] : memref<8x2x32xf32, #tpu.memory_space<vmem>>, vector<1x2x32xf32>
    %291 = vector.shape_cast %290 : vector<1x2x32xf32> to vector<2x32xf32>
    %292 = arith.truncf %291 : vector<2x32xf32> to vector<2x32xbf16>
    %cst_142 = arith.constant dense<0.000000e+00> : vector<2x128xf32>
    %293 = tpu.matmul %292, %269, %cst_142 {dimension_numbers = #tpu.dot_dimension_numbers<[1], [0], [0], [1], [0, 0, 1, 1], [], []>} : vector<2x32xbf16>, vector<32x128xbf16>, vector<2x128xf32> -> vector<2x128xf32>
    %294 = vector.broadcast %271 : vector<1x128xf32> to vector<2x128xf32>
    %295 = arith.addf %293, %294 : vector<2x128xf32>
    %c2_143 = arith.constant 2 : index
    %c0_144 = arith.constant 0 : index
    %c0_145 = arith.constant 0 : index
    %296 = vector.load %arg15[%c2_143, %c0_144, %c0_145] : memref<8x2x128xf32, #tpu.memory_space<vmem>>, vector<1x2x128xf32>
    %297 = vector.shape_cast %296 : vector<1x2x128xf32> to vector<2x128xf32>
    %298 = vector.shape_cast %295 : vector<2x128xf32> to vector<1x2x128xf32>
    tpu.vector_store %arg15[%c2_143, %c0_144, %c0_145], %298 {strides = array<i32>} : memref<8x2x128xf32, #tpu.memory_space<vmem>>, vector<1x2x128xf32>,
    %c3_146 = arith.constant 3 : index
    %c0_147 = arith.constant 0 : index
    %c0_148 = arith.constant 0 : index
    %299 = vector.load %arg16[%c3_146, %c0_147, %c0_148] : memref<8x2x32xf32, #tpu.memory_space<vmem>>, vector<1x2x32xf32>
    %300 = vector.shape_cast %299 : vector<1x2x32xf32> to vector<2x32xf32>
    %301 = arith.truncf %300 : vector<2x32xf32> to vector<2x32xbf16>
    %cst_149 = arith.constant dense<0.000000e+00> : vector<2x128xf32>
    %302 = tpu.matmul %301, %269, %cst_149 {dimension_numbers = #tpu.dot_dimension_numbers<[1], [0], [0], [1], [0, 0, 1, 1], [], []>} : vector<2x32xbf16>, vector<32x128xbf16>, vector<2x128xf32> -> vector<2x128xf32>
    %303 = vector.broadcast %271 : vector<1x128xf32> to vector<2x128xf32>
    %304 = arith.addf %302, %303 : vector<2x128xf32>
    %c3_150 = arith.constant 3 : index
    %c0_151 = arith.constant 0 : index
    %c0_152 = arith.constant 0 : index
    %305 = vector.load %arg15[%c3_150, %c0_151, %c0_152] : memref<8x2x128xf32, #tpu.memory_space<vmem>>, vector<1x2x128xf32>
    %306 = vector.shape_cast %305 : vector<1x2x128xf32> to vector<2x128xf32>
    %307 = vector.shape_cast %304 : vector<2x128xf32> to vector<1x2x128xf32>
    tpu.vector_store %arg15[%c3_150, %c0_151, %c0_152], %307 {strides = array<i32>} : memref<8x2x128xf32, #tpu.memory_space<vmem>>, vector<1x2x128xf32>,
    %c4_153 = arith.constant 4 : index
    %c0_154 = arith.constant 0 : index
    %c0_155 = arith.constant 0 : index
    %308 = vector.load %arg16[%c4_153, %c0_154, %c0_155] : memref<8x2x32xf32, #tpu.memory_space<vmem>>, vector<1x2x32xf32>
    %309 = vector.shape_cast %308 : vector<1x2x32xf32> to vector<2x32xf32>
    %310 = arith.truncf %309 : vector<2x32xf32> to vector<2x32xbf16>
    %cst_156 = arith.constant dense<0.000000e+00> : vector<2x128xf32>
    %311 = tpu.matmul %310, %269, %cst_156 {dimension_numbers = #tpu.dot_dimension_numbers<[1], [0], [0], [1], [0, 0, 1, 1], [], []>} : vector<2x32xbf16>, vector<32x128xbf16>, vector<2x128xf32> -> vector<2x128xf32>
    %312 = vector.broadcast %271 : vector<1x128xf32> to vector<2x128xf32>
    %313 = arith.addf %311, %312 : vector<2x128xf32>
    %c4_157 = arith.constant 4 : index
    %c0_158 = arith.constant 0 : index
    %c0_159 = arith.constant 0 : index
    %314 = vector.load %arg15[%c4_157, %c0_158, %c0_159] : memref<8x2x128xf32, #tpu.memory_space<vmem>>, vector<1x2x128xf32>
    %315 = vector.shape_cast %314 : vector<1x2x128xf32> to vector<2x128xf32>
    %316 = vector.shape_cast %313 : vector<2x128xf32> to vector<1x2x128xf32>
    tpu.vector_store %arg15[%c4_157, %c0_158, %c0_159], %316 {strides = array<i32>} : memref<8x2x128xf32, #tpu.memory_space<vmem>>, vector<1x2x128xf32>,
    %c5_160 = arith.constant 5 : index
    %c0_161 = arith.constant 0 : index
    %c0_162 = arith.constant 0 : index
    %317 = vector.load %arg16[%c5_160, %c0_161, %c0_162] : memref<8x2x32xf32, #tpu.memory_space<vmem>>, vector<1x2x32xf32>
    %318 = vector.shape_cast %317 : vector<1x2x32xf32> to vector<2x32xf32>
    %319 = arith.truncf %318 : vector<2x32xf32> to vector<2x32xbf16>
    %cst_163 = arith.constant dense<0.000000e+00> : vector<2x128xf32>
    %320 = tpu.matmul %319, %269, %cst_163 {dimension_numbers = #tpu.dot_dimension_numbers<[1], [0], [0], [1], [0, 0, 1, 1], [], []>} : vector<2x32xbf16>, vector<32x128xbf16>, vector<2x128xf32> -> vector<2x128xf32>
    %321 = vector.broadcast %271 : vector<1x128xf32> to vector<2x128xf32>
    %322 = arith.addf %320, %321 : vector<2x128xf32>
    %c5_164 = arith.constant 5 : index
    %c0_165 = arith.constant 0 : index
    %c0_166 = arith.constant 0 : index
    %323 = vector.load %arg15[%c5_164, %c0_165, %c0_166] : memref<8x2x128xf32, #tpu.memory_space<vmem>>, vector<1x2x128xf32>
    %324 = vector.shape_cast %323 : vector<1x2x128xf32> to vector<2x128xf32>
    %325 = vector.shape_cast %322 : vector<2x128xf32> to vector<1x2x128xf32>
    tpu.vector_store %arg15[%c5_164, %c0_165, %c0_166], %325 {strides = array<i32>} : memref<8x2x128xf32, #tpu.memory_space<vmem>>, vector<1x2x128xf32>,
    %c6_167 = arith.constant 6 : index
    %c0_168 = arith.constant 0 : index
    %c0_169 = arith.constant 0 : index
    %326 = vector.load %arg16[%c6_167, %c0_168, %c0_169] : memref<8x2x32xf32, #tpu.memory_space<vmem>>, vector<1x2x32xf32>
    %327 = vector.shape_cast %326 : vector<1x2x32xf32> to vector<2x32xf32>
    %328 = arith.truncf %327 : vector<2x32xf32> to vector<2x32xbf16>
    %cst_170 = arith.constant dense<0.000000e+00> : vector<2x128xf32>
    %329 = tpu.matmul %328, %269, %cst_170 {dimension_numbers = #tpu.dot_dimension_numbers<[1], [0], [0], [1], [0, 0, 1, 1], [], []>} : vector<2x32xbf16>, vector<32x128xbf16>, vector<2x128xf32> -> vector<2x128xf32>
    %330 = vector.broadcast %271 : vector<1x128xf32> to vector<2x128xf32>
    %331 = arith.addf %329, %330 : vector<2x128xf32>
    %c6_171 = arith.constant 6 : index
    %c0_172 = arith.constant 0 : index
    %c0_173 = arith.constant 0 : index
    %332 = vector.load %arg15[%c6_171, %c0_172, %c0_173] : memref<8x2x128xf32, #tpu.memory_space<vmem>>, vector<1x2x128xf32>
    %333 = vector.shape_cast %332 : vector<1x2x128xf32> to vector<2x128xf32>
    %334 = vector.shape_cast %331 : vector<2x128xf32> to vector<1x2x128xf32>
    tpu.vector_store %arg15[%c6_171, %c0_172, %c0_173], %334 {strides = array<i32>} : memref<8x2x128xf32, #tpu.memory_space<vmem>>, vector<1x2x128xf32>,
    %c7_174 = arith.constant 7 : index
    %c0_175 = arith.constant 0 : index
    %c0_176 = arith.constant 0 : index
    %335 = vector.load %arg16[%c7_174, %c0_175, %c0_176] : memref<8x2x32xf32, #tpu.memory_space<vmem>>, vector<1x2x32xf32>
    %336 = vector.shape_cast %335 : vector<1x2x32xf32> to vector<2x32xf32>
    %337 = arith.truncf %336 : vector<2x32xf32> to vector<2x32xbf16>
    %cst_177 = arith.constant dense<0.000000e+00> : vector<2x128xf32>
    %338 = tpu.matmul %337, %269, %cst_177 {dimension_numbers = #tpu.dot_dimension_numbers<[1], [0], [0], [1], [0, 0, 1, 1], [], []>} : vector<2x32xbf16>, vector<32x128xbf16>, vector<2x128xf32> -> vector<2x128xf32>
    %339 = vector.broadcast %271 : vector<1x128xf32> to vector<2x128xf32>
    %340 = arith.addf %338, %339 : vector<2x128xf32>
    %c7_178 = arith.constant 7 : index
    %c0_179 = arith.constant 0 : index
    %c0_180 = arith.constant 0 : index
    %341 = vector.load %arg15[%c7_178, %c0_179, %c0_180] : memref<8x2x128xf32, #tpu.memory_space<vmem>>, vector<1x2x128xf32>
    %342 = vector.shape_cast %341 : vector<1x2x128xf32> to vector<2x128xf32>
    %343 = vector.shape_cast %340 : vector<2x128xf32> to vector<1x2x128xf32>
    tpu.vector_store %arg15[%c7_178, %c0_179, %c0_180], %343 {strides = array<i32>} : memref<8x2x128xf32, #tpu.memory_space<vmem>>, vector<1x2x128xf32>,
    %cst_181 = arith.constant 0.000000e+00 : f32
    %344 = vector.broadcast %cst_181 : f32 to vector<2x32xf32>
    %cst_182 = arith.constant 0.000000e+00 : f32
    %345 = vector.broadcast %cst_182 : f32 to vector<2x32xf32>
    %346 = arith.truncf %344 : vector<2x32xf32> to vector<2x32xbf16>
    %cst_183 = arith.constant dense<0.000000e+00> : vector<2x128xf32>
    %347 = tpu.matmul %346, %270, %cst_183 {dimension_numbers = #tpu.dot_dimension_numbers<[1], [0], [0], [1], [0, 0, 1, 1], [], []>} : vector<2x32xbf16>, vector<32x128xbf16>, vector<2x128xf32> -> vector<2x128xf32>
    %c0_184 = arith.constant 0 : index
    %c0_185 = arith.constant 0 : index
    %c0_186 = arith.constant 0 : index
    %348 = vector.load %arg15[%c0_184, %c0_185, %c0_186] : memref<8x2x128xf32, #tpu.memory_space<vmem>>, vector<1x2x128xf32>
    %349 = vector.shape_cast %348 : vector<1x2x128xf32> to vector<2x128xf32>
    %350 = arith.addf %349, %347 : vector<2x128xf32>
    %351 = vector.extract_strided_slice %350 {offsets = [0, 0], sizes = [2, 96], strides = [1, 1]} : vector<2x128xf32> to vector<2x96xf32>
    %352 = arith.negf %351 : vector<2x96xf32>
    %353 = math.exp %352 : vector<2x96xf32>
    %cst_187 = arith.constant 1.000000e+00 : f32
    %354 = vector.broadcast %cst_187 : f32 to vector<2x96xf32>
    %355 = arith.addf %354, %353 : vector<2x96xf32>
    %356 = arith.divf %354, %355 : vector<2x96xf32>
    %357 = vector.extract_strided_slice %356 {offsets = [0, 0], sizes = [2, 32], strides = [1, 1]} : vector<2x96xf32> to vector<2x32xf32>
    %358 = vector.extract_strided_slice %356 {offsets = [0, 32], sizes = [2, 32], strides = [1, 1]} : vector<2x96xf32> to vector<2x32xf32>
    %359 = vector.extract_strided_slice %356 {offsets = [0, 64], sizes = [2, 32], strides = [1, 1]} : vector<2x96xf32> to vector<2x32xf32>
    %360 = vector.extract_strided_slice %350 {offsets = [0, 96], sizes = [2, 32], strides = [1, 1]} : vector<2x128xf32> to vector<2x32xf32>
    %361 = math.tanh %360 : vector<2x32xf32>
    %362 = arith.mulf %358, %345 : vector<2x32xf32>
    %363 = arith.mulf %357, %361 : vector<2x32xf32>
    %364 = arith.addf %362, %363 : vector<2x32xf32>
    %365 = math.tanh %364 : vector<2x32xf32>
    %366 = arith.mulf %359, %365 : vector<2x32xf32>
    %c0_188 = arith.constant 0 : index
    %c0_189 = arith.constant 0 : index
    %c0_190 = arith.constant 0 : index
    %367 = vector.load %arg16[%c0_188, %c0_189, %c0_190] : memref<8x2x32xf32, #tpu.memory_space<vmem>>, vector<1x2x32xf32>
    %368 = vector.shape_cast %367 : vector<1x2x32xf32> to vector<2x32xf32>
    %369 = vector.shape_cast %366 : vector<2x32xf32> to vector<1x2x32xf32>
    tpu.vector_store %arg16[%c0_188, %c0_189, %c0_190], %369 {strides = array<i32>} : memref<8x2x32xf32, #tpu.memory_space<vmem>>, vector<1x2x32xf32>,
    %370 = arith.truncf %366 : vector<2x32xf32> to vector<2x32xbf16>
    %cst_191 = arith.constant dense<0.000000e+00> : vector<2x128xf32>
    %371 = tpu.matmul %370, %270, %cst_191 {dimension_numbers = #tpu.dot_dimension_numbers<[1], [0], [0], [1], [0, 0, 1, 1], [], []>} : vector<2x32xbf16>, vector<32x128xbf16>, vector<2x128xf32> -> vector<2x128xf32>
    %c1_192 = arith.constant 1 : index
    %c0_193 = arith.constant 0 : index
    %c0_194 = arith.constant 0 : index
    %372 = vector.load %arg15[%c1_192, %c0_193, %c0_194] : memref<8x2x128xf32, #tpu.memory_space<vmem>>, vector<1x2x128xf32>
    %373 = vector.shape_cast %372 : vector<1x2x128xf32> to vector<2x128xf32>
    %374 = arith.addf %373, %371 : vector<2x128xf32>
    %375 = vector.extract_strided_slice %374 {offsets = [0, 0], sizes = [2, 96], strides = [1, 1]} : vector<2x128xf32> to vector<2x96xf32>
    %376 = arith.negf %375 : vector<2x96xf32>
    %377 = math.exp %376 : vector<2x96xf32>
    %cst_195 = arith.constant 1.000000e+00 : f32
    %378 = vector.broadcast %cst_195 : f32 to vector<2x96xf32>
    %379 = arith.addf %378, %377 : vector<2x96xf32>
    %380 = arith.divf %378, %379 : vector<2x96xf32>
    %381 = vector.extract_strided_slice %380 {offsets = [0, 0], sizes = [2, 32], strides = [1, 1]} : vector<2x96xf32> to vector<2x32xf32>
    %382 = vector.extract_strided_slice %380 {offsets = [0, 32], sizes = [2, 32], strides = [1, 1]} : vector<2x96xf32> to vector<2x32xf32>
    %383 = vector.extract_strided_slice %380 {offsets = [0, 64], sizes = [2, 32], strides = [1, 1]} : vector<2x96xf32> to vector<2x32xf32>
    %384 = vector.extract_strided_slice %374 {offsets = [0, 96], sizes = [2, 32], strides = [1, 1]} : vector<2x128xf32> to vector<2x32xf32>
    %385 = math.tanh %384 : vector<2x32xf32>
    %386 = arith.mulf %382, %364 : vector<2x32xf32>
    %387 = arith.mulf %381, %385 : vector<2x32xf32>
    %388 = arith.addf %386, %387 : vector<2x32xf32>
    %389 = math.tanh %388 : vector<2x32xf32>
    %390 = arith.mulf %383, %389 : vector<2x32xf32>
    %c1_196 = arith.constant 1 : index
    %c0_197 = arith.constant 0 : index
    %c0_198 = arith.constant 0 : index
    %391 = vector.load %arg16[%c1_196, %c0_197, %c0_198] : memref<8x2x32xf32, #tpu.memory_space<vmem>>, vector<1x2x32xf32>
    %392 = vector.shape_cast %391 : vector<1x2x32xf32> to vector<2x32xf32>
    %393 = vector.shape_cast %390 : vector<2x32xf32> to vector<1x2x32xf32>
    tpu.vector_store %arg16[%c1_196, %c0_197, %c0_198], %393 {strides = array<i32>} : memref<8x2x32xf32, #tpu.memory_space<vmem>>, vector<1x2x32xf32>,
    %394 = arith.truncf %390 : vector<2x32xf32> to vector<2x32xbf16>
    %cst_199 = arith.constant dense<0.000000e+00> : vector<2x128xf32>
    %395 = tpu.matmul %394, %270, %cst_199 {dimension_numbers = #tpu.dot_dimension_numbers<[1], [0], [0], [1], [0, 0, 1, 1], [], []>} : vector<2x32xbf16>, vector<32x128xbf16>, vector<2x128xf32> -> vector<2x128xf32>
    %c2_200 = arith.constant 2 : index
    %c0_201 = arith.constant 0 : index
    %c0_202 = arith.constant 0 : index
    %396 = vector.load %arg15[%c2_200, %c0_201, %c0_202] : memref<8x2x128xf32, #tpu.memory_space<vmem>>, vector<1x2x128xf32>
    %397 = vector.shape_cast %396 : vector<1x2x128xf32> to vector<2x128xf32>
    %398 = arith.addf %397, %395 : vector<2x128xf32>
    %399 = vector.extract_strided_slice %398 {offsets = [0, 0], sizes = [2, 96], strides = [1, 1]} : vector<2x128xf32> to vector<2x96xf32>
    %400 = arith.negf %399 : vector<2x96xf32>
    %401 = math.exp %400 : vector<2x96xf32>
    %cst_203 = arith.constant 1.000000e+00 : f32
    %402 = vector.broadcast %cst_203 : f32 to vector<2x96xf32>
    %403 = arith.addf %402, %401 : vector<2x96xf32>
    %404 = arith.divf %402, %403 : vector<2x96xf32>
    %405 = vector.extract_strided_slice %404 {offsets = [0, 0], sizes = [2, 32], strides = [1, 1]} : vector<2x96xf32> to vector<2x32xf32>
    %406 = vector.extract_strided_slice %404 {offsets = [0, 32], sizes = [2, 32], strides = [1, 1]} : vector<2x96xf32> to vector<2x32xf32>
    %407 = vector.extract_strided_slice %404 {offsets = [0, 64], sizes = [2, 32], strides = [1, 1]} : vector<2x96xf32> to vector<2x32xf32>
    %408 = vector.extract_strided_slice %398 {offsets = [0, 96], sizes = [2, 32], strides = [1, 1]} : vector<2x128xf32> to vector<2x32xf32>
    %409 = math.tanh %408 : vector<2x32xf32>
    %410 = arith.mulf %406, %388 : vector<2x32xf32>
    %411 = arith.mulf %405, %409 : vector<2x32xf32>
    %412 = arith.addf %410, %411 : vector<2x32xf32>
    %413 = math.tanh %412 : vector<2x32xf32>
    %414 = arith.mulf %407, %413 : vector<2x32xf32>
    %c2_204 = arith.constant 2 : index
    %c0_205 = arith.constant 0 : index
    %c0_206 = arith.constant 0 : index
    %415 = vector.load %arg16[%c2_204, %c0_205, %c0_206] : memref<8x2x32xf32, #tpu.memory_space<vmem>>, vector<1x2x32xf32>
    %416 = vector.shape_cast %415 : vector<1x2x32xf32> to vector<2x32xf32>
    %417 = vector.shape_cast %414 : vector<2x32xf32> to vector<1x2x32xf32>
    tpu.vector_store %arg16[%c2_204, %c0_205, %c0_206], %417 {strides = array<i32>} : memref<8x2x32xf32, #tpu.memory_space<vmem>>, vector<1x2x32xf32>,
    %418 = arith.truncf %414 : vector<2x32xf32> to vector<2x32xbf16>
    %cst_207 = arith.constant dense<0.000000e+00> : vector<2x128xf32>
    %419 = tpu.matmul %418, %270, %cst_207 {dimension_numbers = #tpu.dot_dimension_numbers<[1], [0], [0], [1], [0, 0, 1, 1], [], []>} : vector<2x32xbf16>, vector<32x128xbf16>, vector<2x128xf32> -> vector<2x128xf32>
    %c3_208 = arith.constant 3 : index
    %c0_209 = arith.constant 0 : index
    %c0_210 = arith.constant 0 : index
    %420 = vector.load %arg15[%c3_208, %c0_209, %c0_210] : memref<8x2x128xf32, #tpu.memory_space<vmem>>, vector<1x2x128xf32>
    %421 = vector.shape_cast %420 : vector<1x2x128xf32> to vector<2x128xf32>
    %422 = arith.addf %421, %419 : vector<2x128xf32>
    %423 = vector.extract_strided_slice %422 {offsets = [0, 0], sizes = [2, 96], strides = [1, 1]} : vector<2x128xf32> to vector<2x96xf32>
    %424 = arith.negf %423 : vector<2x96xf32>
    %425 = math.exp %424 : vector<2x96xf32>
    %cst_211 = arith.constant 1.000000e+00 : f32
    %426 = vector.broadcast %cst_211 : f32 to vector<2x96xf32>
    %427 = arith.addf %426, %425 : vector<2x96xf32>
    %428 = arith.divf %426, %427 : vector<2x96xf32>
    %429 = vector.extract_strided_slice %428 {offsets = [0, 0], sizes = [2, 32], strides = [1, 1]} : vector<2x96xf32> to vector<2x32xf32>
    %430 = vector.extract_strided_slice %428 {offsets = [0, 32], sizes = [2, 32], strides = [1, 1]} : vector<2x96xf32> to vector<2x32xf32>
    %431 = vector.extract_strided_slice %428 {offsets = [0, 64], sizes = [2, 32], strides = [1, 1]} : vector<2x96xf32> to vector<2x32xf32>
    %432 = vector.extract_strided_slice %422 {offsets = [0, 96], sizes = [2, 32], strides = [1, 1]} : vector<2x128xf32> to vector<2x32xf32>
    %433 = math.tanh %432 : vector<2x32xf32>
    %434 = arith.mulf %430, %412 : vector<2x32xf32>
    %435 = arith.mulf %429, %433 : vector<2x32xf32>
    %436 = arith.addf %434, %435 : vector<2x32xf32>
    %437 = math.tanh %436 : vector<2x32xf32>
    %438 = arith.mulf %431, %437 : vector<2x32xf32>
    %c3_212 = arith.constant 3 : index
    %c0_213 = arith.constant 0 : index
    %c0_214 = arith.constant 0 : index
    %439 = vector.load %arg16[%c3_212, %c0_213, %c0_214] : memref<8x2x32xf32, #tpu.memory_space<vmem>>, vector<1x2x32xf32>
    %440 = vector.shape_cast %439 : vector<1x2x32xf32> to vector<2x32xf32>
    %441 = vector.shape_cast %438 : vector<2x32xf32> to vector<1x2x32xf32>
    tpu.vector_store %arg16[%c3_212, %c0_213, %c0_214], %441 {strides = array<i32>} : memref<8x2x32xf32, #tpu.memory_space<vmem>>, vector<1x2x32xf32>,
    %442 = arith.truncf %438 : vector<2x32xf32> to vector<2x32xbf16>
    %cst_215 = arith.constant dense<0.000000e+00> : vector<2x128xf32>
    %443 = tpu.matmul %442, %270, %cst_215 {dimension_numbers = #tpu.dot_dimension_numbers<[1], [0], [0], [1], [0, 0, 1, 1], [], []>} : vector<2x32xbf16>, vector<32x128xbf16>, vector<2x128xf32> -> vector<2x128xf32>
    %c4_216 = arith.constant 4 : index
    %c0_217 = arith.constant 0 : index
    %c0_218 = arith.constant 0 : index
    %444 = vector.load %arg15[%c4_216, %c0_217, %c0_218] : memref<8x2x128xf32, #tpu.memory_space<vmem>>, vector<1x2x128xf32>
    %445 = vector.shape_cast %444 : vector<1x2x128xf32> to vector<2x128xf32>
    %446 = arith.addf %445, %443 : vector<2x128xf32>
    %447 = vector.extract_strided_slice %446 {offsets = [0, 0], sizes = [2, 96], strides = [1, 1]} : vector<2x128xf32> to vector<2x96xf32>
    %448 = arith.negf %447 : vector<2x96xf32>
    %449 = math.exp %448 : vector<2x96xf32>
    %cst_219 = arith.constant 1.000000e+00 : f32
    %450 = vector.broadcast %cst_219 : f32 to vector<2x96xf32>
    %451 = arith.addf %450, %449 : vector<2x96xf32>
    %452 = arith.divf %450, %451 : vector<2x96xf32>
    %453 = vector.extract_strided_slice %452 {offsets = [0, 0], sizes = [2, 32], strides = [1, 1]} : vector<2x96xf32> to vector<2x32xf32>
    %454 = vector.extract_strided_slice %452 {offsets = [0, 32], sizes = [2, 32], strides = [1, 1]} : vector<2x96xf32> to vector<2x32xf32>
    %455 = vector.extract_strided_slice %452 {offsets = [0, 64], sizes = [2, 32], strides = [1, 1]} : vector<2x96xf32> to vector<2x32xf32>
    %456 = vector.extract_strided_slice %446 {offsets = [0, 96], sizes = [2, 32], strides = [1, 1]} : vector<2x128xf32> to vector<2x32xf32>
    %457 = math.tanh %456 : vector<2x32xf32>
    %458 = arith.mulf %454, %436 : vector<2x32xf32>
    %459 = arith.mulf %453, %457 : vector<2x32xf32>
    %460 = arith.addf %458, %459 : vector<2x32xf32>
    %461 = math.tanh %460 : vector<2x32xf32>
    %462 = arith.mulf %455, %461 : vector<2x32xf32>
    %c4_220 = arith.constant 4 : index
    %c0_221 = arith.constant 0 : index
    %c0_222 = arith.constant 0 : index
    %463 = vector.load %arg16[%c4_220, %c0_221, %c0_222] : memref<8x2x32xf32, #tpu.memory_space<vmem>>, vector<1x2x32xf32>
    %464 = vector.shape_cast %463 : vector<1x2x32xf32> to vector<2x32xf32>
    %465 = vector.shape_cast %462 : vector<2x32xf32> to vector<1x2x32xf32>
    tpu.vector_store %arg16[%c4_220, %c0_221, %c0_222], %465 {strides = array<i32>} : memref<8x2x32xf32, #tpu.memory_space<vmem>>, vector<1x2x32xf32>,
    %466 = arith.truncf %462 : vector<2x32xf32> to vector<2x32xbf16>
    %cst_223 = arith.constant dense<0.000000e+00> : vector<2x128xf32>
    %467 = tpu.matmul %466, %270, %cst_223 {dimension_numbers = #tpu.dot_dimension_numbers<[1], [0], [0], [1], [0, 0, 1, 1], [], []>} : vector<2x32xbf16>, vector<32x128xbf16>, vector<2x128xf32> -> vector<2x128xf32>
    %c5_224 = arith.constant 5 : index
    %c0_225 = arith.constant 0 : index
    %c0_226 = arith.constant 0 : index
    %468 = vector.load %arg15[%c5_224, %c0_225, %c0_226] : memref<8x2x128xf32, #tpu.memory_space<vmem>>, vector<1x2x128xf32>
    %469 = vector.shape_cast %468 : vector<1x2x128xf32> to vector<2x128xf32>
    %470 = arith.addf %469, %467 : vector<2x128xf32>
    %471 = vector.extract_strided_slice %470 {offsets = [0, 0], sizes = [2, 96], strides = [1, 1]} : vector<2x128xf32> to vector<2x96xf32>
    %472 = arith.negf %471 : vector<2x96xf32>
    %473 = math.exp %472 : vector<2x96xf32>
    %cst_227 = arith.constant 1.000000e+00 : f32
    %474 = vector.broadcast %cst_227 : f32 to vector<2x96xf32>
    %475 = arith.addf %474, %473 : vector<2x96xf32>
    %476 = arith.divf %474, %475 : vector<2x96xf32>
    %477 = vector.extract_strided_slice %476 {offsets = [0, 0], sizes = [2, 32], strides = [1, 1]} : vector<2x96xf32> to vector<2x32xf32>
    %478 = vector.extract_strided_slice %476 {offsets = [0, 32], sizes = [2, 32], strides = [1, 1]} : vector<2x96xf32> to vector<2x32xf32>
    %479 = vector.extract_strided_slice %476 {offsets = [0, 64], sizes = [2, 32], strides = [1, 1]} : vector<2x96xf32> to vector<2x32xf32>
    %480 = vector.extract_strided_slice %470 {offsets = [0, 96], sizes = [2, 32], strides = [1, 1]} : vector<2x128xf32> to vector<2x32xf32>
    %481 = math.tanh %480 : vector<2x32xf32>
    %482 = arith.mulf %478, %460 : vector<2x32xf32>
    %483 = arith.mulf %477, %481 : vector<2x32xf32>
    %484 = arith.addf %482, %483 : vector<2x32xf32>
    %485 = math.tanh %484 : vector<2x32xf32>
    %486 = arith.mulf %479, %485 : vector<2x32xf32>
    %c5_228 = arith.constant 5 : index
    %c0_229 = arith.constant 0 : index
    %c0_230 = arith.constant 0 : index
    %487 = vector.load %arg16[%c5_228, %c0_229, %c0_230] : memref<8x2x32xf32, #tpu.memory_space<vmem>>, vector<1x2x32xf32>
    %488 = vector.shape_cast %487 : vector<1x2x32xf32> to vector<2x32xf32>
    %489 = vector.shape_cast %486 : vector<2x32xf32> to vector<1x2x32xf32>
    tpu.vector_store %arg16[%c5_228, %c0_229, %c0_230], %489 {strides = array<i32>} : memref<8x2x32xf32, #tpu.memory_space<vmem>>, vector<1x2x32xf32>,
    %490 = arith.truncf %486 : vector<2x32xf32> to vector<2x32xbf16>
    %cst_231 = arith.constant dense<0.000000e+00> : vector<2x128xf32>
    %491 = tpu.matmul %490, %270, %cst_231 {dimension_numbers = #tpu.dot_dimension_numbers<[1], [0], [0], [1], [0, 0, 1, 1], [], []>} : vector<2x32xbf16>, vector<32x128xbf16>, vector<2x128xf32> -> vector<2x128xf32>
    %c6_232 = arith.constant 6 : index
    %c0_233 = arith.constant 0 : index
    %c0_234 = arith.constant 0 : index
    %492 = vector.load %arg15[%c6_232, %c0_233, %c0_234] : memref<8x2x128xf32, #tpu.memory_space<vmem>>, vector<1x2x128xf32>
    %493 = vector.shape_cast %492 : vector<1x2x128xf32> to vector<2x128xf32>
    %494 = arith.addf %493, %491 : vector<2x128xf32>
    %495 = vector.extract_strided_slice %494 {offsets = [0, 0], sizes = [2, 96], strides = [1, 1]} : vector<2x128xf32> to vector<2x96xf32>
    %496 = arith.negf %495 : vector<2x96xf32>
    %497 = math.exp %496 : vector<2x96xf32>
    %cst_235 = arith.constant 1.000000e+00 : f32
    %498 = vector.broadcast %cst_235 : f32 to vector<2x96xf32>
    %499 = arith.addf %498, %497 : vector<2x96xf32>
    %500 = arith.divf %498, %499 : vector<2x96xf32>
    %501 = vector.extract_strided_slice %500 {offsets = [0, 0], sizes = [2, 32], strides = [1, 1]} : vector<2x96xf32> to vector<2x32xf32>
    %502 = vector.extract_strided_slice %500 {offsets = [0, 32], sizes = [2, 32], strides = [1, 1]} : vector<2x96xf32> to vector<2x32xf32>
    %503 = vector.extract_strided_slice %500 {offsets = [0, 64], sizes = [2, 32], strides = [1, 1]} : vector<2x96xf32> to vector<2x32xf32>
    %504 = vector.extract_strided_slice %494 {offsets = [0, 96], sizes = [2, 32], strides = [1, 1]} : vector<2x128xf32> to vector<2x32xf32>
    %505 = math.tanh %504 : vector<2x32xf32>
    %506 = arith.mulf %502, %484 : vector<2x32xf32>
    %507 = arith.mulf %501, %505 : vector<2x32xf32>
    %508 = arith.addf %506, %507 : vector<2x32xf32>
    %509 = math.tanh %508 : vector<2x32xf32>
    %510 = arith.mulf %503, %509 : vector<2x32xf32>
    %c6_236 = arith.constant 6 : index
    %c0_237 = arith.constant 0 : index
    %c0_238 = arith.constant 0 : index
    %511 = vector.load %arg16[%c6_236, %c0_237, %c0_238] : memref<8x2x32xf32, #tpu.memory_space<vmem>>, vector<1x2x32xf32>
    %512 = vector.shape_cast %511 : vector<1x2x32xf32> to vector<2x32xf32>
    %513 = vector.shape_cast %510 : vector<2x32xf32> to vector<1x2x32xf32>
    tpu.vector_store %arg16[%c6_236, %c0_237, %c0_238], %513 {strides = array<i32>} : memref<8x2x32xf32, #tpu.memory_space<vmem>>, vector<1x2x32xf32>,
    %514 = arith.truncf %510 : vector<2x32xf32> to vector<2x32xbf16>
    %cst_239 = arith.constant dense<0.000000e+00> : vector<2x128xf32>
    %515 = tpu.matmul %514, %270, %cst_239 {dimension_numbers = #tpu.dot_dimension_numbers<[1], [0], [0], [1], [0, 0, 1, 1], [], []>} : vector<2x32xbf16>, vector<32x128xbf16>, vector<2x128xf32> -> vector<2x128xf32>
    %c7_240 = arith.constant 7 : index
    %c0_241 = arith.constant 0 : index
    %c0_242 = arith.constant 0 : index
    %516 = vector.load %arg15[%c7_240, %c0_241, %c0_242] : memref<8x2x128xf32, #tpu.memory_space<vmem>>, vector<1x2x128xf32>
    %517 = vector.shape_cast %516 : vector<1x2x128xf32> to vector<2x128xf32>
    %518 = arith.addf %517, %515 : vector<2x128xf32>
    %519 = vector.extract_strided_slice %518 {offsets = [0, 0], sizes = [2, 96], strides = [1, 1]} : vector<2x128xf32> to vector<2x96xf32>
    %520 = arith.negf %519 : vector<2x96xf32>
    %521 = math.exp %520 : vector<2x96xf32>
    %cst_243 = arith.constant 1.000000e+00 : f32
    %522 = vector.broadcast %cst_243 : f32 to vector<2x96xf32>
    %523 = arith.addf %522, %521 : vector<2x96xf32>
    %524 = arith.divf %522, %523 : vector<2x96xf32>
    %525 = vector.extract_strided_slice %524 {offsets = [0, 0], sizes = [2, 32], strides = [1, 1]} : vector<2x96xf32> to vector<2x32xf32>
    %526 = vector.extract_strided_slice %524 {offsets = [0, 32], sizes = [2, 32], strides = [1, 1]} : vector<2x96xf32> to vector<2x32xf32>
    %527 = vector.extract_strided_slice %524 {offsets = [0, 64], sizes = [2, 32], strides = [1, 1]} : vector<2x96xf32> to vector<2x32xf32>
    %528 = vector.extract_strided_slice %518 {offsets = [0, 96], sizes = [2, 32], strides = [1, 1]} : vector<2x128xf32> to vector<2x32xf32>
    %529 = math.tanh %528 : vector<2x32xf32>
    %530 = arith.mulf %526, %508 : vector<2x32xf32>
    %531 = arith.mulf %525, %529 : vector<2x32xf32>
    %532 = arith.addf %530, %531 : vector<2x32xf32>
    %533 = math.tanh %532 : vector<2x32xf32>
    %534 = arith.mulf %527, %533 : vector<2x32xf32>
    %c7_244 = arith.constant 7 : index
    %c0_245 = arith.constant 0 : index
    %c0_246 = arith.constant 0 : index
    %535 = vector.load %arg16[%c7_244, %c0_245, %c0_246] : memref<8x2x32xf32, #tpu.memory_space<vmem>>, vector<1x2x32xf32>
    %536 = vector.shape_cast %535 : vector<1x2x32xf32> to vector<2x32xf32>
    %537 = vector.shape_cast %534 : vector<2x32xf32> to vector<1x2x32xf32>
    tpu.vector_store %arg16[%c7_244, %c0_245, %c0_246], %537 {strides = array<i32>} : memref<8x2x32xf32, #tpu.memory_space<vmem>>, vector<1x2x32xf32>,
    %c0_247 = arith.constant 0 : index
    %c0_248 = arith.constant 0 : index
    %538 = vector.load %arg8[%c0_247, %c0_248] : memref<1x32xf32, #tpu.memory_space<vmem>>, vector<1x32xf32>
    %c0_249 = arith.constant 0 : index
    %c0_250 = arith.constant 0 : index
    %539 = vector.load %arg9[%c0_249, %c0_250] : memref<1x32xf32, #tpu.memory_space<vmem>>, vector<1x32xf32>
    %c0_251 = arith.constant 0 : index
    %c0_252 = arith.constant 0 : index
    %540 = vector.load %arg10[%c0_251, %c0_252] : memref<32x32xbf16, #tpu.memory_space<vmem>>, vector<32x32xbf16>
    %c0_253 = arith.constant 0 : index
    %c0_254 = arith.constant 0 : index
    %541 = vector.load %arg11[%c0_253, %c0_254] : memref<1x32xf32, #tpu.memory_space<vmem>>, vector<1x32xf32>
    %c0_255 = arith.constant 0 : index
    %c0_256 = arith.constant 0 : index
    %542 = vector.load %arg12[%c0_255, %c0_256] : memref<1x32xf32, #tpu.memory_space<vmem>>, vector<1x32xf32>
    %c0_257 = arith.constant 0 : index
    %c0_258 = arith.constant 0 : index
    %543 = vector.load %arg13[%c0_257, %c0_258] : memref<1x1xf32, #tpu.memory_space<vmem>>, vector<1x1xf32>
    %c0_259 = arith.constant 0 : index
    %c0_260 = arith.constant 0 : index
    %c0_261 = arith.constant 0 : index
    %544 = vector.load %arg16[%c0_259, %c0_260, %c0_261] : memref<8x2x32xf32, #tpu.memory_space<vmem>>, vector<1x2x32xf32>
    %545 = vector.shape_cast %544 : vector<1x2x32xf32> to vector<2x32xf32>
    %cst_262 = arith.constant dense<0.000000e+00> : vector<2xf32>
    %546 = vector.multi_reduction <add>, %545, %cst_262 [1] : vector<2x32xf32> to vector<2xf32>
    %547 = vector.shape_cast %546 : vector<2xf32> to vector<2x1xf32>
    %cst_263 = arith.constant 3.200000e+01 : f32
    %548 = vector.broadcast %cst_263 : f32 to vector<2x1xf32>
    %549 = arith.divf %547, %548 : vector<2x1xf32>
    %550 = vector.broadcast %549 : vector<2x1xf32> to vector<2x32xf32>
    %551 = arith.subf %545, %550 : vector<2x32xf32>
    %552 = arith.mulf %551, %551 : vector<2x32xf32>
    %cst_264 = arith.constant dense<0.000000e+00> : vector<2xf32>
    %553 = vector.multi_reduction <add>, %552, %cst_264 [1] : vector<2x32xf32> to vector<2xf32>
    %554 = vector.shape_cast %553 : vector<2xf32> to vector<2x1xf32>
    %cst_265 = arith.constant 3.200000e+01 : f32
    %555 = vector.broadcast %cst_265 : f32 to vector<2x1xf32>
    %556 = arith.divf %554, %555 : vector<2x1xf32>
    %557 = vector.broadcast %549 : vector<2x1xf32> to vector<2x32xf32>
    %558 = arith.subf %545, %557 : vector<2x32xf32>
    %cst_266 = arith.constant 9.99999974E-6 : f32
    %559 = vector.broadcast %cst_266 : f32 to vector<2x1xf32>
    %560 = arith.addf %556, %559 : vector<2x1xf32>
    %561 = math.rsqrt %560 : vector<2x1xf32>
    %562 = vector.broadcast %561 : vector<2x1xf32> to vector<2x32xf32>
    %563 = arith.mulf %558, %562 : vector<2x32xf32>
    %564 = vector.broadcast %538 : vector<1x32xf32> to vector<2x32xf32>
    %565 = arith.mulf %563, %564 : vector<2x32xf32>
    %566 = vector.broadcast %539 : vector<1x32xf32> to vector<2x32xf32>
    %567 = arith.addf %565, %566 : vector<2x32xf32>
    %568 = arith.truncf %567 : vector<2x32xf32> to vector<2x32xbf16>
    %cst_267 = arith.constant dense<0.000000e+00> : vector<2x32xf32>
    %569 = tpu.matmul %568, %540, %cst_267 {dimension_numbers = #tpu.dot_dimension_numbers<[1], [0], [0], [1], [0, 0, 1, 1], [], []>} : vector<2x32xbf16>, vector<32x32xbf16>, vector<2x32xf32> -> vector<2x32xf32>
    %570 = vector.broadcast %541 : vector<1x32xf32> to vector<2x32xf32>
    %571 = arith.addf %569, %570 : vector<2x32xf32>
    %cst_268 = arith.constant 0.000000e+00 : f32
    %572 = vector.broadcast %cst_268 : f32 to vector<2x32xf32>
    %573 = arith.maximumf %571, %572 : vector<2x32xf32>
    %574 = vector.broadcast %542 : vector<1x32xf32> to vector<2x32xf32>
    %575 = arith.mulf %573, %574 : vector<2x32xf32>
    %cst_269 = arith.constant dense<0.000000e+00> : vector<2xf32>
    %576 = vector.multi_reduction <add>, %575, %cst_269 [1] : vector<2x32xf32> to vector<2xf32>
    %577 = vector.shape_cast %576 : vector<2xf32> to vector<2x1xf32>
    %578 = vector.broadcast %543 : vector<1x1xf32> to vector<2x1xf32>
    %579 = arith.addf %577, %578 : vector<2x1xf32>
    %c0_270 = arith.constant 0 : index
    %c0_271 = arith.constant 0 : index
    %580 = vector.load %arg14[%c0_270, %c0_271] : memref<2x8xf32, #tpu.memory_space<vmem>>, vector<2x1xf32>
    tpu.vector_store %arg14[%c0_270, %c0_271], %579 {strides = array<i32>} : memref<2x8xf32, #tpu.memory_space<vmem>>, vector<2x1xf32>,
    %c1_272 = arith.constant 1 : index
    %c0_273 = arith.constant 0 : index
    %c0_274 = arith.constant 0 : index
    %581 = vector.load %arg16[%c1_272, %c0_273, %c0_274] : memref<8x2x32xf32, #tpu.memory_space<vmem>>, vector<1x2x32xf32>
    %582 = vector.shape_cast %581 : vector<1x2x32xf32> to vector<2x32xf32>
    %cst_275 = arith.constant dense<0.000000e+00> : vector<2xf32>
    %583 = vector.multi_reduction <add>, %582, %cst_275 [1] : vector<2x32xf32> to vector<2xf32>
    %584 = vector.shape_cast %583 : vector<2xf32> to vector<2x1xf32>
    %cst_276 = arith.constant 3.200000e+01 : f32
    %585 = vector.broadcast %cst_276 : f32 to vector<2x1xf32>
    %586 = arith.divf %584, %585 : vector<2x1xf32>
    %587 = vector.broadcast %586 : vector<2x1xf32> to vector<2x32xf32>
    %588 = arith.subf %582, %587 : vector<2x32xf32>
    %589 = arith.mulf %588, %588 : vector<2x32xf32>
    %cst_277 = arith.constant dense<0.000000e+00> : vector<2xf32>
    %590 = vector.multi_reduction <add>, %589, %cst_277 [1] : vector<2x32xf32> to vector<2xf32>
    %591 = vector.shape_cast %590 : vector<2xf32> to vector<2x1xf32>
    %cst_278 = arith.constant 3.200000e+01 : f32
    %592 = vector.broadcast %cst_278 : f32 to vector<2x1xf32>
    %593 = arith.divf %591, %592 : vector<2x1xf32>
    %594 = vector.broadcast %586 : vector<2x1xf32> to vector<2x32xf32>
    %595 = arith.subf %582, %594 : vector<2x32xf32>
    %cst_279 = arith.constant 9.99999974E-6 : f32
    %596 = vector.broadcast %cst_279 : f32 to vector<2x1xf32>
    %597 = arith.addf %593, %596 : vector<2x1xf32>
    %598 = math.rsqrt %597 : vector<2x1xf32>
    %599 = vector.broadcast %598 : vector<2x1xf32> to vector<2x32xf32>
    %600 = arith.mulf %595, %599 : vector<2x32xf32>
    %601 = vector.broadcast %538 : vector<1x32xf32> to vector<2x32xf32>
    %602 = arith.mulf %600, %601 : vector<2x32xf32>
    %603 = vector.broadcast %539 : vector<1x32xf32> to vector<2x32xf32>
    %604 = arith.addf %602, %603 : vector<2x32xf32>
    %605 = arith.truncf %604 : vector<2x32xf32> to vector<2x32xbf16>
    %cst_280 = arith.constant dense<0.000000e+00> : vector<2x32xf32>
    %606 = tpu.matmul %605, %540, %cst_280 {dimension_numbers = #tpu.dot_dimension_numbers<[1], [0], [0], [1], [0, 0, 1, 1], [], []>} : vector<2x32xbf16>, vector<32x32xbf16>, vector<2x32xf32> -> vector<2x32xf32>
    %607 = vector.broadcast %541 : vector<1x32xf32> to vector<2x32xf32>
    %608 = arith.addf %606, %607 : vector<2x32xf32>
    %cst_281 = arith.constant 0.000000e+00 : f32
    %609 = vector.broadcast %cst_281 : f32 to vector<2x32xf32>
    %610 = arith.maximumf %608, %609 : vector<2x32xf32>
    %611 = vector.broadcast %542 : vector<1x32xf32> to vector<2x32xf32>
    %612 = arith.mulf %610, %611 : vector<2x32xf32>
    %cst_282 = arith.constant dense<0.000000e+00> : vector<2xf32>
    %613 = vector.multi_reduction <add>, %612, %cst_282 [1] : vector<2x32xf32> to vector<2xf32>
    %614 = vector.shape_cast %613 : vector<2xf32> to vector<2x1xf32>
    %615 = vector.broadcast %543 : vector<1x1xf32> to vector<2x1xf32>
    %616 = arith.addf %614, %615 : vector<2x1xf32>
    %c0_283 = arith.constant 0 : index
    %c1_284 = arith.constant 1 : index
    %617 = vector.load %arg14[%c0_283, %c1_284] : memref<2x8xf32, #tpu.memory_space<vmem>>, vector<2x1xf32>
    tpu.vector_store %arg14[%c0_283, %c1_284], %616 {strides = array<i32>} : memref<2x8xf32, #tpu.memory_space<vmem>>, vector<2x1xf32>,
    %c2_285 = arith.constant 2 : index
    %c0_286 = arith.constant 0 : index
    %c0_287 = arith.constant 0 : index
    %618 = vector.load %arg16[%c2_285, %c0_286, %c0_287] : memref<8x2x32xf32, #tpu.memory_space<vmem>>, vector<1x2x32xf32>
    %619 = vector.shape_cast %618 : vector<1x2x32xf32> to vector<2x32xf32>
    %cst_288 = arith.constant dense<0.000000e+00> : vector<2xf32>
    %620 = vector.multi_reduction <add>, %619, %cst_288 [1] : vector<2x32xf32> to vector<2xf32>
    %621 = vector.shape_cast %620 : vector<2xf32> to vector<2x1xf32>
    %cst_289 = arith.constant 3.200000e+01 : f32
    %622 = vector.broadcast %cst_289 : f32 to vector<2x1xf32>
    %623 = arith.divf %621, %622 : vector<2x1xf32>
    %624 = vector.broadcast %623 : vector<2x1xf32> to vector<2x32xf32>
    %625 = arith.subf %619, %624 : vector<2x32xf32>
    %626 = arith.mulf %625, %625 : vector<2x32xf32>
    %cst_290 = arith.constant dense<0.000000e+00> : vector<2xf32>
    %627 = vector.multi_reduction <add>, %626, %cst_290 [1] : vector<2x32xf32> to vector<2xf32>
    %628 = vector.shape_cast %627 : vector<2xf32> to vector<2x1xf32>
    %cst_291 = arith.constant 3.200000e+01 : f32
    %629 = vector.broadcast %cst_291 : f32 to vector<2x1xf32>
    %630 = arith.divf %628, %629 : vector<2x1xf32>
    %631 = vector.broadcast %623 : vector<2x1xf32> to vector<2x32xf32>
    %632 = arith.subf %619, %631 : vector<2x32xf32>
    %cst_292 = arith.constant 9.99999974E-6 : f32
    %633 = vector.broadcast %cst_292 : f32 to vector<2x1xf32>
    %634 = arith.addf %630, %633 : vector<2x1xf32>
    %635 = math.rsqrt %634 : vector<2x1xf32>
    %636 = vector.broadcast %635 : vector<2x1xf32> to vector<2x32xf32>
    %637 = arith.mulf %632, %636 : vector<2x32xf32>
    %638 = vector.broadcast %538 : vector<1x32xf32> to vector<2x32xf32>
    %639 = arith.mulf %637, %638 : vector<2x32xf32>
    %640 = vector.broadcast %539 : vector<1x32xf32> to vector<2x32xf32>
    %641 = arith.addf %639, %640 : vector<2x32xf32>
    %642 = arith.truncf %641 : vector<2x32xf32> to vector<2x32xbf16>
    %cst_293 = arith.constant dense<0.000000e+00> : vector<2x32xf32>
    %643 = tpu.matmul %642, %540, %cst_293 {dimension_numbers = #tpu.dot_dimension_numbers<[1], [0], [0], [1], [0, 0, 1, 1], [], []>} : vector<2x32xbf16>, vector<32x32xbf16>, vector<2x32xf32> -> vector<2x32xf32>
    %644 = vector.broadcast %541 : vector<1x32xf32> to vector<2x32xf32>
    %645 = arith.addf %643, %644 : vector<2x32xf32>
    %cst_294 = arith.constant 0.000000e+00 : f32
    %646 = vector.broadcast %cst_294 : f32 to vector<2x32xf32>
    %647 = arith.maximumf %645, %646 : vector<2x32xf32>
    %648 = vector.broadcast %542 : vector<1x32xf32> to vector<2x32xf32>
    %649 = arith.mulf %647, %648 : vector<2x32xf32>
    %cst_295 = arith.constant dense<0.000000e+00> : vector<2xf32>
    %650 = vector.multi_reduction <add>, %649, %cst_295 [1] : vector<2x32xf32> to vector<2xf32>
    %651 = vector.shape_cast %650 : vector<2xf32> to vector<2x1xf32>
    %652 = vector.broadcast %543 : vector<1x1xf32> to vector<2x1xf32>
    %653 = arith.addf %651, %652 : vector<2x1xf32>
    %c0_296 = arith.constant 0 : index
    %c2_297 = arith.constant 2 : index
    %654 = vector.load %arg14[%c0_296, %c2_297] : memref<2x8xf32, #tpu.memory_space<vmem>>, vector<2x1xf32>
    tpu.vector_store %arg14[%c0_296, %c2_297], %653 {strides = array<i32>} : memref<2x8xf32, #tpu.memory_space<vmem>>, vector<2x1xf32>,
    %c3_298 = arith.constant 3 : index
    %c0_299 = arith.constant 0 : index
    %c0_300 = arith.constant 0 : index
    %655 = vector.load %arg16[%c3_298, %c0_299, %c0_300] : memref<8x2x32xf32, #tpu.memory_space<vmem>>, vector<1x2x32xf32>
    %656 = vector.shape_cast %655 : vector<1x2x32xf32> to vector<2x32xf32>
    %cst_301 = arith.constant dense<0.000000e+00> : vector<2xf32>
    %657 = vector.multi_reduction <add>, %656, %cst_301 [1] : vector<2x32xf32> to vector<2xf32>
    %658 = vector.shape_cast %657 : vector<2xf32> to vector<2x1xf32>
    %cst_302 = arith.constant 3.200000e+01 : f32
    %659 = vector.broadcast %cst_302 : f32 to vector<2x1xf32>
    %660 = arith.divf %658, %659 : vector<2x1xf32>
    %661 = vector.broadcast %660 : vector<2x1xf32> to vector<2x32xf32>
    %662 = arith.subf %656, %661 : vector<2x32xf32>
    %663 = arith.mulf %662, %662 : vector<2x32xf32>
    %cst_303 = arith.constant dense<0.000000e+00> : vector<2xf32>
    %664 = vector.multi_reduction <add>, %663, %cst_303 [1] : vector<2x32xf32> to vector<2xf32>
    %665 = vector.shape_cast %664 : vector<2xf32> to vector<2x1xf32>
    %cst_304 = arith.constant 3.200000e+01 : f32
    %666 = vector.broadcast %cst_304 : f32 to vector<2x1xf32>
    %667 = arith.divf %665, %666 : vector<2x1xf32>
    %668 = vector.broadcast %660 : vector<2x1xf32> to vector<2x32xf32>
    %669 = arith.subf %656, %668 : vector<2x32xf32>
    %cst_305 = arith.constant 9.99999974E-6 : f32
    %670 = vector.broadcast %cst_305 : f32 to vector<2x1xf32>
    %671 = arith.addf %667, %670 : vector<2x1xf32>
    %672 = math.rsqrt %671 : vector<2x1xf32>
    %673 = vector.broadcast %672 : vector<2x1xf32> to vector<2x32xf32>
    %674 = arith.mulf %669, %673 : vector<2x32xf32>
    %675 = vector.broadcast %538 : vector<1x32xf32> to vector<2x32xf32>
    %676 = arith.mulf %674, %675 : vector<2x32xf32>
    %677 = vector.broadcast %539 : vector<1x32xf32> to vector<2x32xf32>
    %678 = arith.addf %676, %677 : vector<2x32xf32>
    %679 = arith.truncf %678 : vector<2x32xf32> to vector<2x32xbf16>
    %cst_306 = arith.constant dense<0.000000e+00> : vector<2x32xf32>
    %680 = tpu.matmul %679, %540, %cst_306 {dimension_numbers = #tpu.dot_dimension_numbers<[1], [0], [0], [1], [0, 0, 1, 1], [], []>} : vector<2x32xbf16>, vector<32x32xbf16>, vector<2x32xf32> -> vector<2x32xf32>
    %681 = vector.broadcast %541 : vector<1x32xf32> to vector<2x32xf32>
    %682 = arith.addf %680, %681 : vector<2x32xf32>
    %cst_307 = arith.constant 0.000000e+00 : f32
    %683 = vector.broadcast %cst_307 : f32 to vector<2x32xf32>
    %684 = arith.maximumf %682, %683 : vector<2x32xf32>
    %685 = vector.broadcast %542 : vector<1x32xf32> to vector<2x32xf32>
    %686 = arith.mulf %684, %685 : vector<2x32xf32>
    %cst_308 = arith.constant dense<0.000000e+00> : vector<2xf32>
    %687 = vector.multi_reduction <add>, %686, %cst_308 [1] : vector<2x32xf32> to vector<2xf32>
    %688 = vector.shape_cast %687 : vector<2xf32> to vector<2x1xf32>
    %689 = vector.broadcast %543 : vector<1x1xf32> to vector<2x1xf32>
    %690 = arith.addf %688, %689 : vector<2x1xf32>
    %c0_309 = arith.constant 0 : index
    %c3_310 = arith.constant 3 : index
    %691 = vector.load %arg14[%c0_309, %c3_310] : memref<2x8xf32, #tpu.memory_space<vmem>>, vector<2x1xf32>
    tpu.vector_store %arg14[%c0_309, %c3_310], %690 {strides = array<i32>} : memref<2x8xf32, #tpu.memory_space<vmem>>, vector<2x1xf32>,
    %c4_311 = arith.constant 4 : index
    %c0_312 = arith.constant 0 : index
    %c0_313 = arith.constant 0 : index
    %692 = vector.load %arg16[%c4_311, %c0_312, %c0_313] : memref<8x2x32xf32, #tpu.memory_space<vmem>>, vector<1x2x32xf32>
    %693 = vector.shape_cast %692 : vector<1x2x32xf32> to vector<2x32xf32>
    %cst_314 = arith.constant dense<0.000000e+00> : vector<2xf32>
    %694 = vector.multi_reduction <add>, %693, %cst_314 [1] : vector<2x32xf32> to vector<2xf32>
    %695 = vector.shape_cast %694 : vector<2xf32> to vector<2x1xf32>
    %cst_315 = arith.constant 3.200000e+01 : f32
    %696 = vector.broadcast %cst_315 : f32 to vector<2x1xf32>
    %697 = arith.divf %695, %696 : vector<2x1xf32>
    %698 = vector.broadcast %697 : vector<2x1xf32> to vector<2x32xf32>
    %699 = arith.subf %693, %698 : vector<2x32xf32>
    %700 = arith.mulf %699, %699 : vector<2x32xf32>
    %cst_316 = arith.constant dense<0.000000e+00> : vector<2xf32>
    %701 = vector.multi_reduction <add>, %700, %cst_316 [1] : vector<2x32xf32> to vector<2xf32>
    %702 = vector.shape_cast %701 : vector<2xf32> to vector<2x1xf32>
    %cst_317 = arith.constant 3.200000e+01 : f32
    %703 = vector.broadcast %cst_317 : f32 to vector<2x1xf32>
    %704 = arith.divf %702, %703 : vector<2x1xf32>
    %705 = vector.broadcast %697 : vector<2x1xf32> to vector<2x32xf32>
    %706 = arith.subf %693, %705 : vector<2x32xf32>
    %cst_318 = arith.constant 9.99999974E-6 : f32
    %707 = vector.broadcast %cst_318 : f32 to vector<2x1xf32>
    %708 = arith.addf %704, %707 : vector<2x1xf32>
    %709 = math.rsqrt %708 : vector<2x1xf32>
    %710 = vector.broadcast %709 : vector<2x1xf32> to vector<2x32xf32>
    %711 = arith.mulf %706, %710 : vector<2x32xf32>
    %712 = vector.broadcast %538 : vector<1x32xf32> to vector<2x32xf32>
    %713 = arith.mulf %711, %712 : vector<2x32xf32>
    %714 = vector.broadcast %539 : vector<1x32xf32> to vector<2x32xf32>
    %715 = arith.addf %713, %714 : vector<2x32xf32>
    %716 = arith.truncf %715 : vector<2x32xf32> to vector<2x32xbf16>
    %cst_319 = arith.constant dense<0.000000e+00> : vector<2x32xf32>
    %717 = tpu.matmul %716, %540, %cst_319 {dimension_numbers = #tpu.dot_dimension_numbers<[1], [0], [0], [1], [0, 0, 1, 1], [], []>} : vector<2x32xbf16>, vector<32x32xbf16>, vector<2x32xf32> -> vector<2x32xf32>
    %718 = vector.broadcast %541 : vector<1x32xf32> to vector<2x32xf32>
    %719 = arith.addf %717, %718 : vector<2x32xf32>
    %cst_320 = arith.constant 0.000000e+00 : f32
    %720 = vector.broadcast %cst_320 : f32 to vector<2x32xf32>
    %721 = arith.maximumf %719, %720 : vector<2x32xf32>
    %722 = vector.broadcast %542 : vector<1x32xf32> to vector<2x32xf32>
    %723 = arith.mulf %721, %722 : vector<2x32xf32>
    %cst_321 = arith.constant dense<0.000000e+00> : vector<2xf32>
    %724 = vector.multi_reduction <add>, %723, %cst_321 [1] : vector<2x32xf32> to vector<2xf32>
    %725 = vector.shape_cast %724 : vector<2xf32> to vector<2x1xf32>
    %726 = vector.broadcast %543 : vector<1x1xf32> to vector<2x1xf32>
    %727 = arith.addf %725, %726 : vector<2x1xf32>
    %c0_322 = arith.constant 0 : index
    %c4_323 = arith.constant 4 : index
    %728 = vector.load %arg14[%c0_322, %c4_323] : memref<2x8xf32, #tpu.memory_space<vmem>>, vector<2x1xf32>
    tpu.vector_store %arg14[%c0_322, %c4_323], %727 {strides = array<i32>} : memref<2x8xf32, #tpu.memory_space<vmem>>, vector<2x1xf32>,
    %c5_324 = arith.constant 5 : index
    %c0_325 = arith.constant 0 : index
    %c0_326 = arith.constant 0 : index
    %729 = vector.load %arg16[%c5_324, %c0_325, %c0_326] : memref<8x2x32xf32, #tpu.memory_space<vmem>>, vector<1x2x32xf32>
    %730 = vector.shape_cast %729 : vector<1x2x32xf32> to vector<2x32xf32>
    %cst_327 = arith.constant dense<0.000000e+00> : vector<2xf32>
    %731 = vector.multi_reduction <add>, %730, %cst_327 [1] : vector<2x32xf32> to vector<2xf32>
    %732 = vector.shape_cast %731 : vector<2xf32> to vector<2x1xf32>
    %cst_328 = arith.constant 3.200000e+01 : f32
    %733 = vector.broadcast %cst_328 : f32 to vector<2x1xf32>
    %734 = arith.divf %732, %733 : vector<2x1xf32>
    %735 = vector.broadcast %734 : vector<2x1xf32> to vector<2x32xf32>
    %736 = arith.subf %730, %735 : vector<2x32xf32>
    %737 = arith.mulf %736, %736 : vector<2x32xf32>
    %cst_329 = arith.constant dense<0.000000e+00> : vector<2xf32>
    %738 = vector.multi_reduction <add>, %737, %cst_329 [1] : vector<2x32xf32> to vector<2xf32>
    %739 = vector.shape_cast %738 : vector<2xf32> to vector<2x1xf32>
    %cst_330 = arith.constant 3.200000e+01 : f32
    %740 = vector.broadcast %cst_330 : f32 to vector<2x1xf32>
    %741 = arith.divf %739, %740 : vector<2x1xf32>
    %742 = vector.broadcast %734 : vector<2x1xf32> to vector<2x32xf32>
    %743 = arith.subf %730, %742 : vector<2x32xf32>
    %cst_331 = arith.constant 9.99999974E-6 : f32
    %744 = vector.broadcast %cst_331 : f32 to vector<2x1xf32>
    %745 = arith.addf %741, %744 : vector<2x1xf32>
    %746 = math.rsqrt %745 : vector<2x1xf32>
    %747 = vector.broadcast %746 : vector<2x1xf32> to vector<2x32xf32>
    %748 = arith.mulf %743, %747 : vector<2x32xf32>
    %749 = vector.broadcast %538 : vector<1x32xf32> to vector<2x32xf32>
    %750 = arith.mulf %748, %749 : vector<2x32xf32>
    %751 = vector.broadcast %539 : vector<1x32xf32> to vector<2x32xf32>
    %752 = arith.addf %750, %751 : vector<2x32xf32>
    %753 = arith.truncf %752 : vector<2x32xf32> to vector<2x32xbf16>
    %cst_332 = arith.constant dense<0.000000e+00> : vector<2x32xf32>
    %754 = tpu.matmul %753, %540, %cst_332 {dimension_numbers = #tpu.dot_dimension_numbers<[1], [0], [0], [1], [0, 0, 1, 1], [], []>} : vector<2x32xbf16>, vector<32x32xbf16>, vector<2x32xf32> -> vector<2x32xf32>
    %755 = vector.broadcast %541 : vector<1x32xf32> to vector<2x32xf32>
    %756 = arith.addf %754, %755 : vector<2x32xf32>
    %cst_333 = arith.constant 0.000000e+00 : f32
    %757 = vector.broadcast %cst_333 : f32 to vector<2x32xf32>
    %758 = arith.maximumf %756, %757 : vector<2x32xf32>
    %759 = vector.broadcast %542 : vector<1x32xf32> to vector<2x32xf32>
    %760 = arith.mulf %758, %759 : vector<2x32xf32>
    %cst_334 = arith.constant dense<0.000000e+00> : vector<2xf32>
    %761 = vector.multi_reduction <add>, %760, %cst_334 [1] : vector<2x32xf32> to vector<2xf32>
    %762 = vector.shape_cast %761 : vector<2xf32> to vector<2x1xf32>
    %763 = vector.broadcast %543 : vector<1x1xf32> to vector<2x1xf32>
    %764 = arith.addf %762, %763 : vector<2x1xf32>
    %c0_335 = arith.constant 0 : index
    %c5_336 = arith.constant 5 : index
    %765 = vector.load %arg14[%c0_335, %c5_336] : memref<2x8xf32, #tpu.memory_space<vmem>>, vector<2x1xf32>
    tpu.vector_store %arg14[%c0_335, %c5_336], %764 {strides = array<i32>} : memref<2x8xf32, #tpu.memory_space<vmem>>, vector<2x1xf32>,
    %c6_337 = arith.constant 6 : index
    %c0_338 = arith.constant 0 : index
    %c0_339 = arith.constant 0 : index
    %766 = vector.load %arg16[%c6_337, %c0_338, %c0_339] : memref<8x2x32xf32, #tpu.memory_space<vmem>>, vector<1x2x32xf32>
    %767 = vector.shape_cast %766 : vector<1x2x32xf32> to vector<2x32xf32>
    %cst_340 = arith.constant dense<0.000000e+00> : vector<2xf32>
    %768 = vector.multi_reduction <add>, %767, %cst_340 [1] : vector<2x32xf32> to vector<2xf32>
    %769 = vector.shape_cast %768 : vector<2xf32> to vector<2x1xf32>
    %cst_341 = arith.constant 3.200000e+01 : f32
    %770 = vector.broadcast %cst_341 : f32 to vector<2x1xf32>
    %771 = arith.divf %769, %770 : vector<2x1xf32>
    %772 = vector.broadcast %771 : vector<2x1xf32> to vector<2x32xf32>
    %773 = arith.subf %767, %772 : vector<2x32xf32>
    %774 = arith.mulf %773, %773 : vector<2x32xf32>
    %cst_342 = arith.constant dense<0.000000e+00> : vector<2xf32>
    %775 = vector.multi_reduction <add>, %774, %cst_342 [1] : vector<2x32xf32> to vector<2xf32>
    %776 = vector.shape_cast %775 : vector<2xf32> to vector<2x1xf32>
    %cst_343 = arith.constant 3.200000e+01 : f32
    %777 = vector.broadcast %cst_343 : f32 to vector<2x1xf32>
    %778 = arith.divf %776, %777 : vector<2x1xf32>
    %779 = vector.broadcast %771 : vector<2x1xf32> to vector<2x32xf32>
    %780 = arith.subf %767, %779 : vector<2x32xf32>
    %cst_344 = arith.constant 9.99999974E-6 : f32
    %781 = vector.broadcast %cst_344 : f32 to vector<2x1xf32>
    %782 = arith.addf %778, %781 : vector<2x1xf32>
    %783 = math.rsqrt %782 : vector<2x1xf32>
    %784 = vector.broadcast %783 : vector<2x1xf32> to vector<2x32xf32>
    %785 = arith.mulf %780, %784 : vector<2x32xf32>
    %786 = vector.broadcast %538 : vector<1x32xf32> to vector<2x32xf32>
    %787 = arith.mulf %785, %786 : vector<2x32xf32>
    %788 = vector.broadcast %539 : vector<1x32xf32> to vector<2x32xf32>
    %789 = arith.addf %787, %788 : vector<2x32xf32>
    %790 = arith.truncf %789 : vector<2x32xf32> to vector<2x32xbf16>
    %cst_345 = arith.constant dense<0.000000e+00> : vector<2x32xf32>
    %791 = tpu.matmul %790, %540, %cst_345 {dimension_numbers = #tpu.dot_dimension_numbers<[1], [0], [0], [1], [0, 0, 1, 1], [], []>} : vector<2x32xbf16>, vector<32x32xbf16>, vector<2x32xf32> -> vector<2x32xf32>
    %792 = vector.broadcast %541 : vector<1x32xf32> to vector<2x32xf32>
    %793 = arith.addf %791, %792 : vector<2x32xf32>
    %cst_346 = arith.constant 0.000000e+00 : f32
    %794 = vector.broadcast %cst_346 : f32 to vector<2x32xf32>
    %795 = arith.maximumf %793, %794 : vector<2x32xf32>
    %796 = vector.broadcast %542 : vector<1x32xf32> to vector<2x32xf32>
    %797 = arith.mulf %795, %796 : vector<2x32xf32>
    %cst_347 = arith.constant dense<0.000000e+00> : vector<2xf32>
    %798 = vector.multi_reduction <add>, %797, %cst_347 [1] : vector<2x32xf32> to vector<2xf32>
    %799 = vector.shape_cast %798 : vector<2xf32> to vector<2x1xf32>
    %800 = vector.broadcast %543 : vector<1x1xf32> to vector<2x1xf32>
    %801 = arith.addf %799, %800 : vector<2x1xf32>
    %c0_348 = arith.constant 0 : index
    %c6_349 = arith.constant 6 : index
    %802 = vector.load %arg14[%c0_348, %c6_349] : memref<2x8xf32, #tpu.memory_space<vmem>>, vector<2x1xf32>
    tpu.vector_store %arg14[%c0_348, %c6_349], %801 {strides = array<i32>} : memref<2x8xf32, #tpu.memory_space<vmem>>, vector<2x1xf32>,
    %c7_350 = arith.constant 7 : index
    %c0_351 = arith.constant 0 : index
    %c0_352 = arith.constant 0 : index
    %803 = vector.load %arg16[%c7_350, %c0_351, %c0_352] : memref<8x2x32xf32, #tpu.memory_space<vmem>>, vector<1x2x32xf32>
    %804 = vector.shape_cast %803 : vector<1x2x32xf32> to vector<2x32xf32>
    %cst_353 = arith.constant dense<0.000000e+00> : vector<2xf32>
    %805 = vector.multi_reduction <add>, %804, %cst_353 [1] : vector<2x32xf32> to vector<2xf32>
    %806 = vector.shape_cast %805 : vector<2xf32> to vector<2x1xf32>
    %cst_354 = arith.constant 3.200000e+01 : f32
    %807 = vector.broadcast %cst_354 : f32 to vector<2x1xf32>
    %808 = arith.divf %806, %807 : vector<2x1xf32>
    %809 = vector.broadcast %808 : vector<2x1xf32> to vector<2x32xf32>
    %810 = arith.subf %804, %809 : vector<2x32xf32>
    %811 = arith.mulf %810, %810 : vector<2x32xf32>
    %cst_355 = arith.constant dense<0.000000e+00> : vector<2xf32>
    %812 = vector.multi_reduction <add>, %811, %cst_355 [1] : vector<2x32xf32> to vector<2xf32>
    %813 = vector.shape_cast %812 : vector<2xf32> to vector<2x1xf32>
    %cst_356 = arith.constant 3.200000e+01 : f32
    %814 = vector.broadcast %cst_356 : f32 to vector<2x1xf32>
    %815 = arith.divf %813, %814 : vector<2x1xf32>
    %816 = vector.broadcast %808 : vector<2x1xf32> to vector<2x32xf32>
    %817 = arith.subf %804, %816 : vector<2x32xf32>
    %cst_357 = arith.constant 9.99999974E-6 : f32
    %818 = vector.broadcast %cst_357 : f32 to vector<2x1xf32>
    %819 = arith.addf %815, %818 : vector<2x1xf32>
    %820 = math.rsqrt %819 : vector<2x1xf32>
    %821 = vector.broadcast %820 : vector<2x1xf32> to vector<2x32xf32>
    %822 = arith.mulf %817, %821 : vector<2x32xf32>
    %823 = vector.broadcast %538 : vector<1x32xf32> to vector<2x32xf32>
    %824 = arith.mulf %822, %823 : vector<2x32xf32>
    %825 = vector.broadcast %539 : vector<1x32xf32> to vector<2x32xf32>
    %826 = arith.addf %824, %825 : vector<2x32xf32>
    %827 = arith.truncf %826 : vector<2x32xf32> to vector<2x32xbf16>
    %cst_358 = arith.constant dense<0.000000e+00> : vector<2x32xf32>
    %828 = tpu.matmul %827, %540, %cst_358 {dimension_numbers = #tpu.dot_dimension_numbers<[1], [0], [0], [1], [0, 0, 1, 1], [], []>} : vector<2x32xbf16>, vector<32x32xbf16>, vector<2x32xf32> -> vector<2x32xf32>
    %829 = vector.broadcast %541 : vector<1x32xf32> to vector<2x32xf32>
    %830 = arith.addf %828, %829 : vector<2x32xf32>
    %cst_359 = arith.constant 0.000000e+00 : f32
    %831 = vector.broadcast %cst_359 : f32 to vector<2x32xf32>
    %832 = arith.maximumf %830, %831 : vector<2x32xf32>
    %833 = vector.broadcast %542 : vector<1x32xf32> to vector<2x32xf32>
    %834 = arith.mulf %832, %833 : vector<2x32xf32>
    %cst_360 = arith.constant dense<0.000000e+00> : vector<2xf32>
    %835 = vector.multi_reduction <add>, %834, %cst_360 [1] : vector<2x32xf32> to vector<2xf32>
    %836 = vector.shape_cast %835 : vector<2xf32> to vector<2x1xf32>
    %837 = vector.broadcast %543 : vector<1x1xf32> to vector<2x1xf32>
    %838 = arith.addf %836, %837 : vector<2x1xf32>
    %c0_361 = arith.constant 0 : index
    %c7_362 = arith.constant 7 : index
    %839 = vector.load %arg14[%c0_361, %c7_362] : memref<2x8xf32, #tpu.memory_space<vmem>>, vector<2x1xf32>
    tpu.vector_store %arg14[%c0_361, %c7_362], %838 {strides = array<i32>} : memref<2x8xf32, #tpu.memory_space<vmem>>, vector<2x1xf32>,
    return
  }
  func.func @transform_0(%arg0: i32) -> (i32, i32, i32) {
    %c0_i32 = arith.constant 0 : i32
    %c0_i32_0 = arith.constant 0 : i32
    %c0_i32_1 = arith.constant 0 : i32
    return %c0_i32, %arg0, %c0_i32_0 : i32, i32, i32
  }
  func.func @transform_1(%arg0: i32) -> (i32, i32) {
    %c0_i32 = arith.constant 0 : i32
    %c0_i32_0 = arith.constant 0 : i32
    %c0_i32_1 = arith.constant 0 : i32
    return %c0_i32, %c0_i32_0 : i32, i32
  }
  func.func @transform_2(%arg0: i32) -> (i32, i32) {
    %c0_i32 = arith.constant 0 : i32
    %c0_i32_0 = arith.constant 0 : i32
    %c0_i32_1 = arith.constant 0 : i32
    return %c0_i32, %c0_i32_0 : i32, i32
  }
  func.func @transform_3(%arg0: i32) -> (i32, i32) {
    %c0_i32 = arith.constant 0 : i32
    %c0_i32_0 = arith.constant 0 : i32
    %c0_i32_1 = arith.constant 0 : i32
    return %c0_i32, %c0_i32_0 : i32, i32
  }
  func.func @transform_4(%arg0: i32) -> (i32, i32) {
    %c0_i32 = arith.constant 0 : i32
    %c0_i32_0 = arith.constant 0 : i32
    %c0_i32_1 = arith.constant 0 : i32
    return %c0_i32, %c0_i32_0 : i32, i32
  }
  func.func @transform_5(%arg0: i32) -> (i32, i32) {
    %c0_i32 = arith.constant 0 : i32
    %c0_i32_0 = arith.constant 0 : i32
    %c0_i32_1 = arith.constant 0 : i32
    return %c0_i32, %c0_i32_0 : i32, i32
  }
  func.func @transform_6(%arg0: i32) -> (i32, i32) {
    %c0_i32 = arith.constant 0 : i32
    %c0_i32_0 = arith.constant 0 : i32
    %c0_i32_1 = arith.constant 0 : i32
    return %c0_i32, %c0_i32_0 : i32, i32
  }
  func.func @transform_7(%arg0: i32) -> (i32, i32) {
    %c0_i32 = arith.constant 0 : i32
    %c0_i32_0 = arith.constant 0 : i32
    %c0_i32_1 = arith.constant 0 : i32
    return %c0_i32, %c0_i32_0 : i32, i32
  }
  func.func @transform_8(%arg0: i32) -> (i32, i32) {
    %c0_i32 = arith.constant 0 : i32
    %c0_i32_0 = arith.constant 0 : i32
    %c0_i32_1 = arith.constant 0 : i32
    return %c0_i32, %c0_i32_0 : i32, i32
  }
  func.func @transform_9(%arg0: i32) -> (i32, i32) {
    %c0_i32 = arith.constant 0 : i32
    %c0_i32_0 = arith.constant 0 : i32
    %c0_i32_1 = arith.constant 0 : i32
    return %c0_i32, %c0_i32_0 : i32, i32
  }
  func.func @transform_10(%arg0: i32) -> (i32, i32) {
    %c0_i32 = arith.constant 0 : i32
    %c0_i32_0 = arith.constant 0 : i32
    %c0_i32_1 = arith.constant 0 : i32
    return %c0_i32, %c0_i32_0 : i32, i32
  }
  func.func @transform_11(%arg0: i32) -> (i32, i32) {
    %c0_i32 = arith.constant 0 : i32
    %c0_i32_0 = arith.constant 0 : i32
    %c0_i32_1 = arith.constant 0 : i32
    return %c0_i32, %c0_i32_0 : i32, i32
  }
  func.func @transform_12(%arg0: i32) -> (i32, i32) {
    %c0_i32 = arith.constant 0 : i32
    %c0_i32_0 = arith.constant 0 : i32
    %c0_i32_1 = arith.constant 0 : i32
    return %c0_i32, %c0_i32_0 : i32, i32
  }
  func.func @transform_13(%arg0: i32) -> (i32, i32) {
    %c0_i32 = arith.constant 0 : i32
    %c0_i32_0 = arith.constant 0 : i32
    return %arg0, %c0_i32 : i32, i32
  }
}

</mosaic_0001>

<llo_original>
// kernel: tpu_custom_call.1
$region0: #{tpu_custom_call.1}
  #allocation0 [shape = 'u32[]', space=smem, size = 0x4, offset = 0x4, fixed_abs, tag = 'smem constant byte address 0x4 - core index']
  #allocation1 [shape = 'u32[72,128]{1,0:T(1,128)}', space=vmem, size = 0x9000, scoped, tag = 'internal scratch']
  #allocation2 [shape = 'f32[8,2,128]{2,1,0:T(2,128)}', space=vmem, size = 0x2000, scoped, tag = 'scratch operand']
  #allocation3 [shape = 'f32[8,2,32]{2,1,0:T(2,128)}', space=vmem, size = 0x2000, scoped, tag = 'scratch operand']
  #allocation4 [shape = 'f32[1,1]{1,0:T(1,128)S(1)}', space=vmem, size = 0x200, scoped, tag = 'scoped memory for tpu_custom_call.1']
  %s0 = inlined_call_operand.hbm [shape: f32[8,2,16], index: 0, kind: input, shape index: {}]
  %s1 = inlined_call_operand.hbm [shape: bf16[16,128], index: 1, kind: input, shape index: {}]
  %s2 = inlined_call_operand.hbm [shape: bf16[32,128], index: 2, kind: input, shape index: {}]
  %s3 = inlined_call_operand.vmem [shape: f32[1,128], index: 3, kind: input, shape index: {}]
  %s4 = inlined_call_operand.hbm [shape: bf16[32,128], index: 4, kind: input, shape index: {}]
  %s5 = inlined_call_operand.hbm [shape: bf16[32,128], index: 5, kind: input, shape index: {}]
  %s6 = inlined_call_operand.vmem [shape: f32[1,128], index: 6, kind: input, shape index: {}]
  %s7 = inlined_call_operand.vmem [shape: f32[1,32], index: 7, kind: input, shape index: {}]
  %s8 = inlined_call_operand.vmem [shape: f32[1,32], index: 8, kind: input, shape index: {}]
  %s9 = inlined_call_operand.hbm [shape: bf16[32,32], index: 9, kind: input, shape index: {}]
  %s10 = inlined_call_operand.vmem [shape: f32[1,32], index: 10, kind: input, shape index: {}]
  %s11 = inlined_call_operand.vmem [shape: f32[1,32], index: 11, kind: input, shape index: {}]
  %s12 = inlined_call_operand.<no memory space> [shape: f32[1,1], index: 12, kind: input, shape index: {}]
  %s13 = inlined_call_operand.hbm [shape: f32[2,8], index: 13, kind: output, shape index: {}]
  %s14 = sld [smem:[#allocation0]]
  $region86: #{tpu_custom_call.1} parent=0
    _
  %s16 = ssub.s32 1, %s14
  %s17 = scalar_select 0, %s16, %s14
  %v18 = vstv %s12
  %19 = vst [vmem:[#allocation4] sm:$0x1] %v18
  $region1: #{tpu_custom_call.1} parent=0
    #allocation5 [shape = 'u8[8192]{0}', space=vmem, size = 0x2000, scoped, tag = 'input window, operand 0, single buffered']
    #allocation6 [shape = 's32[1]{0}', space=sflag, size = 0x4, scoped, tag = 'scoped memory for tpu_custom_call.1']
    #allocation7 [shape = 's32[1]{0}', space=sflag, size = 0x4, scoped, tag = 'scoped memory for tpu_custom_call.1']
    #allocation8 [shape = 'u8[4096]{0}', space=vmem, size = 0x1000, scoped, tag = 'input window, operand 1, single buffered']
    #allocation9 [shape = 's32[1]{0}', space=sflag, size = 0x4, scoped, tag = 'scoped memory for tpu_custom_call.1']
    #allocation10 [shape = 'u8[8192]{0}', space=vmem, size = 0x2000, scoped, tag = 'input window, operand 2, single buffered']
    #allocation11 [shape = 'u8[8192]{0}', space=vmem, size = 0x2000, scoped, tag = 'input window, operand 4, single buffered']
    #allocation12 [shape = 's32[1]{0}', space=sflag, size = 0x4, scoped, tag = 'scoped memory for tpu_custom_call.1']
    #allocation13 [shape = 'u8[8192]{0}', space=vmem, size = 0x2000, scoped, tag = 'input window, operand 5, single buffered']
    #allocation14 [shape = 'u8[8192]{0}', space=vmem, size = 0x2000, scoped, tag = 'input window, operand 9, single buffered']
    #allocation15 [shape = 's32[1]{0}', space=sflag, size = 0x4, scoped, tag = 'scoped memory for tpu_custom_call.1']
    #allocation16 [shape = 'u8[1024]{0}', space=vmem, size = 0x400, scoped, tag = 'output window, operand 0, single buffered']
    %20 = vsyncpa [#allocation6], 0
    %21 = vsyncpa [#allocation9], 0
    %22 = vsyncpa [#allocation12], 0
    %23 = vsyncpa [#allocation15], 0
    %24 = vsyncpa [#allocation7], 0
    // Predicated region
    $region2: #{tpu_custom_call.1} parent=1 // pred_check
      _
    $region3: #{tpu_custom_call.1} parent=1 // pred_check_branch
      %26 = sbr.rel (0) target = $region5
    $region4: #{tpu_custom_call.1} parent=1 // pred_region
      %28 = vsyncadd [#allocation6], 0
      %s29 = sshll.u32 %s0, 4
      %s30 = int_to_ptr.hbm [resolvable:$true] %s29
      %s31 = sshll.u32 [#allocation5], 4
      %s32 = int_to_ptr.vmem [resolvable:$true] %s31
      %37 = dma.hbm_to_vmem [thread:$0]  %s30, 256, %s32, [#allocation6], 32, 32, 2
    $region5: #{tpu_custom_call.1} parent=1 // pred_fallthru
      _
    // Predicated region
    $region6: #{tpu_custom_call.1} parent=1 // pred_check
      _
    $region7: #{tpu_custom_call.1} parent=1 // pred_check_branch
      %39 = sbr.rel (0) target = $region9
    $region8: #{tpu_custom_call.1} parent=1 // pred_region
      %41 = vsyncadd [#allocation9], 0
      %s42 = sshll.u32 %s1, 4
      %s43 = int_to_ptr.hbm [resolvable:$true] %s42
      %s44 = sshll.u32 [#allocation8], 4
      %s45 = int_to_ptr.vmem [resolvable:$true] %s44
      %50 = dma.hbm_to_vmem [thread:$0]  %s43, 128, %s45, [#allocation9], 64, 64, 4
    $region9: #{tpu_custom_call.1} parent=1 // pred_fallthru
      _
    // Predicated region
    $region10: #{tpu_custom_call.1} parent=1 // pred_check
      _
    $region11: #{tpu_custom_call.1} parent=1 // pred_check_branch
      %52 = sbr.rel (0) target = $region13
    $region12: #{tpu_custom_call.1} parent=1 // pred_region
      %54 = vsyncadd [#allocation9], 0
      %s55 = sshll.u32 %s2, 4
      %s56 = int_to_ptr.hbm [resolvable:$true] %s55
      %s57 = sshll.u32 [#allocation10], 4
      %s58 = int_to_ptr.vmem [resolvable:$true] %s57
      %63 = dma.hbm_to_vmem [thread:$0]  %s56, 256, %s58, [#allocation9], 64, 64, 4
    $region13: #{tpu_custom_call.1} parent=1 // pred_fallthru
      _
    // Predicated region
    $region14: #{tpu_custom_call.1} parent=1 // pred_check
      _
    $region15: #{tpu_custom_call.1} parent=1 // pred_check_branch
      %65 = sbr.rel (0) target = $region17
    $region16: #{tpu_custom_call.1} parent=1 // pred_region
      _
    $region17: #{tpu_custom_call.1} parent=1 // pred_fallthru
      _
    // Predicated region
    $region18: #{tpu_custom_call.1} parent=1 // pred_check
      _
    $region19: #{tpu_custom_call.1} parent=1 // pred_check_branch
      %67 = sbr.rel (0) target = $region21
    $region20: #{tpu_custom_call.1} parent=1 // pred_region
      %69 = vsyncadd [#allocation12], 0
      %s70 = sshll.u32 %s4, 4
      %s71 = int_to_ptr.hbm [resolvable:$true] %s70
      %s72 = sshll.u32 [#allocation11], 4
      %s73 = int_to_ptr.vmem [resolvable:$true] %s72
      %78 = dma.hbm_to_vmem [thread:$0]  %s71, 256, %s73, [#allocation12], 64, 64, 4
    $region21: #{tpu_custom_call.1} parent=1 // pred_fallthru
      _
    // Predicated region
    $region22: #{tpu_custom_call.1} parent=1 // pred_check
      _
    $region23: #{tpu_custom_call.1} parent=1 // pred_check_branch
      %80 = sbr.rel (0) target = $region25
    $region24: #{tpu_custom_call.1} parent=1 // pred_region
      %82 = vsyncadd [#allocation12], 0
      %s83 = sshll.u32 %s5, 4
      %s84 = int_to_ptr.hbm [resolvable:$true] %s83
      %s85 = sshll.u32 [#allocation13], 4
      %s86 = int_to_ptr.vmem [resolvable:$true] %s85
      %91 = dma.hbm_to_vmem [thread:$0]  %s84, 256, %s86, [#allocation12], 64, 64, 4
    $region25: #{tpu_custom_call.1} parent=1 // pred_fallthru
      _
    // Predicated region
    $region26: #{tpu_custom_call.1} parent=1 // pred_check
      _
    $region27: #{tpu_custom_call.1} parent=1 // pred_check_branch
      %93 = sbr.rel (0) target = $region29
    $region28: #{tpu_custom_call.1} parent=1 // pred_region
      _
    $region29: #{tpu_custom_call.1} parent=1 // pred_fallthru
      _
    // Predicated region
    $region30: #{tpu_custom_call.1} parent=1 // pred_check
      _
    $region31: #{tpu_custom_call.1} parent=1 // pred_check_branch
      %95 = sbr.rel (0) target = $region33
    $region32: #{tpu_custom_call.1} parent=1 // pred_region
      _
    $region33: #{tpu_custom_call.1} parent=1 // pred_fallthru
      _
    // Predicated region
    $region34: #{tpu_custom_call.1} parent=1 // pred_check
      _
    $region35: #{tpu_custom_call.1} parent=1 // pred_check_branch
      %97 = sbr.rel (0) target = $region37
    $region36: #{tpu_custom_call.1} parent=1 // pred_region
      _
    $region37: #{tpu_custom_call.1} parent=1 // pred_fallthru
      _
    // Predicated region
    $region38: #{tpu_custom_call.1} parent=1 // pred_check
      _
    $region39: #{tpu_custom_call.1} parent=1 // pred_check_branch
      %99 = sbr.rel (0) target = $region41
    $region40: #{tpu_custom_call.1} parent=1 // pred_region
      %101 = vsyncadd [#allocation15], 0
      %s102 = sshll.u32 %s9, 4
      %s103 = int_to_ptr.hbm [resolvable:$true] %s102
      %s104 = sshll.u32 [#allocation14], 4
      %s105 = int_to_ptr.vmem [resolvable:$true] %s104
      %110 = dma.hbm_to_vmem [thread:$0]  %s103, 256, %s105, [#allocation15], 64, 64, 4
    $region41: #{tpu_custom_call.1} parent=1 // pred_fallthru
      _
    // Predicated region
    $region42: #{tpu_custom_call.1} parent=1 // pred_check
      _
    $region43: #{tpu_custom_call.1} parent=1 // pred_check_branch
      %112 = sbr.rel (0) target = $region45
    $region44: #{tpu_custom_call.1} parent=1 // pred_region
      _
    $region45: #{tpu_custom_call.1} parent=1 // pred_fallthru
      _
    // Predicated region
    $region46: #{tpu_custom_call.1} parent=1 // pred_check
      _
    $region47: #{tpu_custom_call.1} parent=1 // pred_check_branch
      %114 = sbr.rel (0) target = $region49
    $region48: #{tpu_custom_call.1} parent=1 // pred_region
      _
    $region49: #{tpu_custom_call.1} parent=1 // pred_fallthru
      _
    // Predicated region
    $region50: #{tpu_custom_call.1} parent=1 // pred_check
      _
    $region51: #{tpu_custom_call.1} parent=1 // pred_check_branch
      %116 = sbr.rel (0) target = $region53
    $region52: #{tpu_custom_call.1} parent=1 // pred_region
      _
    $region53: #{tpu_custom_call.1} parent=1 // pred_fallthru
      _
    // Predicated region
    $region54: #{tpu_custom_call.1} parent=1 // pred_check
      _
    $region55: #{tpu_custom_call.1} parent=1 // pred_check_branch
      %118 = sbr.rel (0) target = $region57
    $region56: #{tpu_custom_call.1} parent=1 // pred_region
      %120 = dma.done [#allocation6], 256
    $region57: #{tpu_custom_call.1} parent=1 // pred_fallthru
      _
    // Predicated region
    $region58: #{tpu_custom_call.1} parent=1 // pred_check
      _
    $region59: #{tpu_custom_call.1} parent=1 // pred_check_branch
      %122 = sbr.rel (0) target = $region61
    $region60: #{tpu_custom_call.1} parent=1 // pred_region
      %124 = dma.done [#allocation9], 128
    $region61: #{tpu_custom_call.1} parent=1 // pred_fallthru
      _
    // Predicated region
    $region62: #{tpu_custom_call.1} parent=1 // pred_check
      _
    $region63: #{tpu_custom_call.1} parent=1 // pred_check_branch
      %126 = sbr.rel (0) target = $region65
    $region64: #{tpu_custom_call.1} parent=1 // pred_region
      %128 = dma.done [#allocation9], 256
    $region65: #{tpu_custom_call.1} parent=1 // pred_fallthru
      _
    // Predicated region
    $region66: #{tpu_custom_call.1} parent=1 // pred_check
      _
    $region67: #{tpu_custom_call.1} parent=1 // pred_check_branch
      %130 = sbr.rel (0) target = $region69
    $region68: #{tpu_custom_call.1} parent=1 // pred_region
      %132 = dma.done [#allocation12], 256
    $region69: #{tpu_custom_call.1} parent=1 // pred_fallthru
      _
    // Predicated region
    $region70: #{tpu_custom_call.1} parent=1 // pred_check
      _
    $region71: #{tpu_custom_call.1} parent=1 // pred_check_branch
      %134 = sbr.rel (0) target = $region73
    $region72: #{tpu_custom_call.1} parent=1 // pred_region
      %136 = dma.done [#allocation12], 256
    $region73: #{tpu_custom_call.1} parent=1 // pred_fallthru
      _
    // Predicated region
    $region74: #{tpu_custom_call.1} parent=1 // pred_check
      _
    $region75: #{tpu_custom_call.1} parent=1 // pred_check_branch
      %138 = sbr.rel (0) target = $region77
    $region76: #{tpu_custom_call.1} parent=1 // pred_region
      %140 = dma.done [#allocation15], 256
    $region77: #{tpu_custom_call.1} parent=1 // pred_fallthru
      _
    %v142 = vld [vmem:[#allocation8] sm:$0xf]
    %v143 = vld [vmem:[#allocation8 + $0x4] sm:$0xf]
    %v144 = vld [vmem:[#allocation10] sm:$0xf]
    %v145 = vld [vmem:[#allocation10 + $0x4] sm:$0xf]
    %v146 = vld [vmem:[#allocation10 + $0x8] sm:$0xf]
    %v147 = vld [vmem:[#allocation10 + $0xc] sm:$0xf]
    %v148 = vld [vmem:[%s3] sm:$0x1]
    %v149 = vld [vmem:[#allocation5] sm:$0x3]
    %v150 = vpack.c.bf16 %v149, %v149
    %v152 = vperm.slane %v148, 0
    %v156 = vunpack.c.l.b16 %v142
    %v157 = vunpack.c.l.b16 %v143
    %v158 = vpack.c.b16 %v157, %v156
    %vm160 = vcmask 130048
    %v162 = vsel %vm160, %v150, 0
    %164 = vmatpush.bf16.msra.mxu0 0
    %165 = vmatpush.bf16.msra.mxu0 0
    %166 = vmatpush.bf16.msra.mxu0 0
    %167 = vmatpush.bf16.msra.mxu0 0
    %168 = vmatpush.bf16.msra.mxu0 0
    %169 = vmatpush.bf16.msra.mxu0 0
    %170 = vmatpush.bf16.msra.mxu0 0
    %171 = vmatpush.bf16.msra.mxu0 %v158
    %172 = vmatmul.bf16.gmra.mxu0 %v162
    %v173 = vpop.f32.mrf.mxu0
    %v174 = vadd.f32 %v152, %v173
    %v175 = vpop.f32.mrf.mxu0
    %176 = vdwg.mxu0
    %177 = vst [vmem:[#allocation2] sm:$0x3] %v174
    %s178 = scalar_lea.vmem [#allocation5], 2
    %v179 = vld [vmem:[%s178] sm:$0x3]
    %v180 = vpack.c.bf16 %v179, %v179
    %v182 = vsel %vm160, %v180, 0
    %184 = vmatpush.bf16.msra.mxu0 0
    %185 = vmatpush.bf16.msra.mxu0 0
    %186 = vmatpush.bf16.msra.mxu0 0
    %187 = vmatpush.bf16.msra.mxu0 0
    %188 = vmatpush.bf16.msra.mxu0 0
    %189 = vmatpush.bf16.msra.mxu0 0
    %190 = vmatpush.bf16.msra.mxu0 0
    %191 = vmatpush.bf16.msra.mxu0 %v158
    %192 = vmatmul.bf16.gmra.mxu0 %v182
    %v193 = vpop.f32.mrf.mxu0
    %v194 = vadd.f32 %v152, %v193
    %v195 = vpop.f32.mrf.mxu0
    %196 = vdwg.mxu0
    %s197 = scalar_lea.vmem [#allocation2], 2
    %198 = vst [vmem:[%s197] sm:$0x3] %v194
    %s199 = scalar_lea.vmem [#allocation5], 4
    %v200 = vld [vmem:[%s199] sm:$0x3]
    %v201 = vpack.c.bf16 %v200, %v200
    %v203 = vsel %vm160, %v201, 0
    %205 = vmatpush.bf16.msra.mxu0 0
    %206 = vmatpush.bf16.msra.mxu0 0
    %207 = vmatpush.bf16.msra.mxu0 0
    %208 = vmatpush.bf16.msra.mxu0 0
    %209 = vmatpush.bf16.msra.mxu0 0
    %210 = vmatpush.bf16.msra.mxu0 0
    %211 = vmatpush.bf16.msra.mxu0 0
    %212 = vmatpush.bf16.msra.mxu0 %v158
    %213 = vmatmul.bf16.gmra.mxu0 %v203
    %v214 = vpop.f32.mrf.mxu0
    %v215 = vadd.f32 %v152, %v214
    %v216 = vpop.f32.mrf.mxu0
    %217 = vdwg.mxu0
    %s218 = scalar_lea.vmem [#allocation2], 4
    %219 = vst [vmem:[%s218] sm:$0x3] %v215
    %s220 = scalar_lea.vmem [#allocation5], 6
    %v221 = vld [vmem:[%s220] sm:$0x3]
    %v222 = vpack.c.bf16 %v221, %v221
    %v224 = vsel %vm160, %v222, 0
    %226 = vmatpush.bf16.msra.mxu0 0
    %227 = vmatpush.bf16.msra.mxu0 0
    %228 = vmatpush.bf16.msra.mxu0 0
    %229 = vmatpush.bf16.msra.mxu0 0
    %230 = vmatpush.bf16.msra.mxu0 0
    %231 = vmatpush.bf16.msra.mxu0 0
    %232 = vmatpush.bf16.msra.mxu0 0
    %233 = vmatpush.bf16.msra.mxu0 %v158
    %234 = vmatmul.bf16.gmra.mxu0 %v224
    %v235 = vpop.f32.mrf.mxu0
    %v236 = vadd.f32 %v152, %v235
    %v237 = vpop.f32.mrf.mxu0
    %238 = vdwg.mxu0
    %s239 = scalar_lea.vmem [#allocation2], 6
    %240 = vst [vmem:[%s239] sm:$0x3] %v236
    %s241 = scalar_lea.vmem [#allocation5], 8
    %v242 = vld [vmem:[%s241] sm:$0x3]
    %v243 = vpack.c.bf16 %v242, %v242
    %v245 = vsel %vm160, %v243, 0
    %247 = vmatpush.bf16.msra.mxu0 0
    %248 = vmatpush.bf16.msra.mxu0 0
    %249 = vmatpush.bf16.msra.mxu0 0
    %250 = vmatpush.bf16.msra.mxu0 0
    %251 = vmatpush.bf16.msra.mxu0 0
    %252 = vmatpush.bf16.msra.mxu0 0
    %253 = vmatpush.bf16.msra.mxu0 0
    %254 = vmatpush.bf16.msra.mxu0 %v158
    %255 = vmatmul.bf16.gmra.mxu0 %v245
    %v256 = vpop.f32.mrf.mxu0
    %v257 = vadd.f32 %v152, %v256
    %v258 = vpop.f32.mrf.mxu0
    %259 = vdwg.mxu0
    %s260 = scalar_lea.vmem [#allocation2], 8
    %261 = vst [vmem:[%s260] sm:$0x3] %v257
    %s262 = scalar_lea.vmem [#allocation5], 10
    %v263 = vld [vmem:[%s262] sm:$0x3]
    %v264 = vpack.c.bf16 %v263, %v263
    %v266 = vsel %vm160, %v264, 0
    %268 = vmatpush.bf16.msra.mxu0 0
    %269 = vmatpush.bf16.msra.mxu0 0
    %270 = vmatpush.bf16.msra.mxu0 0
    %271 = vmatpush.bf16.msra.mxu0 0
    %272 = vmatpush.bf16.msra.mxu0 0
    %273 = vmatpush.bf16.msra.mxu0 0
    %274 = vmatpush.bf16.msra.mxu0 0
    %275 = vmatpush.bf16.msra.mxu0 %v158
    %276 = vmatmul.bf16.gmra.mxu0 %v266
    %v277 = vpop.f32.mrf.mxu0
    %v278 = vadd.f32 %v152, %v277
    %v279 = vpop.f32.mrf.mxu0
    %280 = vdwg.mxu0
    %s281 = scalar_lea.vmem [#allocation2], 10
    %282 = vst [vmem:[%s281] sm:$0x3] %v278
    %s283 = scalar_lea.vmem [#allocation5], 12
    %v284 = vld [vmem:[%s283] sm:$0x3]
    %v285 = vpack.c.bf16 %v284, %v284
    %v287 = vsel %vm160, %v285, 0
    %289 = vmatpush.bf16.msra.mxu0 0
    %290 = vmatpush.bf16.msra.mxu0 0
    %291 = vmatpush.bf16.msra.mxu0 0
    %292 = vmatpush.bf16.msra.mxu0 0
    %293 = vmatpush.bf16.msra.mxu0 0
    %294 = vmatpush.bf16.msra.mxu0 0
    %295 = vmatpush.bf16.msra.mxu0 0
    %296 = vmatpush.bf16.msra.mxu0 %v158
    %297 = vmatmul.bf16.gmra.mxu0 %v287
    %v298 = vpop.f32.mrf.mxu0
    %v299 = vadd.f32 %v152, %v298
    %v300 = vpop.f32.mrf.mxu0
    %301 = vdwg.mxu0
    %s302 = scalar_lea.vmem [#allocation2], 12
    %303 = vst [vmem:[%s302] sm:$0x3] %v299
    %s304 = scalar_lea.vmem [#allocation5], 14
    %v305 = vld [vmem:[%s304] sm:$0x3]
    %v306 = vpack.c.bf16 %v305, %v305
    %v308 = vsel %vm160, %v306, 0
    %310 = vmatpush.bf16.msra.mxu0 0
    %311 = vmatpush.bf16.msra.mxu0 0
    %312 = vmatpush.bf16.msra.mxu0 0
    %313 = vmatpush.bf16.msra.mxu0 0
    %314 = vmatpush.bf16.msra.mxu0 0
    %315 = vmatpush.bf16.msra.mxu0 0
    %316 = vmatpush.bf16.msra.mxu0 0
    %317 = vmatpush.bf16.msra.mxu0 %v158
    %318 = vmatmul.bf16.gmra.mxu0 %v308
    %v319 = vpop.f32.mrf.mxu0
    %v320 = vadd.f32 %v152, %v319
    %v321 = vpop.f32.mrf.mxu0
    %322 = vdwg.mxu0
    %s323 = scalar_lea.vmem [#allocation2], 14
    %324 = vst [vmem:[%s323] sm:$0x3] %v320
    %v329 = vunpack.c.l.b16 %v144
    %v330 = vunpack.c.l.b16 %v145
    %v331 = vunpack.c.l.b16 %v146
    %v332 = vunpack.c.l.b16 %v147
    %v333 = vpack.c.b16 %v330, %v329
    %v334 = vpack.c.b16 %v332, %v331
    %vm337 = vcmask 261120
    %v339 = vsel %vm337, 0, 0
    %341 = vmatpush.bf16.msra.mxu0 0
    %342 = vmatpush.bf16.msra.mxu0 0
    %343 = vmatpush.bf16.msra.mxu0 0
    %344 = vmatpush.bf16.msra.mxu0 0
    %345 = vmatpush.bf16.msra.mxu0 0
    %346 = vmatpush.bf16.msra.mxu0 0
    %347 = vmatpush.bf16.msra.mxu0 %v334
    %348 = vmatpush.bf16.msra.mxu0 %v333
    %349 = vmatmul.bf16.gmra.mxu0 %v339
    %v350 = vpop.f32.mrf.mxu0
    %v351 = vadd.f32 0.0, %v350
    %v352 = vpop.f32.mrf.mxu0
    %353 = vdwg.mxu0
    %v354 = vld [vmem:[#allocation2] sm:$0x3]
    %v355 = vadd.f32 %v354, %v351
    %v356 = vxor.u32 %v355, 2147483648
    %v357 = vmul.f32 %v356, 1.442695
    %v358 = vpow.pop %v357
    %v359 = vadd.f32 %v358, 1.0
    %v360 = vrcp.pop %v359
    %v361 = vmul.f32 %v359, %v360
    %v362 = vsub.f32 1.0, %v361
    %v363 = vmul.f32 %v360, %v362
    %v364 = vadd.f32 %v360, %v363
    %vm365 = vweird.f32 %v359
    %vm366 = vweird.f32 %v360
    %vm367 = vmor %vm365, %vm366
    %v368 = vsel %vm367, %v360, %v364
    %v369 = vand.u32 2147483647, %v359
    %vm370 = vcmp.eq.f32.partialorder %v369, 8.507059e+37
    %v371 = vand.u32 %v359, 2147483648
    %v372 = vor.u32 1.1754944e-38, %v371
    %v373 = vsel %vm370, %v372, %v368
    %v374 = vmul.f32 1.0, %v373
    %v375 = vtanh.pop %v355
    %v376 = vmul.f32 %v374, 0.0
    %378 = vrot.lane.b32.xlu0 %v375, 32
    %v379 = vpop.permute.xlu0 %378
    %v381 = vmul.f32 %v374, %v379
    %383 = vrot.lane.b32.xlu0 %v381, 32
    %v384 = vpop.permute.xlu0 %383
    %v386 = vadd.f32 %v376, %v384
    %v387 = vtanh.pop %v386
    %389 = vrot.lane.b32.xlu0 %v387, 32
    %v390 = vpop.permute.xlu0 %389
    %v392 = vmul.f32 %v374, %v390
    %394 = vrot.lane.b32.xlu0 %v392, 64
    %v395 = vpop.permute.xlu0 %394
    %vm397 = vcmask 254976
    %398 = vst.msk [vmem:[#allocation3] sm:$0x3] %vm397, %v395
    %v399 = vpack.c.bf16 %v392, %v392
    %401 = vrot.lane.b32.xlu0 %v399, 64
    %v402 = vpop.permute.xlu0 %401
    %v404 = vsel %vm337, %v402, 0
    %406 = vmatpush.bf16.msra.mxu0 0
    %407 = vmatpush.bf16.msra.mxu0 0
    %408 = vmatpush.bf16.msra.mxu0 0
    %409 = vmatpush.bf16.msra.mxu0 0
    %410 = vmatpush.bf16.msra.mxu0 0
    %411 = vmatpush.bf16.msra.mxu0 0
    %412 = vmatpush.bf16.msra.mxu0 %v334
    %413 = vmatpush.bf16.msra.mxu0 %v333
    %414 = vmatmul.bf16.gmra.mxu0 %v404
    %v415 = vpop.f32.mrf.mxu0
    %v416 = vadd.f32 0.0, %v415
    %v417 = vpop.f32.mrf.mxu0
    %418 = vdwg.mxu0
    %v419 = vld [vmem:[%s197] sm:$0x3]
    %v420 = vadd.f32 %v419, %v416
    %v421 = vxor.u32 %v420, 2147483648
    %v422 = vmul.f32 %v421, 1.442695
    %v423 = vpow.pop %v422
    %v424 = vadd.f32 %v423, 1.0
    %v425 = vrcp.pop %v424
    %v426 = vmul.f32 %v424, %v425
    %v427 = vsub.f32 1.0, %v426
    %v428 = vmul.f32 %v425, %v427
    %v429 = vadd.f32 %v425, %v428
    %vm430 = vweird.f32 %v424
    %vm431 = vweird.f32 %v425
    %vm432 = vmor %vm430, %vm431
    %v433 = vsel %vm432, %v425, %v429
    %v434 = vand.u32 2147483647, %v424
    %vm435 = vcmp.eq.f32.partialorder %v434, 8.507059e+37
    %v436 = vand.u32 %v424, 2147483648
    %v437 = vor.u32 1.1754944e-38, %v436
    %v438 = vsel %vm435, %v437, %v433
    %v439 = vmul.f32 1.0, %v438
    %v440 = vtanh.pop %v420
    %v441 = vmul.f32 %v439, %v386
    %443 = vrot.lane.b32.xlu0 %v440, 32
    %v444 = vpop.permute.xlu0 %443
    %v446 = vmul.f32 %v439, %v444
    %448 = vrot.lane.b32.xlu0 %v446, 32
    %v449 = vpop.permute.xlu0 %448
    %v451 = vadd.f32 %v441, %v449
    %v452 = vtanh.pop %v451
    %454 = vrot.lane.b32.xlu0 %v452, 32
    %v455 = vpop.permute.xlu0 %454
    %v457 = vmul.f32 %v439, %v455
    %459 = vrot.lane.b32.xlu0 %v457, 64
    %v460 = vpop.permute.xlu0 %459
    %s462 = scalar_lea.vmem [#allocation3], 2
    %463 = vst.msk [vmem:[%s462] sm:$0x3] %vm397, %v460
    %v464 = vpack.c.bf16 %v457, %v457
    %466 = vrot.lane.b32.xlu0 %v464, 64
    %v467 = vpop.permute.xlu0 %466
    %v469 = vsel %vm337, %v467, 0
    %471 = vmatpush.bf16.msra.mxu0 0
    %472 = vmatpush.bf16.msra.mxu0 0
    %473 = vmatpush.bf16.msra.mxu0 0
    %474 = vmatpush.bf16.msra.mxu0 0
    %475 = vmatpush.bf16.msra.mxu0 0
    %476 = vmatpush.bf16.msra.mxu0 0
    %477 = vmatpush.bf16.msra.mxu0 %v334
    %478 = vmatpush.bf16.msra.mxu0 %v333
    %479 = vmatmul.bf16.gmra.mxu0 %v469
    %v480 = vpop.f32.mrf.mxu0
    %v481 = vadd.f32 0.0, %v480
    %v482 = vpop.f32.mrf.mxu0
    %483 = vdwg.mxu0
    %v484 = vld [vmem:[%s218] sm:$0x3]
    %v485 = vadd.f32 %v484, %v481
    %v486 = vxor.u32 %v485, 2147483648
    %v487 = vmul.f32 %v486, 1.442695
    %v488 = vpow.pop %v487
    %v489 = vadd.f32 %v488, 1.0
    %v490 = vrcp.pop %v489
    %v491 = vmul.f32 %v489, %v490
    %v492 = vsub.f32 1.0, %v491
    %v493 = vmul.f32 %v490, %v492
    %v494 = vadd.f32 %v490, %v493
    %vm495 = vweird.f32 %v489
    %vm496 = vweird.f32 %v490
    %vm497 = vmor %vm495, %vm496
    %v498 = vsel %vm497, %v490, %v494
    %v499 = vand.u32 2147483647, %v489
    %vm500 = vcmp.eq.f32.partialorder %v499, 8.507059e+37
    %v501 = vand.u32 %v489, 2147483648
    %v502 = vor.u32 1.1754944e-38, %v501
    %v503 = vsel %vm500, %v502, %v498
    %v504 = vmul.f32 1.0, %v503
    %v505 = vtanh.pop %v485
    %v506 = vmul.f32 %v504, %v451
    %508 = vrot.lane.b32.xlu0 %v505, 32
    %v509 = vpop.permute.xlu0 %508
    %v511 = vmul.f32 %v504, %v509
    %513 = vrot.lane.b32.xlu0 %v511, 32
    %v514 = vpop.permute.xlu0 %513
    %v516 = vadd.f32 %v506, %v514
    %v517 = vtanh.pop %v516
    %519 = vrot.lane.b32.xlu0 %v517, 32
    %v520 = vpop.permute.xlu0 %519
    %v522 = vmul.f32 %v504, %v520
    %524 = vrot.lane.b32.xlu0 %v522, 64
    %v525 = vpop.permute.xlu0 %524
    %s527 = scalar_lea.vmem [#allocation3], 4
    %528 = vst.msk [vmem:[%s527] sm:$0x3] %vm397, %v525
    %v529 = vpack.c.bf16 %v522, %v522
    %531 = vrot.lane.b32.xlu0 %v529, 64
    %v532 = vpop.permute.xlu0 %531
    %v534 = vsel %vm337, %v532, 0
    %536 = vmatpush.bf16.msra.mxu0 0
    %537 = vmatpush.bf16.msra.mxu0 0
    %538 = vmatpush.bf16.msra.mxu0 0
    %539 = vmatpush.bf16.msra.mxu0 0
    %540 = vmatpush.bf16.msra.mxu0 0
    %541 = vmatpush.bf16.msra.mxu0 0
    %542 = vmatpush.bf16.msra.mxu0 %v334
    %543 = vmatpush.bf16.msra.mxu0 %v333
    %544 = vmatmul.bf16.gmra.mxu0 %v534
    %v545 = vpop.f32.mrf.mxu0
    %v546 = vadd.f32 0.0, %v545
    %v547 = vpop.f32.mrf.mxu0
    %548 = vdwg.mxu0
    %v549 = vld [vmem:[%s239] sm:$0x3]
    %v550 = vadd.f32 %v549, %v546
    %v551 = vxor.u32 %v550, 2147483648
    %v552 = vmul.f32 %v551, 1.442695
    %v553 = vpow.pop %v552
    %v554 = vadd.f32 %v553, 1.0
    %v555 = vrcp.pop %v554
    %v556 = vmul.f32 %v554, %v555
    %v557 = vsub.f32 1.0, %v556
    %v558 = vmul.f32 %v555, %v557
    %v559 = vadd.f32 %v555, %v558
    %vm560 = vweird.f32 %v554
    %vm561 = vweird.f32 %v555
    %vm562 = vmor %vm560, %vm561
    %v563 = vsel %vm562, %v555, %v559
    %v564 = vand.u32 2147483647, %v554
    %vm565 = vcmp.eq.f32.partialorder %v564, 8.507059e+37
    %v566 = vand.u32 %v554, 2147483648
    %v567 = vor.u32 1.1754944e-38, %v566
    %v568 = vsel %vm565, %v567, %v563
    %v569 = vmul.f32 1.0, %v568
    %v570 = vtanh.pop %v550
    %v571 = vmul.f32 %v569, %v516
    %573 = vrot.lane.b32.xlu0 %v570, 32
    %v574 = vpop.permute.xlu0 %573
    %v576 = vmul.f32 %v569, %v574
    %578 = vrot.lane.b32.xlu0 %v576, 32
    %v579 = vpop.permute.xlu0 %578
    %v581 = vadd.f32 %v571, %v579
    %v582 = vtanh.pop %v581
    %584 = vrot.lane.b32.xlu0 %v582, 32
    %v585 = vpop.permute.xlu0 %584
    %v587 = vmul.f32 %v569, %v585
    %589 = vrot.lane.b32.xlu0 %v587, 64
    %v590 = vpop.permute.xlu0 %589
    %s592 = scalar_lea.vmem [#allocation3], 6
    %593 = vst.msk [vmem:[%s592] sm:$0x3] %vm397, %v590
    %v594 = vpack.c.bf16 %v587, %v587
    %596 = vrot.lane.b32.xlu0 %v594, 64
    %v597 = vpop.permute.xlu0 %596
    %v599 = vsel %vm337, %v597, 0
    %601 = vmatpush.bf16.msra.mxu0 0
    %602 = vmatpush.bf16.msra.mxu0 0
    %603 = vmatpush.bf16.msra.mxu0 0
    %604 = vmatpush.bf16.msra.mxu0 0
    %605 = vmatpush.bf16.msra.mxu0 0
    %606 = vmatpush.bf16.msra.mxu0 0
    %607 = vmatpush.bf16.msra.mxu0 %v334
    %608 = vmatpush.bf16.msra.mxu0 %v333
    %609 = vmatmul.bf16.gmra.mxu0 %v599
    %v610 = vpop.f32.mrf.mxu0
    %v611 = vadd.f32 0.0, %v610
    %v612 = vpop.f32.mrf.mxu0
    %613 = vdwg.mxu0
    %v614 = vld [vmem:[%s260] sm:$0x3]
    %v615 = vadd.f32 %v614, %v611
    %v616 = vxor.u32 %v615, 2147483648
    %v617 = vmul.f32 %v616, 1.442695
    %v618 = vpow.pop %v617
    %v619 = vadd.f32 %v618, 1.0
    %v620 = vrcp.pop %v619
    %v621 = vmul.f32 %v619, %v620
    %v622 = vsub.f32 1.0, %v621
    %v623 = vmul.f32 %v620, %v622
    %v624 = vadd.f32 %v620, %v623
    %vm625 = vweird.f32 %v619
    %vm626 = vweird.f32 %v620
    %vm627 = vmor %vm625, %vm626
    %v628 = vsel %vm627, %v620, %v624
    %v629 = vand.u32 2147483647, %v619
    %vm630 = vcmp.eq.f32.partialorder %v629, 8.507059e+37
    %v631 = vand.u32 %v619, 2147483648
    %v632 = vor.u32 1.1754944e-38, %v631
    %v633 = vsel %vm630, %v632, %v628
    %v634 = vmul.f32 1.0, %v633
    %v635 = vtanh.pop %v615
    %v636 = vmul.f32 %v634, %v581
    %638 = vrot.lane.b32.xlu0 %v635, 32
    %v639 = vpop.permute.xlu0 %638
    %v641 = vmul.f32 %v634, %v639
    %643 = vrot.lane.b32.xlu0 %v641, 32
    %v644 = vpop.permute.xlu0 %643
    %v646 = vadd.f32 %v636, %v644
    %v647 = vtanh.pop %v646
    %649 = vrot.lane.b32.xlu0 %v647, 32
    %v650 = vpop.permute.xlu0 %649
    %v652 = vmul.f32 %v634, %v650
    %654 = vrot.lane.b32.xlu0 %v652, 64
    %v655 = vpop.permute.xlu0 %654
    %s657 = scalar_lea.vmem [#allocation3], 8
    %658 = vst.msk [vmem:[%s657] sm:$0x3] %vm397, %v655
    %v659 = vpack.c.bf16 %v652, %v652
    %661 = vrot.lane.b32.xlu0 %v659, 64
    %v662 = vpop.permute.xlu0 %661
    %v664 = vsel %vm337, %v662, 0
    %666 = vmatpush.bf16.msra.mxu0 0
    %667 = vmatpush.bf16.msra.mxu0 0
    %668 = vmatpush.bf16.msra.mxu0 0
    %669 = vmatpush.bf16.msra.mxu0 0
    %670 = vmatpush.bf16.msra.mxu0 0
    %671 = vmatpush.bf16.msra.mxu0 0
    %672 = vmatpush.bf16.msra.mxu0 %v334
    %673 = vmatpush.bf16.msra.mxu0 %v333
    %674 = vmatmul.bf16.gmra.mxu0 %v664
    %v675 = vpop.f32.mrf.mxu0
    %v676 = vadd.f32 0.0, %v675
    %v677 = vpop.f32.mrf.mxu0
    %678 = vdwg.mxu0
    %v679 = vld [vmem:[%s281] sm:$0x3]
    %v680 = vadd.f32 %v679, %v676
    %v681 = vxor.u32 %v680, 2147483648
    %v682 = vmul.f32 %v681, 1.442695
    %v683 = vpow.pop %v682
    %v684 = vadd.f32 %v683, 1.0
    %v685 = vrcp.pop %v684
    %v686 = vmul.f32 %v684, %v685
    %v687 = vsub.f32 1.0, %v686
    %v688 = vmul.f32 %v685, %v687
    %v689 = vadd.f32 %v685, %v688
    %vm690 = vweird.f32 %v684
    %vm691 = vweird.f32 %v685
    %vm692 = vmor %vm690, %vm691
    %v693 = vsel %vm692, %v685, %v689
    %v694 = vand.u32 2147483647, %v684
    %vm695 = vcmp.eq.f32.partialorder %v694, 8.507059e+37
    %v696 = vand.u32 %v684, 2147483648
    %v697 = vor.u32 1.1754944e-38, %v696
    %v698 = vsel %vm695, %v697, %v693
    %v699 = vmul.f32 1.0, %v698
    %v700 = vtanh.pop %v680
    %v701 = vmul.f32 %v699, %v646
    %703 = vrot.lane.b32.xlu0 %v700, 32
    %v704 = vpop.permute.xlu0 %703
    %v706 = vmul.f32 %v699, %v704
    %708 = vrot.lane.b32.xlu0 %v706, 32
    %v709 = vpop.permute.xlu0 %708
    %v711 = vadd.f32 %v701, %v709
    %v712 = vtanh.pop %v711
    %714 = vrot.lane.b32.xlu0 %v712, 32
    %v715 = vpop.permute.xlu0 %714
    %v717 = vmul.f32 %v699, %v715
    %719 = vrot.lane.b32.xlu0 %v717, 64
    %v720 = vpop.permute.xlu0 %719
    %s722 = scalar_lea.vmem [#allocation3], 10
    %723 = vst.msk [vmem:[%s722] sm:$0x3] %vm397, %v720
    %v724 = vpack.c.bf16 %v717, %v717
    %726 = vrot.lane.b32.xlu0 %v724, 64
    %v727 = vpop.permute.xlu0 %726
    %v729 = vsel %vm337, %v727, 0
    %731 = vmatpush.bf16.msra.mxu0 0
    %732 = vmatpush.bf16.msra.mxu0 0
    %733 = vmatpush.bf16.msra.mxu0 0
    %734 = vmatpush.bf16.msra.mxu0 0
    %735 = vmatpush.bf16.msra.mxu0 0
    %736 = vmatpush.bf16.msra.mxu0 0
    %737 = vmatpush.bf16.msra.mxu0 %v334
    %738 = vmatpush.bf16.msra.mxu0 %v333
    %739 = vmatmul.bf16.gmra.mxu0 %v729
    %v740 = vpop.f32.mrf.mxu0
    %v741 = vadd.f32 0.0, %v740
    %v742 = vpop.f32.mrf.mxu0
    %743 = vdwg.mxu0
    %v744 = vld [vmem:[%s302] sm:$0x3]
    %v745 = vadd.f32 %v744, %v741
    %v746 = vxor.u32 %v745, 2147483648
    %v747 = vmul.f32 %v746, 1.442695
    %v748 = vpow.pop %v747
    %v749 = vadd.f32 %v748, 1.0
    %v750 = vrcp.pop %v749
    %v751 = vmul.f32 %v749, %v750
    %v752 = vsub.f32 1.0, %v751
    %v753 = vmul.f32 %v750, %v752
    %v754 = vadd.f32 %v750, %v753
    %vm755 = vweird.f32 %v749
    %vm756 = vweird.f32 %v750
    %vm757 = vmor %vm755, %vm756
    %v758 = vsel %vm757, %v750, %v754
    %v759 = vand.u32 2147483647, %v749
    %vm760 = vcmp.eq.f32.partialorder %v759, 8.507059e+37
    %v761 = vand.u32 %v749, 2147483648
    %v762 = vor.u32 1.1754944e-38, %v761
    %v763 = vsel %vm760, %v762, %v758
    %v764 = vmul.f32 1.0, %v763
    %v765 = vtanh.pop %v745
    %v766 = vmul.f32 %v764, %v711
    %768 = vrot.lane.b32.xlu0 %v765, 32
    %v769 = vpop.permute.xlu0 %768
    %v771 = vmul.f32 %v764, %v769
    %773 = vrot.lane.b32.xlu0 %v771, 32
    %v774 = vpop.permute.xlu0 %773
    %v776 = vadd.f32 %v766, %v774
    %v777 = vtanh.pop %v776
    %779 = vrot.lane.b32.xlu0 %v777, 32
    %v780 = vpop.permute.xlu0 %779
    %v782 = vmul.f32 %v764, %v780
    %784 = vrot.lane.b32.xlu0 %v782, 64
    %v785 = vpop.permute.xlu0 %784
    %s787 = scalar_lea.vmem [#allocation3], 12
    %788 = vst.msk [vmem:[%s787] sm:$0x3] %vm397, %v785
    %v789 = vpack.c.bf16 %v782, %v782
    %791 = vrot.lane.b32.xlu0 %v789, 64
    %v792 = vpop.permute.xlu0 %791
    %v794 = vsel %vm337, %v792, 0
    %796 = vmatpush.bf16.msra.mxu0 0
    %797 = vmatpush.bf16.msra.mxu0 0
    %798 = vmatpush.bf16.msra.mxu0 0
    %799 = vmatpush.bf16.msra.mxu0 0
    %800 = vmatpush.bf16.msra.mxu0 0
    %801 = vmatpush.bf16.msra.mxu0 0
    %802 = vmatpush.bf16.msra.mxu0 %v334
    %803 = vmatpush.bf16.msra.mxu0 %v333
    %804 = vmatmul.bf16.gmra.mxu0 %v794
    %v805 = vpop.f32.mrf.mxu0
    %v806 = vadd.f32 0.0, %v805
    %v807 = vpop.f32.mrf.mxu0
    %808 = vdwg.mxu0
    %v809 = vld [vmem:[%s323] sm:$0x3]
    %v810 = vadd.f32 %v809, %v806
    %v811 = vxor.u32 %v810, 2147483648
    %v812 = vmul.f32 %v811, 1.442695
    %v813 = vpow.pop %v812
    %v814 = vadd.f32 %v813, 1.0
    %v815 = vrcp.pop %v814
    %v816 = vmul.f32 %v814, %v815
    %v817 = vsub.f32 1.0, %v816
    %v818 = vmul.f32 %v815, %v817
    %v819 = vadd.f32 %v815, %v818
    %vm820 = vweird.f32 %v814
    %vm821 = vweird.f32 %v815
    %vm822 = vmor %vm820, %vm821
    %v823 = vsel %vm822, %v815, %v819
    %v824 = vand.u32 2147483647, %v814
    %vm825 = vcmp.eq.f32.partialorder %v824, 8.507059e+37
    %v826 = vand.u32 %v814, 2147483648
    %v827 = vor.u32 1.1754944e-38, %v826
    %v828 = vsel %vm825, %v827, %v823
    %v829 = vmul.f32 1.0, %v828
    %v830 = vtanh.pop %v810
    %v831 = vmul.f32 %v829, %v776
    %833 = vrot.lane.b32.xlu0 %v830, 32
    %v834 = vpop.permute.xlu0 %833
    %v836 = vmul.f32 %v829, %v834
    %838 = vrot.lane.b32.xlu0 %v836, 32
    %v839 = vpop.permute.xlu0 %838
    %v841 = vadd.f32 %v831, %v839
    %v842 = vtanh.pop %v841
    %844 = vrot.lane.b32.xlu0 %v842, 32
    %v845 = vpop.permute.xlu0 %844
    %v847 = vmul.f32 %v829, %v845
    %849 = vrot.lane.b32.xlu0 %v847, 64
    %v850 = vpop.permute.xlu0 %849
    %s852 = scalar_lea.vmem [#allocation3], 14
    %853 = vst.msk [vmem:[%s852] sm:$0x3] %vm397, %v850
    %v854 = vld [vmem:[#allocation11] sm:$0xf]
    %v855 = vld [vmem:[#allocation11 + $0x4] sm:$0xf]
    %v856 = vld [vmem:[#allocation11 + $0x8] sm:$0xf]
    %v857 = vld [vmem:[#allocation11 + $0xc] sm:$0xf]
    %v858 = vld [vmem:[#allocation13] sm:$0xf]
    %v859 = vld [vmem:[#allocation13 + $0x4] sm:$0xf]
    %v860 = vld [vmem:[#allocation13 + $0x8] sm:$0xf]
    %v861 = vld [vmem:[#allocation13 + $0xc] sm:$0xf]
    %v862 = vld [vmem:[%s6] sm:$0x1]
    %v863 = vld [vmem:[#allocation3] sm:$0x3]
    %v864 = vpack.c.bf16 %v863, %v863
    %v866 = vperm.slane %v862, 0
    %v872 = vunpack.c.l.b16 %v854
    %v873 = vunpack.c.l.b16 %v855
    %v874 = vunpack.c.l.b16 %v856
    %v875 = vunpack.c.l.b16 %v857
    %v876 = vpack.c.b16 %v873, %v872
    %v877 = vpack.c.b16 %v875, %v874
    %v881 = vsel %vm337, %v864, 0
    %883 = vmatpush.bf16.msra.mxu0 0
    %884 = vmatpush.bf16.msra.mxu0 0
    %885 = vmatpush.bf16.msra.mxu0 0
    %886 = vmatpush.bf16.msra.mxu0 0
    %887 = vmatpush.bf16.msra.mxu0 0
    %888 = vmatpush.bf16.msra.mxu0 0
    %889 = vmatpush.bf16.msra.mxu0 %v877
    %890 = vmatpush.bf16.msra.mxu0 %v876
    %891 = vmatmul.bf16.gmra.mxu0 %v881
    %v892 = vpop.f32.mrf.mxu0
    %v893 = vadd.f32 %v866, %v892
    %v894 = vpop.f32.mrf.mxu0
    %895 = vdwg.mxu0
    %896 = vst [vmem:[#allocation2] sm:$0x3] %v893
    %v897 = vld [vmem:[%s462] sm:$0x3]
    %v898 = vpack.c.bf16 %v897, %v897
    %v900 = vsel %vm337, %v898, 0
    %902 = vmatpush.bf16.msra.mxu0 0
    %903 = vmatpush.bf16.msra.mxu0 0
    %904 = vmatpush.bf16.msra.mxu0 0
    %905 = vmatpush.bf16.msra.mxu0 0
    %906 = vmatpush.bf16.msra.mxu0 0
    %907 = vmatpush.bf16.msra.mxu0 0
    %908 = vmatpush.bf16.msra.mxu0 %v877
    %909 = vmatpush.bf16.msra.mxu0 %v876
    %910 = vmatmul.bf16.gmra.mxu0 %v900
    %v911 = vpop.f32.mrf.mxu0
    %v912 = vadd.f32 %v866, %v911
    %v913 = vpop.f32.mrf.mxu0
    %914 = vdwg.mxu0
    %915 = vst [vmem:[%s197] sm:$0x3] %v912
    %v916 = vld [vmem:[%s527] sm:$0x3]
    %v917 = vpack.c.bf16 %v916, %v916
    %v919 = vsel %vm337, %v917, 0
    %921 = vmatpush.bf16.msra.mxu0 0
    %922 = vmatpush.bf16.msra.mxu0 0
    %923 = vmatpush.bf16.msra.mxu0 0
    %924 = vmatpush.bf16.msra.mxu0 0
    %925 = vmatpush.bf16.msra.mxu0 0
    %926 = vmatpush.bf16.msra.mxu0 0
    %927 = vmatpush.bf16.msra.mxu0 %v877
    %928 = vmatpush.bf16.msra.mxu0 %v876
    %929 = vmatmul.bf16.gmra.mxu0 %v919
    %v930 = vpop.f32.mrf.mxu0
    %v931 = vadd.f32 %v866, %v930
    %v932 = vpop.f32.mrf.mxu0
    %933 = vdwg.mxu0
    %934 = vst [vmem:[%s218] sm:$0x3] %v931
    %v935 = vld [vmem:[%s592] sm:$0x3]
    %v936 = vpack.c.bf16 %v935, %v935
    %v938 = vsel %vm337, %v936, 0
    %940 = vmatpush.bf16.msra.mxu0 0
    %941 = vmatpush.bf16.msra.mxu0 0
    %942 = vmatpush.bf16.msra.mxu0 0
    %943 = vmatpush.bf16.msra.mxu0 0
    %944 = vmatpush.bf16.msra.mxu0 0
    %945 = vmatpush.bf16.msra.mxu0 0
    %946 = vmatpush.bf16.msra.mxu0 %v877
    %947 = vmatpush.bf16.msra.mxu0 %v876
    %948 = vmatmul.bf16.gmra.mxu0 %v938
    %v949 = vpop.f32.mrf.mxu0
    %v950 = vadd.f32 %v866, %v949
    %v951 = vpop.f32.mrf.mxu0
    %952 = vdwg.mxu0
    %953 = vst [vmem:[%s239] sm:$0x3] %v950
    %v954 = vld [vmem:[%s657] sm:$0x3]
    %v955 = vpack.c.bf16 %v954, %v954
    %v957 = vsel %vm337, %v955, 0
    %959 = vmatpush.bf16.msra.mxu0 0
    %960 = vmatpush.bf16.msra.mxu0 0
    %961 = vmatpush.bf16.msra.mxu0 0
    %962 = vmatpush.bf16.msra.mxu0 0
    %963 = vmatpush.bf16.msra.mxu0 0
    %964 = vmatpush.bf16.msra.mxu0 0
    %965 = vmatpush.bf16.msra.mxu0 %v877
    %966 = vmatpush.bf16.msra.mxu0 %v876
    %967 = vmatmul.bf16.gmra.mxu0 %v957
    %v968 = vpop.f32.mrf.mxu0
    %v969 = vadd.f32 %v866, %v968
    %v970 = vpop.f32.mrf.mxu0
    %971 = vdwg.mxu0
    %972 = vst [vmem:[%s260] sm:$0x3] %v969
    %v973 = vld [vmem:[%s722] sm:$0x3]
    %v974 = vpack.c.bf16 %v973, %v973
    %v976 = vsel %vm337, %v974, 0
    %978 = vmatpush.bf16.msra.mxu0 0
    %979 = vmatpush.bf16.msra.mxu0 0
    %980 = vmatpush.bf16.msra.mxu0 0
    %981 = vmatpush.bf16.msra.mxu0 0
    %982 = vmatpush.bf16.msra.mxu0 0
    %983 = vmatpush.bf16.msra.mxu0 0
    %984 = vmatpush.bf16.msra.mxu0 %v877
    %985 = vmatpush.bf16.msra.mxu0 %v876
    %986 = vmatmul.bf16.gmra.mxu0 %v976
    %v987 = vpop.f32.mrf.mxu0
    %v988 = vadd.f32 %v866, %v987
    %v989 = vpop.f32.mrf.mxu0
    %990 = vdwg.mxu0
    %991 = vst [vmem:[%s281] sm:$0x3] %v988
    %v992 = vld [vmem:[%s787] sm:$0x3]
    %v993 = vpack.c.bf16 %v992, %v992
    %v995 = vsel %vm337, %v993, 0
    %997 = vmatpush.bf16.msra.mxu0 0
    %998 = vmatpush.bf16.msra.mxu0 0
    %999 = vmatpush.bf16.msra.mxu0 0
    %1000 = vmatpush.bf16.msra.mxu0 0
    %1001 = vmatpush.bf16.msra.mxu0 0
    %1002 = vmatpush.bf16.msra.mxu0 0
    %1003 = vmatpush.bf16.msra.mxu0 %v877
    %1004 = vmatpush.bf16.msra.mxu0 %v876
    %1005 = vmatmul.bf16.gmra.mxu0 %v995
    %v1006 = vpop.f32.mrf.mxu0
    %v1007 = vadd.f32 %v866, %v1006
    %v1008 = vpop.f32.mrf.mxu0
    %1009 = vdwg.mxu0
    %1010 = vst [vmem:[%s302] sm:$0x3] %v1007
    %v1011 = vld [vmem:[%s852] sm:$0x3]
    %v1012 = vpack.c.bf16 %v1011, %v1011
    %v1014 = vsel %vm337, %v1012, 0
    %1016 = vmatpush.bf16.msra.mxu0 0
    %1017 = vmatpush.bf16.msra.mxu0 0
    %1018 = vmatpush.bf16.msra.mxu0 0
    %1019 = vmatpush.bf16.msra.mxu0 0
    %1020 = vmatpush.bf16.msra.mxu0 0
    %1021 = vmatpush.bf16.msra.mxu0 0
    %1022 = vmatpush.bf16.msra.mxu0 %v877
    %1023 = vmatpush.bf16.msra.mxu0 %v876
    %1024 = vmatmul.bf16.gmra.mxu0 %v1014
    %v1025 = vpop.f32.mrf.mxu0
    %v1026 = vadd.f32 %v866, %v1025
    %v1027 = vpop.f32.mrf.mxu0
    %1028 = vdwg.mxu0
    %1029 = vst [vmem:[%s323] sm:$0x3] %v1026
    %v1034 = vunpack.c.l.b16 %v858
    %v1035 = vunpack.c.l.b16 %v859
    %v1036 = vunpack.c.l.b16 %v860
    %v1037 = vunpack.c.l.b16 %v861
    %v1038 = vpack.c.b16 %v1035, %v1034
    %v1039 = vpack.c.b16 %v1037, %v1036
    %1042 = vmatpush.bf16.msra.mxu0 0
    %1043 = vmatpush.bf16.msra.mxu0 0
    %1044 = vmatpush.bf16.msra.mxu0 0
    %1045 = vmatpush.bf16.msra.mxu0 0
    %1046 = vmatpush.bf16.msra.mxu0 0
    %1047 = vmatpush.bf16.msra.mxu0 0
    %1048 = vmatpush.bf16.msra.mxu0 %v1039
    %1049 = vmatpush.bf16.msra.mxu0 %v1038
    %1050 = vmatmul.bf16.gmra.mxu0 %v339
    %v1051 = vpop.f32.mrf.mxu0
    %v1052 = vadd.f32 0.0, %v1051
    %v1053 = vpop.f32.mrf.mxu0
    %1054 = vdwg.mxu0
    %v1055 = vld [vmem:[#allocation2] sm:$0x3]
    %v1056 = vadd.f32 %v1055, %v1052
    %v1057 = vxor.u32 %v1056, 2147483648
    %v1058 = vmul.f32 %v1057, 1.442695
    %v1059 = vpow.pop %v1058
    %v1060 = vadd.f32 %v1059, 1.0
    %v1061 = vrcp.pop %v1060
    %v1062 = vmul.f32 %v1060, %v1061
    %v1063 = vsub.f32 1.0, %v1062
    %v1064 = vmul.f32 %v1061, %v1063
    %v1065 = vadd.f32 %v1061, %v1064
    %vm1066 = vweird.f32 %v1060
    %vm1067 = vweird.f32 %v1061
    %vm1068 = vmor %vm1066, %vm1067
    %v1069 = vsel %vm1068, %v1061, %v1065
    %v1070 = vand.u32 2147483647, %v1060
    %vm1071 = vcmp.eq.f32.partialorder %v1070, 8.507059e+37
    %v1072 = vand.u32 %v1060, 2147483648
    %v1073 = vor.u32 1.1754944e-38, %v1072
    %v1074 = vsel %vm1071, %v1073, %v1069
    %v1075 = vmul.f32 1.0, %v1074
    %v1076 = vtanh.pop %v1056
    %v1077 = vmul.f32 %v1075, 0.0
    %1079 = vrot.lane.b32.xlu0 %v1076, 32
    %v1080 = vpop.permute.xlu0 %1079
    %v1082 = vmul.f32 %v1075, %v1080
    %1084 = vrot.lane.b32.xlu0 %v1082, 32
    %v1085 = vpop.permute.xlu0 %1084
    %v1087 = vadd.f32 %v1077, %v1085
    %v1088 = vtanh.pop %v1087
    %1090 = vrot.lane.b32.xlu0 %v1088, 32
    %v1091 = vpop.permute.xlu0 %1090
    %v1093 = vmul.f32 %v1075, %v1091
    %1095 = vrot.lane.b32.xlu0 %v1093, 64
    %v1096 = vpop.permute.xlu0 %1095
    %1098 = vst.msk [vmem:[#allocation3] sm:$0x3] %vm397, %v1096
    %v1099 = vpack.c.bf16 %v1093, %v1093
    %1101 = vrot.lane.b32.xlu0 %v1099, 64
    %v1102 = vpop.permute.xlu0 %1101
    %v1104 = vsel %vm337, %v1102, 0
    %1106 = vmatpush.bf16.msra.mxu0 0
    %1107 = vmatpush.bf16.msra.mxu0 0
    %1108 = vmatpush.bf16.msra.mxu0 0
    %1109 = vmatpush.bf16.msra.mxu0 0
    %1110 = vmatpush.bf16.msra.mxu0 0
    %1111 = vmatpush.bf16.msra.mxu0 0
    %1112 = vmatpush.bf16.msra.mxu0 %v1039
    %1113 = vmatpush.bf16.msra.mxu0 %v1038
    %1114 = vmatmul.bf16.gmra.mxu0 %v1104
    %v1115 = vpop.f32.mrf.mxu0
    %v1116 = vadd.f32 0.0, %v1115
    %v1117 = vpop.f32.mrf.mxu0
    %1118 = vdwg.mxu0
    %v1119 = vld [vmem:[%s197] sm:$0x3]
    %v1120 = vadd.f32 %v1119, %v1116
    %v1121 = vxor.u32 %v1120, 2147483648
    %v1122 = vmul.f32 %v1121, 1.442695
    %v1123 = vpow.pop %v1122
    %v1124 = vadd.f32 %v1123, 1.0
    %v1125 = vrcp.pop %v1124
    %v1126 = vmul.f32 %v1124, %v1125
    %v1127 = vsub.f32 1.0, %v1126
    %v1128 = vmul.f32 %v1125, %v1127
    %v1129 = vadd.f32 %v1125, %v1128
    %vm1130 = vweird.f32 %v1124
    %vm1131 = vweird.f32 %v1125
    %vm1132 = vmor %vm1130, %vm1131
    %v1133 = vsel %vm1132, %v1125, %v1129
    %v1134 = vand.u32 2147483647, %v1124
    %vm1135 = vcmp.eq.f32.partialorder %v1134, 8.507059e+37
    %v1136 = vand.u32 %v1124, 2147483648
    %v1137 = vor.u32 1.1754944e-38, %v1136
    %v1138 = vsel %vm1135, %v1137, %v1133
    %v1139 = vmul.f32 1.0, %v1138
    %v1140 = vtanh.pop %v1120
    %v1141 = vmul.f32 %v1139, %v1087
    %1143 = vrot.lane.b32.xlu0 %v1140, 32
    %v1144 = vpop.permute.xlu0 %1143
    %v1146 = vmul.f32 %v1139, %v1144
    %1148 = vrot.lane.b32.xlu0 %v1146, 32
    %v1149 = vpop.permute.xlu0 %1148
    %v1151 = vadd.f32 %v1141, %v1149
    %v1152 = vtanh.pop %v1151
    %1154 = vrot.lane.b32.xlu0 %v1152, 32
    %v1155 = vpop.permute.xlu0 %1154
    %v1157 = vmul.f32 %v1139, %v1155
    %1159 = vrot.lane.b32.xlu0 %v1157, 64
    %v1160 = vpop.permute.xlu0 %1159
    %1162 = vst.msk [vmem:[%s462] sm:$0x3] %vm397, %v1160
    %v1163 = vpack.c.bf16 %v1157, %v1157
    %1165 = vrot.lane.b32.xlu0 %v1163, 64
    %v1166 = vpop.permute.xlu0 %1165
    %v1168 = vsel %vm337, %v1166, 0
    %1170 = vmatpush.bf16.msra.mxu0 0
    %1171 = vmatpush.bf16.msra.mxu0 0
    %1172 = vmatpush.bf16.msra.mxu0 0
    %1173 = vmatpush.bf16.msra.mxu0 0
    %1174 = vmatpush.bf16.msra.mxu0 0
    %1175 = vmatpush.bf16.msra.mxu0 0
    %1176 = vmatpush.bf16.msra.mxu0 %v1039
    %1177 = vmatpush.bf16.msra.mxu0 %v1038
    %1178 = vmatmul.bf16.gmra.mxu0 %v1168
    %v1179 = vpop.f32.mrf.mxu0
    %v1180 = vadd.f32 0.0, %v1179
    %v1181 = vpop.f32.mrf.mxu0
    %1182 = vdwg.mxu0
    %v1183 = vld [vmem:[%s218] sm:$0x3]
    %v1184 = vadd.f32 %v1183, %v1180
    %v1185 = vxor.u32 %v1184, 2147483648
    %v1186 = vmul.f32 %v1185, 1.442695
    %v1187 = vpow.pop %v1186
    %v1188 = vadd.f32 %v1187, 1.0
    %v1189 = vrcp.pop %v1188
    %v1190 = vmul.f32 %v1188, %v1189
    %v1191 = vsub.f32 1.0, %v1190
    %v1192 = vmul.f32 %v1189, %v1191
    %v1193 = vadd.f32 %v1189, %v1192
    %vm1194 = vweird.f32 %v1188
    %vm1195 = vweird.f32 %v1189
    %vm1196 = vmor %vm1194, %vm1195
    %v1197 = vsel %vm1196, %v1189, %v1193
    %v1198 = vand.u32 2147483647, %v1188
    %vm1199 = vcmp.eq.f32.partialorder %v1198, 8.507059e+37
    %v1200 = vand.u32 %v1188, 2147483648
    %v1201 = vor.u32 1.1754944e-38, %v1200
    %v1202 = vsel %vm1199, %v1201, %v1197
    %v1203 = vmul.f32 1.0, %v1202
    %v1204 = vtanh.pop %v1184
    %v1205 = vmul.f32 %v1203, %v1151
    %1207 = vrot.lane.b32.xlu0 %v1204, 32
    %v1208 = vpop.permute.xlu0 %1207
    %v1210 = vmul.f32 %v1203, %v1208
    %1212 = vrot.lane.b32.xlu0 %v1210, 32
    %v1213 = vpop.permute.xlu0 %1212
    %v1215 = vadd.f32 %v1205, %v1213
    %v1216 = vtanh.pop %v1215
    %1218 = vrot.lane.b32.xlu0 %v1216, 32
    %v1219 = vpop.permute.xlu0 %1218
    %v1221 = vmul.f32 %v1203, %v1219
    %1223 = vrot.lane.b32.xlu0 %v1221, 64
    %v1224 = vpop.permute.xlu0 %1223
    %1226 = vst.msk [vmem:[%s527] sm:$0x3] %vm397, %v1224
    %v1227 = vpack.c.bf16 %v1221, %v1221
    %1229 = vrot.lane.b32.xlu0 %v1227, 64
    %v1230 = vpop.permute.xlu0 %1229
    %v1232 = vsel %vm337, %v1230, 0
    %1234 = vmatpush.bf16.msra.mxu0 0
    %1235 = vmatpush.bf16.msra.mxu0 0
    %1236 = vmatpush.bf16.msra.mxu0 0
    %1237 = vmatpush.bf16.msra.mxu0 0
    %1238 = vmatpush.bf16.msra.mxu0 0
    %1239 = vmatpush.bf16.msra.mxu0 0
    %1240 = vmatpush.bf16.msra.mxu0 %v1039
    %1241 = vmatpush.bf16.msra.mxu0 %v1038
    %1242 = vmatmul.bf16.gmra.mxu0 %v1232
    %v1243 = vpop.f32.mrf.mxu0
    %v1244 = vadd.f32 0.0, %v1243
    %v1245 = vpop.f32.mrf.mxu0
    %1246 = vdwg.mxu0
    %v1247 = vld [vmem:[%s239] sm:$0x3]
    %v1248 = vadd.f32 %v1247, %v1244
    %v1249 = vxor.u32 %v1248, 2147483648
    %v1250 = vmul.f32 %v1249, 1.442695
    %v1251 = vpow.pop %v1250
    %v1252 = vadd.f32 %v1251, 1.0
    %v1253 = vrcp.pop %v1252
    %v1254 = vmul.f32 %v1252, %v1253
    %v1255 = vsub.f32 1.0, %v1254
    %v1256 = vmul.f32 %v1253, %v1255
    %v1257 = vadd.f32 %v1253, %v1256
    %vm1258 = vweird.f32 %v1252
    %vm1259 = vweird.f32 %v1253
    %vm1260 = vmor %vm1258, %vm1259
    %v1261 = vsel %vm1260, %v1253, %v1257
    %v1262 = vand.u32 2147483647, %v1252
    %vm1263 = vcmp.eq.f32.partialorder %v1262, 8.507059e+37
    %v1264 = vand.u32 %v1252, 2147483648
    %v1265 = vor.u32 1.1754944e-38, %v1264
    %v1266 = vsel %vm1263, %v1265, %v1261
    %v1267 = vmul.f32 1.0, %v1266
    %v1268 = vtanh.pop %v1248
    %v1269 = vmul.f32 %v1267, %v1215
    %1271 = vrot.lane.b32.xlu0 %v1268, 32
    %v1272 = vpop.permute.xlu0 %1271
    %v1274 = vmul.f32 %v1267, %v1272
    %1276 = vrot.lane.b32.xlu0 %v1274, 32
    %v1277 = vpop.permute.xlu0 %1276
    %v1279 = vadd.f32 %v1269, %v1277
    %v1280 = vtanh.pop %v1279
    %1282 = vrot.lane.b32.xlu0 %v1280, 32
    %v1283 = vpop.permute.xlu0 %1282
    %v1285 = vmul.f32 %v1267, %v1283
    %1287 = vrot.lane.b32.xlu0 %v1285, 64
    %v1288 = vpop.permute.xlu0 %1287
    %1290 = vst.msk [vmem:[%s592] sm:$0x3] %vm397, %v1288
    %v1291 = vpack.c.bf16 %v1285, %v1285
    %1293 = vrot.lane.b32.xlu0 %v1291, 64
    %v1294 = vpop.permute.xlu0 %1293
    %v1296 = vsel %vm337, %v1294, 0
    %1298 = vmatpush.bf16.msra.mxu0 0
    %1299 = vmatpush.bf16.msra.mxu0 0
    %1300 = vmatpush.bf16.msra.mxu0 0
    %1301 = vmatpush.bf16.msra.mxu0 0
    %1302 = vmatpush.bf16.msra.mxu0 0
    %1303 = vmatpush.bf16.msra.mxu0 0
    %1304 = vmatpush.bf16.msra.mxu0 %v1039
    %1305 = vmatpush.bf16.msra.mxu0 %v1038
    %1306 = vmatmul.bf16.gmra.mxu0 %v1296
    %v1307 = vpop.f32.mrf.mxu0
    %v1308 = vadd.f32 0.0, %v1307
    %v1309 = vpop.f32.mrf.mxu0
    %1310 = vdwg.mxu0
    %v1311 = vld [vmem:[%s260] sm:$0x3]
    %v1312 = vadd.f32 %v1311, %v1308
    %v1313 = vxor.u32 %v1312, 2147483648
    %v1314 = vmul.f32 %v1313, 1.442695
    %v1315 = vpow.pop %v1314
    %v1316 = vadd.f32 %v1315, 1.0
    %v1317 = vrcp.pop %v1316
    %v1318 = vmul.f32 %v1316, %v1317
    %v1319 = vsub.f32 1.0, %v1318
    %v1320 = vmul.f32 %v1317, %v1319
    %v1321 = vadd.f32 %v1317, %v1320
    %vm1322 = vweird.f32 %v1316
    %vm1323 = vweird.f32 %v1317
    %vm1324 = vmor %vm1322, %vm1323
    %v1325 = vsel %vm1324, %v1317, %v1321
    %v1326 = vand.u32 2147483647, %v1316
    %vm1327 = vcmp.eq.f32.partialorder %v1326, 8.507059e+37
    %v1328 = vand.u32 %v1316, 2147483648
    %v1329 = vor.u32 1.1754944e-38, %v1328
    %v1330 = vsel %vm1327, %v1329, %v1325
    %v1331 = vmul.f32 1.0, %v1330
    %v1332 = vtanh.pop %v1312
    %v1333 = vmul.f32 %v1331, %v1279
    %1335 = vrot.lane.b32.xlu0 %v1332, 32
    %v1336 = vpop.permute.xlu0 %1335
    %v1338 = vmul.f32 %v1331, %v1336
    %1340 = vrot.lane.b32.xlu0 %v1338, 32
    %v1341 = vpop.permute.xlu0 %1340
    %v1343 = vadd.f32 %v1333, %v1341
    %v1344 = vtanh.pop %v1343
    %1346 = vrot.lane.b32.xlu0 %v1344, 32
    %v1347 = vpop.permute.xlu0 %1346
    %v1349 = vmul.f32 %v1331, %v1347
    %1351 = vrot.lane.b32.xlu0 %v1349, 64
    %v1352 = vpop.permute.xlu0 %1351
    %1354 = vst.msk [vmem:[%s657] sm:$0x3] %vm397, %v1352
    %v1355 = vpack.c.bf16 %v1349, %v1349
    %1357 = vrot.lane.b32.xlu0 %v1355, 64
    %v1358 = vpop.permute.xlu0 %1357
    %v1360 = vsel %vm337, %v1358, 0
    %1362 = vmatpush.bf16.msra.mxu0 0
    %1363 = vmatpush.bf16.msra.mxu0 0
    %1364 = vmatpush.bf16.msra.mxu0 0
    %1365 = vmatpush.bf16.msra.mxu0 0
    %1366 = vmatpush.bf16.msra.mxu0 0
    %1367 = vmatpush.bf16.msra.mxu0 0
    %1368 = vmatpush.bf16.msra.mxu0 %v1039
    %1369 = vmatpush.bf16.msra.mxu0 %v1038
    %1370 = vmatmul.bf16.gmra.mxu0 %v1360
    %v1371 = vpop.f32.mrf.mxu0
    %v1372 = vadd.f32 0.0, %v1371
    %v1373 = vpop.f32.mrf.mxu0
    %1374 = vdwg.mxu0
    %v1375 = vld [vmem:[%s281] sm:$0x3]
    %v1376 = vadd.f32 %v1375, %v1372
    %v1377 = vxor.u32 %v1376, 2147483648
    %v1378 = vmul.f32 %v1377, 1.442695
    %v1379 = vpow.pop %v1378
    %v1380 = vadd.f32 %v1379, 1.0
    %v1381 = vrcp.pop %v1380
    %v1382 = vmul.f32 %v1380, %v1381
    %v1383 = vsub.f32 1.0, %v1382
    %v1384 = vmul.f32 %v1381, %v1383
    %v1385 = vadd.f32 %v1381, %v1384
    %vm1386 = vweird.f32 %v1380
    %vm1387 = vweird.f32 %v1381
    %vm1388 = vmor %vm1386, %vm1387
    %v1389 = vsel %vm1388, %v1381, %v1385
    %v1390 = vand.u32 2147483647, %v1380
    %vm1391 = vcmp.eq.f32.partialorder %v1390, 8.507059e+37
    %v1392 = vand.u32 %v1380, 2147483648
    %v1393 = vor.u32 1.1754944e-38, %v1392
    %v1394 = vsel %vm1391, %v1393, %v1389
    %v1395 = vmul.f32 1.0, %v1394
    %v1396 = vtanh.pop %v1376
    %v1397 = vmul.f32 %v1395, %v1343
    %1399 = vrot.lane.b32.xlu0 %v1396, 32
    %v1400 = vpop.permute.xlu0 %1399
    %v1402 = vmul.f32 %v1395, %v1400
    %1404 = vrot.lane.b32.xlu0 %v1402, 32
    %v1405 = vpop.permute.xlu0 %1404
    %v1407 = vadd.f32 %v1397, %v1405
    %v1408 = vtanh.pop %v1407
    %1410 = vrot.lane.b32.xlu0 %v1408, 32
    %v1411 = vpop.permute.xlu0 %1410
    %v1413 = vmul.f32 %v1395, %v1411
    %1415 = vrot.lane.b32.xlu0 %v1413, 64
    %v1416 = vpop.permute.xlu0 %1415
    %1418 = vst.msk [vmem:[%s722] sm:$0x3] %vm397, %v1416
    %v1419 = vpack.c.bf16 %v1413, %v1413
    %1421 = vrot.lane.b32.xlu0 %v1419, 64
    %v1422 = vpop.permute.xlu0 %1421
    %v1424 = vsel %vm337, %v1422, 0
    %1426 = vmatpush.bf16.msra.mxu0 0
    %1427 = vmatpush.bf16.msra.mxu0 0
    %1428 = vmatpush.bf16.msra.mxu0 0
    %1429 = vmatpush.bf16.msra.mxu0 0
    %1430 = vmatpush.bf16.msra.mxu0 0
    %1431 = vmatpush.bf16.msra.mxu0 0
    %1432 = vmatpush.bf16.msra.mxu0 %v1039
    %1433 = vmatpush.bf16.msra.mxu0 %v1038
    %1434 = vmatmul.bf16.gmra.mxu0 %v1424
    %v1435 = vpop.f32.mrf.mxu0
    %v1436 = vadd.f32 0.0, %v1435
    %v1437 = vpop.f32.mrf.mxu0
    %1438 = vdwg.mxu0
    %v1439 = vld [vmem:[%s302] sm:$0x3]
    %v1440 = vadd.f32 %v1439, %v1436
    %v1441 = vxor.u32 %v1440, 2147483648
    %v1442 = vmul.f32 %v1441, 1.442695
    %v1443 = vpow.pop %v1442
    %v1444 = vadd.f32 %v1443, 1.0
    %v1445 = vrcp.pop %v1444
    %v1446 = vmul.f32 %v1444, %v1445
    %v1447 = vsub.f32 1.0, %v1446
    %v1448 = vmul.f32 %v1445, %v1447
    %v1449 = vadd.f32 %v1445, %v1448
    %vm1450 = vweird.f32 %v1444
    %vm1451 = vweird.f32 %v1445
    %vm1452 = vmor %vm1450, %vm1451
    %v1453 = vsel %vm1452, %v1445, %v1449
    %v1454 = vand.u32 2147483647, %v1444
    %vm1455 = vcmp.eq.f32.partialorder %v1454, 8.507059e+37
    %v1456 = vand.u32 %v1444, 2147483648
    %v1457 = vor.u32 1.1754944e-38, %v1456
    %v1458 = vsel %vm1455, %v1457, %v1453
    %v1459 = vmul.f32 1.0, %v1458
    %v1460 = vtanh.pop %v1440
    %v1461 = vmul.f32 %v1459, %v1407
    %1463 = vrot.lane.b32.xlu0 %v1460, 32
    %v1464 = vpop.permute.xlu0 %1463
    %v1466 = vmul.f32 %v1459, %v1464
    %1468 = vrot.lane.b32.xlu0 %v1466, 32
    %v1469 = vpop.permute.xlu0 %1468
    %v1471 = vadd.f32 %v1461, %v1469
    %v1472 = vtanh.pop %v1471
    %1474 = vrot.lane.b32.xlu0 %v1472, 32
    %v1475 = vpop.permute.xlu0 %1474
    %v1477 = vmul.f32 %v1459, %v1475
    %1479 = vrot.lane.b32.xlu0 %v1477, 64
    %v1480 = vpop.permute.xlu0 %1479
    %1482 = vst.msk [vmem:[%s787] sm:$0x3] %vm397, %v1480
    %v1483 = vpack.c.bf16 %v1477, %v1477
    %1485 = vrot.lane.b32.xlu0 %v1483, 64
    %v1486 = vpop.permute.xlu0 %1485
    %v1488 = vsel %vm337, %v1486, 0
    %1490 = vmatpush.bf16.msra.mxu0 0
    %1491 = vmatpush.bf16.msra.mxu0 0
    %1492 = vmatpush.bf16.msra.mxu0 0
    %1493 = vmatpush.bf16.msra.mxu0 0
    %1494 = vmatpush.bf16.msra.mxu0 0
    %1495 = vmatpush.bf16.msra.mxu0 0
    %1496 = vmatpush.bf16.msra.mxu0 %v1039
    %1497 = vmatpush.bf16.msra.mxu0 %v1038
    %1498 = vmatmul.bf16.gmra.mxu0 %v1488
    %v1499 = vpop.f32.mrf.mxu0
    %v1500 = vadd.f32 0.0, %v1499
    %v1501 = vpop.f32.mrf.mxu0
    %1502 = vdwg.mxu0
    %v1503 = vld [vmem:[%s323] sm:$0x3]
    %v1504 = vadd.f32 %v1503, %v1500
    %v1505 = vxor.u32 %v1504, 2147483648
    %v1506 = vmul.f32 %v1505, 1.442695
    %v1507 = vpow.pop %v1506
    %v1508 = vadd.f32 %v1507, 1.0
    %v1509 = vrcp.pop %v1508
    %v1510 = vmul.f32 %v1508, %v1509
    %v1511 = vsub.f32 1.0, %v1510
    %v1512 = vmul.f32 %v1509, %v1511
    %v1513 = vadd.f32 %v1509, %v1512
    %vm1514 = vweird.f32 %v1508
    %vm1515 = vweird.f32 %v1509
    %vm1516 = vmor %vm1514, %vm1515
    %v1517 = vsel %vm1516, %v1509, %v1513
    %v1518 = vand.u32 2147483647, %v1508
    %vm1519 = vcmp.eq.f32.partialorder %v1518, 8.507059e+37
    %v1520 = vand.u32 %v1508, 2147483648
    %v1521 = vor.u32 1.1754944e-38, %v1520
    %v1522 = vsel %vm1519, %v1521, %v1517
    %v1523 = vmul.f32 1.0, %v1522
    %v1524 = vtanh.pop %v1504
    %v1525 = vmul.f32 %v1523, %v1471
    %1527 = vrot.lane.b32.xlu0 %v1524, 32
    %v1528 = vpop.permute.xlu0 %1527
    %v1530 = vmul.f32 %v1523, %v1528
    %1532 = vrot.lane.b32.xlu0 %v1530, 32
    %v1533 = vpop.permute.xlu0 %1532
    %v1535 = vadd.f32 %v1525, %v1533
    %v1536 = vtanh.pop %v1535
    %1538 = vrot.lane.b32.xlu0 %v1536, 32
    %v1539 = vpop.permute.xlu0 %1538
    %v1541 = vmul.f32 %v1523, %v1539
    %1543 = vrot.lane.b32.xlu0 %v1541, 64
    %v1544 = vpop.permute.xlu0 %1543
    %1546 = vst.msk [vmem:[%s852] sm:$0x3] %vm397, %v1544
    %v1547 = vld [vmem:[%s7] sm:$0x1]
    %v1548 = vld [vmem:[%s8] sm:$0x1]
    %v1549 = vld [vmem:[#allocation14] sm:$0xf]
    %v1550 = vld [vmem:[#allocation14 + $0x4] sm:$0xf]
    %v1551 = vld [vmem:[#allocation14 + $0x8] sm:$0xf]
    %v1552 = vld [vmem:[#allocation14 + $0xc] sm:$0xf]
    %v1553 = vld [vmem:[%s10] sm:$0x1]
    %v1554 = vld [vmem:[%s11] sm:$0x1]
    %v1555 = vld [vmem:[#allocation4] sm:$0x1]
    %v1556 = vld [vmem:[#allocation3] sm:$0x3]
    %v1557 = vsel %vm397, %v1556, 0.0
    %1558 = vadd.xlane.f32.xlu0 %v1557
    %v1559 = vpop.xlane.xlu0 %1558
    %v1560 = vrcp.pop 32.0
    %v1561 = vmul.f32 32.0, %v1560
    %v1562 = vsub.f32 1.0, %v1561
    %v1563 = vmul.f32 %v1560, %v1562
    %v1564 = vadd.f32 %v1560, %v1563
    %vm1565 = vweird.f32 %v1560
    %v1566 = vsel %vm1565, %v1560, %v1564
    %v1567 = vmul.f32 %v1559, %v1566
    %v1568 = vsub.f32 %v1556, %v1567
    %v1569 = vmul.f32 %v1568, %v1568
    %v1570 = vsel %vm397, %v1569, 0.0
    %1571 = vadd.xlane.f32.xlu0 %v1570
    %v1572 = vpop.xlane.xlu0 %1571
    %v1573 = vmul.f32 %v1572, %v1566
    %v1574 = vadd.f32 %v1573, 1e-05
    %v1575 = vrsqrt.pop %v1574
    %v1576 = vmul.f32 %v1575, %v1574
    %v1577 = vmul.f32 %v1576, %v1575
    %v1578 = vmul.f32 0.5, %v1577
    %v1579 = vsub.f32 1.5, %v1578
    %v1580 = vmul.f32 %v1575, %v1579
    %vm1581 = vweird.f32 %v1574
    %vm1582 = vweird.f32 %v1575
    %vm1583 = vmor %vm1581, %vm1582
    %v1584 = vsel %vm1583, %v1575, %v1580
    %v1585 = vmul.f32 %v1568, %v1584
    %v1587 = vperm.slane %v1547, 0
    %v1589 = vmul.f32 %v1585, %v1587
    %v1591 = vperm.slane %v1548, 0
    %v1593 = vadd.f32 %v1589, %v1591
    %v1594 = vpack.c.bf16 %v1593, %v1593
    %v1596 = vperm.slane %v1553, 0
    %v1602 = vunpack.c.l.b16 %v1549
    %v1603 = vunpack.c.l.b16 %v1550
    %v1604 = vunpack.c.l.b16 %v1551
    %v1605 = vunpack.c.l.b16 %v1552
    %v1606 = vpack.c.b16 %v1603, %v1602
    %v1607 = vpack.c.b16 %v1605, %v1604
    %v1611 = vsel %vm337, %v1594, 0
    %1613 = vmatpush.bf16.msra.mxu0 0
    %1614 = vmatpush.bf16.msra.mxu0 0
    %1615 = vmatpush.bf16.msra.mxu0 0
    %1616 = vmatpush.bf16.msra.mxu0 0
    %1617 = vmatpush.bf16.msra.mxu0 0
    %1618 = vmatpush.bf16.msra.mxu0 0
    %1619 = vmatpush.bf16.msra.mxu0 %v1607
    %1620 = vmatpush.bf16.msra.mxu0 %v1606
    %1621 = vmatmul.bf16.gmra.mxu0 %v1611
    %v1622 = vpop.f32.mrf.mxu0
    %v1623 = vadd.f32 %v1596, %v1622
    %v1624 = vpop.f32.mrf.mxu0
    %1625 = vdwg.mxu0
    %v1626 = vmax.f32 %v1623, 0.0
    %v1628 = vperm.slane %v1554, 0
    %v1630 = vmul.f32 %v1626, %v1628
    %v1631 = vsel %vm397, %v1630, 0.0
    %1632 = vadd.xlane.f32.xlu0 %v1631
    %v1633 = vpop.xlane.xlu0 %1632
    %v1635 = vperm.slane %v1555, 0
    %v1637 = vadd.f32 %v1633, %v1635
    %vm1638 = vcmask 1024
    %1639 = vst.msk [vmem:[#allocation16] sm:$0x3] %vm1638, %v1637
    %v1640 = vld [vmem:[%s462] sm:$0x3]
    %v1641 = vsel %vm397, %v1640, 0.0
    %1642 = vadd.xlane.f32.xlu0 %v1641
    %v1643 = vpop.xlane.xlu0 %1642
    %v1644 = vmul.f32 %v1643, %v1566
    %v1645 = vsub.f32 %v1640, %v1644
    %v1646 = vmul.f32 %v1645, %v1645
    %v1647 = vsel %vm397, %v1646, 0.0
    %1648 = vadd.xlane.f32.xlu0 %v1647
    %v1649 = vpop.xlane.xlu0 %1648
    %v1650 = vmul.f32 %v1649, %v1566
    %v1651 = vadd.f32 %v1650, 1e-05
    %v1652 = vrsqrt.pop %v1651
    %v1653 = vmul.f32 %v1652, %v1651
    %v1654 = vmul.f32 %v1653, %v1652
    %v1655 = vmul.f32 0.5, %v1654
    %v1656 = vsub.f32 1.5, %v1655
    %v1657 = vmul.f32 %v1652, %v1656
    %vm1658 = vweird.f32 %v1651
    %vm1659 = vweird.f32 %v1652
    %vm1660 = vmor %vm1658, %vm1659
    %v1661 = vsel %vm1660, %v1652, %v1657
    %v1662 = vmul.f32 %v1645, %v1661
    %v1663 = vmul.f32 %v1662, %v1587
    %v1664 = vadd.f32 %v1663, %v1591
    %v1665 = vpack.c.bf16 %v1664, %v1664
    %v1667 = vsel %vm337, %v1665, 0
    %1669 = vmatpush.bf16.msra.mxu0 0
    %1670 = vmatpush.bf16.msra.mxu0 0
    %1671 = vmatpush.bf16.msra.mxu0 0
    %1672 = vmatpush.bf16.msra.mxu0 0
    %1673 = vmatpush.bf16.msra.mxu0 0
    %1674 = vmatpush.bf16.msra.mxu0 0
    %1675 = vmatpush.bf16.msra.mxu0 %v1607
    %1676 = vmatpush.bf16.msra.mxu0 %v1606
    %1677 = vmatmul.bf16.gmra.mxu0 %v1667
    %v1678 = vpop.f32.mrf.mxu0
    %v1679 = vadd.f32 %v1596, %v1678
    %v1680 = vpop.f32.mrf.mxu0
    %1681 = vdwg.mxu0
    %v1682 = vmax.f32 %v1679, 0.0
    %v1683 = vmul.f32 %v1682, %v1628
    %v1684 = vsel %vm397, %v1683, 0.0
    %1685 = vadd.xlane.f32.xlu0 %v1684
    %v1686 = vpop.xlane.xlu0 %1685
    %v1687 = vadd.f32 %v1686, %v1635
    %1689 = vrot.lane.b32.xlu0 %v1687, 1
    %v1690 = vpop.permute.xlu0 %1689
    %vm1692 = vcmask 9224
    %1693 = vst.msk [vmem:[#allocation16] sm:$0x3] %vm1692, %v1690
    %v1694 = vld [vmem:[%s527] sm:$0x3]
    %v1695 = vsel %vm397, %v1694, 0.0
    %1696 = vadd.xlane.f32.xlu0 %v1695
    %v1697 = vpop.xlane.xlu0 %1696
    %v1698 = vmul.f32 %v1697, %v1566
    %v1699 = vsub.f32 %v1694, %v1698
    %v1700 = vmul.f32 %v1699, %v1699
    %v1701 = vsel %vm397, %v1700, 0.0
    %1702 = vadd.xlane.f32.xlu0 %v1701
    %v1703 = vpop.xlane.xlu0 %1702
    %v1704 = vmul.f32 %v1703, %v1566
    %v1705 = vadd.f32 %v1704, 1e-05
    %v1706 = vrsqrt.pop %v1705
    %v1707 = vmul.f32 %v1706, %v1705
    %v1708 = vmul.f32 %v1707, %v1706
    %v1709 = vmul.f32 0.5, %v1708
    %v1710 = vsub.f32 1.5, %v1709
    %v1711 = vmul.f32 %v1706, %v1710
    %vm1712 = vweird.f32 %v1705
    %vm1713 = vweird.f32 %v1706
    %vm1714 = vmor %vm1712, %vm1713
    %v1715 = vsel %vm1714, %v1706, %v1711
    %v1716 = vmul.f32 %v1699, %v1715
    %v1717 = vmul.f32 %v1716, %v1587
    %v1718 = vadd.f32 %v1717, %v1591
    %v1719 = vpack.c.bf16 %v1718, %v1718
    %v1721 = vsel %vm337, %v1719, 0
    %1723 = vmatpush.bf16.msra.mxu0 0
    %1724 = vmatpush.bf16.msra.mxu0 0
    %1725 = vmatpush.bf16.msra.mxu0 0
    %1726 = vmatpush.bf16.msra.mxu0 0
    %1727 = vmatpush.bf16.msra.mxu0 0
    %1728 = vmatpush.bf16.msra.mxu0 0
    %1729 = vmatpush.bf16.msra.mxu0 %v1607
    %1730 = vmatpush.bf16.msra.mxu0 %v1606
    %1731 = vmatmul.bf16.gmra.mxu0 %v1721
    %v1732 = vpop.f32.mrf.mxu0
    %v1733 = vadd.f32 %v1596, %v1732
    %v1734 = vpop.f32.mrf.mxu0
    %1735 = vdwg.mxu0
    %v1736 = vmax.f32 %v1733, 0.0
    %v1737 = vmul.f32 %v1736, %v1628
    %v1738 = vsel %vm397, %v1737, 0.0
    %1739 = vadd.xlane.f32.xlu0 %v1738
    %v1740 = vpop.xlane.xlu0 %1739
    %v1741 = vadd.f32 %v1740, %v1635
    %1743 = vrot.lane.b32.xlu0 %v1741, 2
    %v1744 = vpop.permute.xlu0 %1743
    %vm1746 = vcmask 17424
    %1747 = vst.msk [vmem:[#allocation16] sm:$0x3] %vm1746, %v1744
    %v1748 = vld [vmem:[%s592] sm:$0x3]
    %v1749 = vsel %vm397, %v1748, 0.0
    %1750 = vadd.xlane.f32.xlu0 %v1749
    %v1751 = vpop.xlane.xlu0 %1750
    %v1752 = vmul.f32 %v1751, %v1566
    %v1753 = vsub.f32 %v1748, %v1752
    %v1754 = vmul.f32 %v1753, %v1753
    %v1755 = vsel %vm397, %v1754, 0.0
    %1756 = vadd.xlane.f32.xlu0 %v1755
    %v1757 = vpop.xlane.xlu0 %1756
    %v1758 = vmul.f32 %v1757, %v1566
    %v1759 = vadd.f32 %v1758, 1e-05
    %v1760 = vrsqrt.pop %v1759
    %v1761 = vmul.f32 %v1760, %v1759
    %v1762 = vmul.f32 %v1761, %v1760
    %v1763 = vmul.f32 0.5, %v1762
    %v1764 = vsub.f32 1.5, %v1763
    %v1765 = vmul.f32 %v1760, %v1764
    %vm1766 = vweird.f32 %v1759
    %vm1767 = vweird.f32 %v1760
    %vm1768 = vmor %vm1766, %vm1767
    %v1769 = vsel %vm1768, %v1760, %v1765
    %v1770 = vmul.f32 %v1753, %v1769
    %v1771 = vmul.f32 %v1770, %v1587
    %v1772 = vadd.f32 %v1771, %v1591
    %v1773 = vpack.c.bf16 %v1772, %v1772
    %v1775 = vsel %vm337, %v1773, 0
    %1777 = vmatpush.bf16.msra.mxu0 0
    %1778 = vmatpush.bf16.msra.mxu0 0
    %1779 = vmatpush.bf16.msra.mxu0 0
    %1780 = vmatpush.bf16.msra.mxu0 0
    %1781 = vmatpush.bf16.msra.mxu0 0
    %1782 = vmatpush.bf16.msra.mxu0 0
    %1783 = vmatpush.bf16.msra.mxu0 %v1607
    %1784 = vmatpush.bf16.msra.mxu0 %v1606
    %1785 = vmatmul.bf16.gmra.mxu0 %v1775
    %v1786 = vpop.f32.mrf.mxu0
    %v1787 = vadd.f32 %v1596, %v1786
    %v1788 = vpop.f32.mrf.mxu0
    %1789 = vdwg.mxu0
    %v1790 = vmax.f32 %v1787, 0.0
    %v1791 = vmul.f32 %v1790, %v1628
    %v1792 = vsel %vm397, %v1791, 0.0
    %1793 = vadd.xlane.f32.xlu0 %v1792
    %v1794 = vpop.xlane.xlu0 %1793
    %v1795 = vadd.f32 %v1794, %v1635
    %1797 = vrot.lane.b32.xlu0 %v1795, 3
    %v1798 = vpop.permute.xlu0 %1797
    %vm1800 = vcmask 25624
    %1801 = vst.msk [vmem:[#allocation16] sm:$0x3] %vm1800, %v1798
    %v1802 = vld [vmem:[%s657] sm:$0x3]
    %v1803 = vsel %vm397, %v1802, 0.0
    %1804 = vadd.xlane.f32.xlu0 %v1803
    %v1805 = vpop.xlane.xlu0 %1804
    %v1806 = vmul.f32 %v1805, %v1566
    %v1807 = vsub.f32 %v1802, %v1806
    %v1808 = vmul.f32 %v1807, %v1807
    %v1809 = vsel %vm397, %v1808, 0.0
    %1810 = vadd.xlane.f32.xlu0 %v1809
    %v1811 = vpop.xlane.xlu0 %1810
    %v1812 = vmul.f32 %v1811, %v1566
    %v1813 = vadd.f32 %v1812, 1e-05
    %v1814 = vrsqrt.pop %v1813
    %v1815 = vmul.f32 %v1814, %v1813
    %v1816 = vmul.f32 %v1815, %v1814
    %v1817 = vmul.f32 0.5, %v1816
    %v1818 = vsub.f32 1.5, %v1817
    %v1819 = vmul.f32 %v1814, %v1818
    %vm1820 = vweird.f32 %v1813
    %vm1821 = vweird.f32 %v1814
    %vm1822 = vmor %vm1820, %vm1821
    %v1823 = vsel %vm1822, %v1814, %v1819
    %v1824 = vmul.f32 %v1807, %v1823
    %v1825 = vmul.f32 %v1824, %v1587
    %v1826 = vadd.f32 %v1825, %v1591
    %v1827 = vpack.c.bf16 %v1826, %v1826
    %v1829 = vsel %vm337, %v1827, 0
    %1831 = vmatpush.bf16.msra.mxu0 0
    %1832 = vmatpush.bf16.msra.mxu0 0
    %1833 = vmatpush.bf16.msra.mxu0 0
    %1834 = vmatpush.bf16.msra.mxu0 0
    %1835 = vmatpush.bf16.msra.mxu0 0
    %1836 = vmatpush.bf16.msra.mxu0 0
    %1837 = vmatpush.bf16.msra.mxu0 %v1607
    %1838 = vmatpush.bf16.msra.mxu0 %v1606
    %1839 = vmatmul.bf16.gmra.mxu0 %v1829
    %v1840 = vpop.f32.mrf.mxu0
    %v1841 = vadd.f32 %v1596, %v1840
    %v1842 = vpop.f32.mrf.mxu0
    %1843 = vdwg.mxu0
    %v1844 = vmax.f32 %v1841, 0.0
    %v1845 = vmul.f32 %v1844, %v1628
    %v1846 = vsel %vm397, %v1845, 0.0
    %1847 = vadd.xlane.f32.xlu0 %v1846
    %v1848 = vpop.xlane.xlu0 %1847
    %v1849 = vadd.f32 %v1848, %v1635
    %1851 = vrot.lane.b32.xlu0 %v1849, 4
    %v1852 = vpop.permute.xlu0 %1851
    %vm1854 = vcmask 33824
    %1855 = vst.msk [vmem:[#allocation16] sm:$0x3] %vm1854, %v1852
    %v1856 = vld [vmem:[%s722] sm:$0x3]
    %v1857 = vsel %vm397, %v1856, 0.0
    %1858 = vadd.xlane.f32.xlu0 %v1857
    %v1859 = vpop.xlane.xlu0 %1858
    %v1860 = vmul.f32 %v1859, %v1566
    %v1861 = vsub.f32 %v1856, %v1860
    %v1862 = vmul.f32 %v1861, %v1861
    %v1863 = vsel %vm397, %v1862, 0.0
    %1864 = vadd.xlane.f32.xlu0 %v1863
    %v1865 = vpop.xlane.xlu0 %1864
    %v1866 = vmul.f32 %v1865, %v1566
    %v1867 = vadd.f32 %v1866, 1e-05
    %v1868 = vrsqrt.pop %v1867
    %v1869 = vmul.f32 %v1868, %v1867
    %v1870 = vmul.f32 %v1869, %v1868
    %v1871 = vmul.f32 0.5, %v1870
    %v1872 = vsub.f32 1.5, %v1871
    %v1873 = vmul.f32 %v1868, %v1872
    %vm1874 = vweird.f32 %v1867
    %vm1875 = vweird.f32 %v1868
    %vm1876 = vmor %vm1874, %vm1875
    %v1877 = vsel %vm1876, %v1868, %v1873
    %v1878 = vmul.f32 %v1861, %v1877
    %v1879 = vmul.f32 %v1878, %v1587
    %v1880 = vadd.f32 %v1879, %v1591
    %v1881 = vpack.c.bf16 %v1880, %v1880
    %v1883 = vsel %vm337, %v1881, 0
    %1885 = vmatpush.bf16.msra.mxu0 0
    %1886 = vmatpush.bf16.msra.mxu0 0
    %1887 = vmatpush.bf16.msra.mxu0 0
    %1888 = vmatpush.bf16.msra.mxu0 0
    %1889 = vmatpush.bf16.msra.mxu0 0
    %1890 = vmatpush.bf16.msra.mxu0 0
    %1891 = vmatpush.bf16.msra.mxu0 %v1607
    %1892 = vmatpush.bf16.msra.mxu0 %v1606
    %1893 = vmatmul.bf16.gmra.mxu0 %v1883
    %v1894 = vpop.f32.mrf.mxu0
    %v1895 = vadd.f32 %v1596, %v1894
    %v1896 = vpop.f32.mrf.mxu0
    %1897 = vdwg.mxu0
    %v1898 = vmax.f32 %v1895, 0.0
    %v1899 = vmul.f32 %v1898, %v1628
    %v1900 = vsel %vm397, %v1899, 0.0
    %1901 = vadd.xlane.f32.xlu0 %v1900
    %v1902 = vpop.xlane.xlu0 %1901
    %v1903 = vadd.f32 %v1902, %v1635
    %1905 = vrot.lane.b32.xlu0 %v1903, 5
    %v1906 = vpop.permute.xlu0 %1905
    %vm1908 = vcmask 42024
    %1909 = vst.msk [vmem:[#allocation16] sm:$0x3] %vm1908, %v1906
    %v1910 = vld [vmem:[%s787] sm:$0x3]
    %v1911 = vsel %vm397, %v1910, 0.0
    %1912 = vadd.xlane.f32.xlu0 %v1911
    %v1913 = vpop.xlane.xlu0 %1912
    %v1914 = vmul.f32 %v1913, %v1566
    %v1915 = vsub.f32 %v1910, %v1914
    %v1916 = vmul.f32 %v1915, %v1915
    %v1917 = vsel %vm397, %v1916, 0.0
    %1918 = vadd.xlane.f32.xlu0 %v1917
    %v1919 = vpop.xlane.xlu0 %1918
    %v1920 = vmul.f32 %v1919, %v1566
    %v1921 = vadd.f32 %v1920, 1e-05
    %v1922 = vrsqrt.pop %v1921
    %v1923 = vmul.f32 %v1922, %v1921
    %v1924 = vmul.f32 %v1923, %v1922
    %v1925 = vmul.f32 0.5, %v1924
    %v1926 = vsub.f32 1.5, %v1925
    %v1927 = vmul.f32 %v1922, %v1926
    %vm1928 = vweird.f32 %v1921
    %vm1929 = vweird.f32 %v1922
    %vm1930 = vmor %vm1928, %vm1929
    %v1931 = vsel %vm1930, %v1922, %v1927
    %v1932 = vmul.f32 %v1915, %v1931
    %v1933 = vmul.f32 %v1932, %v1587
    %v1934 = vadd.f32 %v1933, %v1591
    %v1935 = vpack.c.bf16 %v1934, %v1934
    %v1937 = vsel %vm337, %v1935, 0
    %1939 = vmatpush.bf16.msra.mxu0 0
    %1940 = vmatpush.bf16.msra.mxu0 0
    %1941 = vmatpush.bf16.msra.mxu0 0
    %1942 = vmatpush.bf16.msra.mxu0 0
    %1943 = vmatpush.bf16.msra.mxu0 0
    %1944 = vmatpush.bf16.msra.mxu0 0
    %1945 = vmatpush.bf16.msra.mxu0 %v1607
    %1946 = vmatpush.bf16.msra.mxu0 %v1606
    %1947 = vmatmul.bf16.gmra.mxu0 %v1937
    %v1948 = vpop.f32.mrf.mxu0
    %v1949 = vadd.f32 %v1596, %v1948
    %v1950 = vpop.f32.mrf.mxu0
    %1951 = vdwg.mxu0
    %v1952 = vmax.f32 %v1949, 0.0
    %v1953 = vmul.f32 %v1952, %v1628
    %v1954 = vsel %vm397, %v1953, 0.0
    %1955 = vadd.xlane.f32.xlu0 %v1954
    %v1956 = vpop.xlane.xlu0 %1955
    %v1957 = vadd.f32 %v1956, %v1635
    %1959 = vrot.lane.b32.xlu0 %v1957, 6
    %v1960 = vpop.permute.xlu0 %1959
    %vm1962 = vcmask 50224
    %1963 = vst.msk [vmem:[#allocation16] sm:$0x3] %vm1962, %v1960
    %v1964 = vld [vmem:[%s852] sm:$0x3]
    %v1965 = vsel %vm397, %v1964, 0.0
    %1966 = vadd.xlane.f32.xlu0 %v1965
    %v1967 = vpop.xlane.xlu0 %1966
    %v1968 = vmul.f32 %v1967, %v1566
    %v1969 = vsub.f32 %v1964, %v1968
    %v1970 = vmul.f32 %v1969, %v1969
    %v1971 = vsel %vm397, %v1970, 0.0
    %1972 = vadd.xlane.f32.xlu0 %v1971
    %v1973 = vpop.xlane.xlu0 %1972
    %v1974 = vmul.f32 %v1973, %v1566
    %v1975 = vadd.f32 %v1974, 1e-05
    %v1976 = vrsqrt.pop %v1975
    %v1977 = vmul.f32 %v1976, %v1975
    %v1978 = vmul.f32 %v1977, %v1976
    %v1979 = vmul.f32 0.5, %v1978
    %v1980 = vsub.f32 1.5, %v1979
    %v1981 = vmul.f32 %v1976, %v1980
    %vm1982 = vweird.f32 %v1975
    %vm1983 = vweird.f32 %v1976
    %vm1984 = vmor %vm1982, %vm1983
    %v1985 = vsel %vm1984, %v1976, %v1981
    %v1986 = vmul.f32 %v1969, %v1985
    %v1987 = vmul.f32 %v1986, %v1587
    %v1988 = vadd.f32 %v1987, %v1591
    %v1989 = vpack.c.bf16 %v1988, %v1988
    %v1991 = vsel %vm337, %v1989, 0
    %1993 = vmatpush.bf16.msra.mxu0 0
    %1994 = vmatpush.bf16.msra.mxu0 0
    %1995 = vmatpush.bf16.msra.mxu0 0
    %1996 = vmatpush.bf16.msra.mxu0 0
    %1997 = vmatpush.bf16.msra.mxu0 0
    %1998 = vmatpush.bf16.msra.mxu0 0
    %1999 = vmatpush.bf16.msra.mxu0 %v1607
    %2000 = vmatpush.bf16.msra.mxu0 %v1606
    %2001 = vmatmul.bf16.gmra.mxu0 %v1991
    %v2002 = vpop.f32.mrf.mxu0
    %v2003 = vadd.f32 %v1596, %v2002
    %v2004 = vpop.f32.mrf.mxu0
    %2005 = vdwg.mxu0
    %v2006 = vmax.f32 %v2003, 0.0
    %v2007 = vmul.f32 %v2006, %v1628
    %v2008 = vsel %vm397, %v2007, 0.0
    %2009 = vadd.xlane.f32.xlu0 %v2008
    %v2010 = vpop.xlane.xlu0 %2009
    %v2011 = vadd.f32 %v2010, %v1635
    %2013 = vrot.lane.b32.xlu0 %v2011, 7
    %v2014 = vpop.permute.xlu0 %2013
    %vm2016 = vcmask 58424
    %2017 = vst.msk [vmem:[#allocation16] sm:$0x3] %vm2016, %v2014
    // Predicated region
    $region78: #{tpu_custom_call.1} parent=1 // pred_check
      _
    $region79: #{tpu_custom_call.1} parent=1 // pred_check_branch
      %2019 = sbr.rel (0) target = $region81
    $region80: #{tpu_custom_call.1} parent=1 // pred_region
      %2021 = vsyncadd [#allocation7], 0
      %s2023 = sshll.u32 [#allocation16], 4
      %s2024 = int_to_ptr.vmem [resolvable:$true] %s2023
      %s2025 = sshll.u32 %s13, 4
      %s2026 = int_to_ptr.hbm [resolvable:$true] %s2025
      %2028 = dma.vmem_to_hbm [thread:$0]  %s2024, 32, %s2026, [#allocation7]
    $region81: #{tpu_custom_call.1} parent=1 // pred_fallthru
      _
    // Predicated region
    $region82: #{tpu_custom_call.1} parent=1 // pred_check
      _
    $region83: #{tpu_custom_call.1} parent=1 // pred_check_branch
      %2030 = sbr.rel (0) target = $region85
    $region84: #{tpu_custom_call.1} parent=1 // pred_region
      %2032 = dma.done [#allocation7], 32
    $region85: #{tpu_custom_call.1} parent=1 // pred_fallthru
      _
    %2033 = vsyncpa [#allocation6], 1
    %2034 = vsyncpa [#allocation9], 1
    %2035 = vsyncpa [#allocation12], 1
    %2036 = vsyncpa [#allocation15], 1
    %2037 = vsyncpa [#allocation7], 1

</llo_original>
